<compile_context>
chip_gen: v7x
topology: tpu7x:2x2x1
jax: 0.10.0
libtpu: 0.0.40
codegen_flags: <defaults>
</compile_context>

<pallas_src>
import functools

import jax
import jax.numpy as jnp
import numpy as np
from jax.experimental import pallas as pl
from jax.experimental.pallas import tpu as pltpu


def _round_up(x, m):
    return (x + m - 1) // m * m


# ---------------------------------------------------------------------------
# Pallas kernel: parity-decomposed transposed conv + bias + tanh (fused)
# ---------------------------------------------------------------------------
def _upconv_tanh_kernel(x_ref, w_ref, b_ref, o_ref, *, tr, ws_p, cin_p,
                        couts_p, q):
    # x_ref: (hp_pad, wp_pad, cin_p)  bf16  whole padded input image (1 batch)
    # w_ref: (q*q, cin_p, couts_p)    bf16  parity-folded kernel taps
    # b_ref: (1, couts_p)             f32   bias replicated per parity group
    # o_ref: (tr, ws_p, couts_p)      f32   one super-pixel row block
    r0 = pl.multiple_of(pl.program_id(1) * tr, 8)   # first super-pixel row

    acc = jnp.zeros((tr * ws_p, couts_p), jnp.float32)
    for dy in range(q):                 # q*q = 4 accumulating matmuls,
        for dx in range(q):             # rows folded into the M dimension
            t = dy * q + dx
            slab = x_ref[pl.ds(r0 + dy, tr), pl.ds(dx, ws_p), :]
            acc += jnp.dot(slab.reshape(tr * ws_p, cin_p), w_ref[t],
                           preferred_element_type=jnp.float32)

    y = jnp.tanh(acc + b_ref[...])      # f32 epilogue, fused
    o_ref[...] = y.reshape(tr, ws_p, couts_p).astype(o_ref.dtype)


# ---------------------------------------------------------------------------
# Wrapper: NCHW in / NCHW out, PyTorch ConvTranspose2d weight layout
# ---------------------------------------------------------------------------
def upconv_tanh_forward(x_nchw, weight, bias, *, kernel_size=3, stride=2,
                        tr=32):
    """ConvTranspose2d(Cin, Cout, kernel_size, stride, padding=0) + Tanh."""
    N, Cin, H, W = x_nchw.shape
    cin_w, Cout, kh_w, kw_w = weight.shape
    assert cin_w == Cin and kh_w == kernel_size and kw_w == kernel_size
    k, s = kernel_size, stride

    Ho = (H - 1) * s + k
    Wo = (W - 1) * s + k
    Q = (k - 1) // s + 1                 # taps per axis contributing to a parity
    HR = -(-Ho // s)                     # super-pixel rows  (ceil(Ho / s))
    WR = -(-Wo // s)                     # super-pixel cols

    # Padded, tile-friendly sizes.
    cin_p = _round_up(Cin, 8)
    couts = s * s * Cout                 # all parities packed into channels
    couts_p = _round_up(couts, 128)      # lane-dense output stores
    tr_eff = min(tr, _round_up(HR, 8))
    hr_p = _round_up(HR, tr_eff)
    ws_p = _round_up(WR, 16)             # 16: keeps the bf16 M-flatten clean
    hp_pad = hr_p + Q - 1                # padded-input rows the kernel touches
    wp_pad = ws_p + Q - 1

    # Input: NHWC, zero-pad (Q-1) on top/left + trailing pad to tiled sizes,
    # channel pad, then bf16 (MXU operands; accumulation stays f32).
    x_nhwc = jnp.transpose(x_nchw, (0, 2, 3, 1)).astype(jnp.float32)
    xp = jnp.pad(x_nhwc,
                 ((0, 0),
                  (Q - 1, hp_pad - (Q - 1) - H),
                  (Q - 1, wp_pad - (Q - 1) - W),
                  (0, cin_p - Cin))).astype(jnp.bfloat16)

    # Parity-folded weights.
    #   out[s*j + py, s*c + px, co] = sum_{dy,dx,ci} xp[j+dy, c+dx, ci]
    #                                 * W[ci, co, py + (Q-1-dy)*s, px + (Q-1-dx)*s]
    # Folded as wt[dy*Q+dx, ci, (py*s+px)*Cout + co]; invalid taps are zero.
    w_f32 = weight.astype(jnp.float32)
    wt = jnp.zeros((Q * Q, cin_p, couts_p), jnp.float32)
    for dy in range(Q):
        for dx in range(Q):
            t = dy * Q + dx
            for py in range(s):
                for px in range(s):
                    ky = py + (Q - 1 - dy) * s
                    kx = px + (Q - 1 - dx) * s
                    if ky < k and kx < k:
                        g = py * s + px
                        wt = wt.at[t, :Cin, g * Cout:(g + 1) * Cout].set(
                            w_f32[:, :, ky, kx])
    wt = wt.astype(jnp.bfloat16)

    b_f = jnp.zeros((1, couts_p), jnp.float32)
    b_f = b_f.at[0, :couts].set(jnp.tile(bias.astype(jnp.float32), s * s))

    grid = (N, hr_p // tr_eff)
    kernel = functools.partial(_upconv_tanh_kernel, tr=tr_eff, ws_p=ws_p,
                               cin_p=cin_p, couts_p=couts_p, q=Q)

    # Explicit scoped-VMEM budget (v5e default is only ~16 MiB).
    est = 2 * (hp_pad * wp_pad * cin_p * 2            # x block (bf16, 2 bufs)
               + Q * Q * cin_p * couts_p * 2          # weights
               + couts_p * 4                          # bias
               + tr_eff * ws_p * couts_p * 4)         # out block (f32, 2 bufs)
    est += 4 * tr_eff * ws_p * couts_p * 4            # in-kernel f32 temps
    vmem_limit = int(min(64 * 1024 * 1024, max(32 * 1024 * 1024, 2 * est)))

    out_padded = pl.pallas_call(
        kernel,
        out_shape=jax.ShapeDtypeStruct((N, hr_p, ws_p, couts_p), jnp.float32),
        grid_spec=pltpu.PrefetchScalarGridSpec(
            num_scalar_prefetch=0,
            grid=grid,
            in_specs=[
                # Whole padded input image of this batch element (input-sized,
                # 4x smaller than the old zero-inserted image); re-DMA'd only
                # when the batch grid index changes.
                pl.BlockSpec((None, hp_pad, wp_pad, cin_p),
                             lambda n, i: (n, 0, 0, 0)),
                pl.BlockSpec((Q * Q, cin_p, couts_p), lambda n, i: (0, 0, 0)),
                pl.BlockSpec((1, couts_p), lambda n, i: (0, 0)),
            ],
            out_specs=pl.BlockSpec((None, tr_eff, ws_p, couts_p),
                                   lambda n, i: (n, i, 0, 0)),
        ),
        compiler_params=pltpu.CompilerParams(
            dimension_semantics=("parallel", "parallel"),
            vmem_limit_bytes=vmem_limit),
    )(xp, wt, b_f)

    # Interleave parities (depth-to-space) and crop — output-sized XLA ops.
    out = out_padded[:, :HR, :WR, :couts]
    out = out.reshape(N, HR, WR, s, s, Cout)
    out = jnp.transpose(out, (0, 1, 3, 2, 4, 5)).reshape(N, HR * s, WR * s, Cout)
    out = out[:, :Ho, :Wo, :]
    return jnp.transpose(out, (0, 3, 1, 2))            # NHWC -> NCHW


# ---------------------------------------------------------------------------
# Pure-JAX reference: direct scatter form of ConvTranspose2d + tanh
# ---------------------------------------------------------------------------
def _reference(x_nchw, weight, bias, *, kernel_size=3, stride=2):
    N, Cin, H, W = x_nchw.shape
    Cout = weight.shape[1]
    k, s = kernel_size, stride
    Ho = (H - 1) * s + k
    Wo = (W - 1) * s + k
    contrib = (x_nchw[:, :, None, :, :, None, None] *
               weight[None, :, :, None, None, :, :]).sum(axis=1)
    out = jnp.zeros((N, Cout, Ho, Wo), jnp.float32)
    for kh in range(k):
        for kw in range(k):
            out = out.at[:, :, kh:kh + s * H:s, kw:kw + s * W:s].add(
                contrib[..., kh, kw])
    out = out + bias.reshape(1, -1, 1, 1)
    return jnp.tanh(out)


if __name__ == "__main__":
    key = jax.random.PRNGKey(0)
    N, Cin, H, W = 2, 4, 16, 16
    Cout = 8

    k1, k2, k3 = jax.random.split(key, 3)
    x = jax.random.normal(k1, (N, Cin, H, W), jnp.float32)
    # PyTorch ConvTranspose2d weight layout: (in_channels, out_channels, kH, kW)
    weight = jax.random.normal(k2, (Cin, Cout, 3, 3), jnp.float32) * 0.1
    bias = jax.random.normal(k3, (Cout,), jnp.float32) * 0.1

    fwd = jax.jit(upconv_tanh_forward)
    out = jax.block_until_ready(fwd(x, weight, bias))
    ref = jax.block_until_ready(_reference(x, weight, bias))

    assert out.shape == (N, Cout, 2 * H + 1, 2 * W + 1), out.shape
    err = float(np.max(np.abs(np.asarray(out) - np.asarray(ref))))
    # bf16 MXU operands with f32 accumulation -> slightly looser tolerance.
    assert np.allclose(np.asarray(out), np.asarray(ref), atol=1e-2, rtol=1e-2), err
    print("KERNEL_OK")
</pallas_src>

<mosaic_0001>
module attributes {stable_mosaic.version = 11 : i64} {
  func.func @_upconv_tanh_kernel(%arg0: i32, %arg1: i32, %arg2: memref<1x25x33x8xbf16, #tpu.memory_space<vmem>>, %arg3: memref<4x8x128xbf16, #tpu.memory_space<vmem>>, %arg4: memref<1x128xf32, #tpu.memory_space<vmem>>, %arg5: memref<1x24x32x128xf32, #tpu.memory_space<vmem>>) attributes {dimension_semantics = [#tpu.dimension_semantics<parallel>, #tpu.dimension_semantics<parallel>], iteration_bounds = array<i64: 2, 1>, scalar_prefetch = 0 : i64, scratch_operands = 0 : i64, tpu.core_type = #tpu.core_type<tc>, window_params = [{transform_indices = @transform_0, window_bounds = array<i64: 1, 25, 33, 8>}, {pipeline_mode = #tpu.pipeline_mode<synchronous>, transform_indices = @transform_1, window_bounds = array<i64: 4, 8, 128>}, {pipeline_mode = #tpu.pipeline_mode<synchronous>, transform_indices = @transform_2, window_bounds = array<i64: 1, 128>}, {transform_indices = @transform_3, window_bounds = array<i64: 1, 24, 32, 128>}]} {
    %c24_i32 = arith.constant 24 : i32
    %0 = arith.muli %arg1, %c24_i32 : i32
    %1 = tpu.assume_multiple %0, 8 : i32
    %cst = arith.constant 0.000000e+00 : f32
    %2 = vector.broadcast %cst : f32 to vector<768x128xf32>
    %c0_i32 = arith.constant 0 : i32
    %3 = arith.addi %1, %c0_i32 : i32
    %c0 = arith.constant 0 : index
    %4 = arith.index_cast %3 : i32 to index
    %c0_0 = arith.constant 0 : index
    %c0_1 = arith.constant 0 : index
    %5 = vector.load %arg2[%c0, %4, %c0_0, %c0_1] : memref<1x25x33x8xbf16, #tpu.memory_space<vmem>>, vector<1x24x32x8xbf16>
    %6 = vector.shape_cast %5 : vector<1x24x32x8xbf16> to vector<24x32x8xbf16>
    %7 = vector.shape_cast %6 : vector<24x32x8xbf16> to vector<768x8xbf16>
    %c0_2 = arith.constant 0 : index
    %c0_3 = arith.constant 0 : index
    %c0_4 = arith.constant 0 : index
    %8 = vector.load %arg3[%c0_2, %c0_3, %c0_4] : memref<4x8x128xbf16, #tpu.memory_space<vmem>>, vector<1x8x128xbf16>
    %9 = vector.shape_cast %8 : vector<1x8x128xbf16> to vector<8x128xbf16>
    %cst_5 = arith.constant dense<0.000000e+00> : vector<768x128xf32>
    %10 = tpu.matmul %7, %9, %cst_5 {dimension_numbers = #tpu.dot_dimension_numbers<[1], [0], [0], [1], [0, 0, 1, 1], [], []>} : vector<768x8xbf16>, vector<8x128xbf16>, vector<768x128xf32> -> vector<768x128xf32>
    %11 = arith.addf %2, %10 : vector<768x128xf32>
    %c0_i32_6 = arith.constant 0 : i32
    %12 = arith.addi %1, %c0_i32_6 : i32
    %c0_7 = arith.constant 0 : index
    %13 = arith.index_cast %12 : i32 to index
    %c1 = arith.constant 1 : index
    %c0_8 = arith.constant 0 : index
    %14 = vector.load %arg2[%c0_7, %13, %c1, %c0_8] : memref<1x25x33x8xbf16, #tpu.memory_space<vmem>>, vector<1x24x32x8xbf16>
    %15 = vector.shape_cast %14 : vector<1x24x32x8xbf16> to vector<24x32x8xbf16>
    %16 = vector.shape_cast %15 : vector<24x32x8xbf16> to vector<768x8xbf16>
    %c1_9 = arith.constant 1 : index
    %c0_10 = arith.constant 0 : index
    %c0_11 = arith.constant 0 : index
    %17 = vector.load %arg3[%c1_9, %c0_10, %c0_11] : memref<4x8x128xbf16, #tpu.memory_space<vmem>>, vector<1x8x128xbf16>
    %18 = vector.shape_cast %17 : vector<1x8x128xbf16> to vector<8x128xbf16>
    %cst_12 = arith.constant dense<0.000000e+00> : vector<768x128xf32>
    %19 = tpu.matmul %16, %18, %cst_12 {dimension_numbers = #tpu.dot_dimension_numbers<[1], [0], [0], [1], [0, 0, 1, 1], [], []>} : vector<768x8xbf16>, vector<8x128xbf16>, vector<768x128xf32> -> vector<768x128xf32>
    %20 = arith.addf %11, %19 : vector<768x128xf32>
    %c1_i32 = arith.constant 1 : i32
    %21 = arith.addi %1, %c1_i32 : i32
    %c0_13 = arith.constant 0 : index
    %22 = arith.index_cast %21 : i32 to index
    %c0_14 = arith.constant 0 : index
    %c0_15 = arith.constant 0 : index
    %23 = vector.load %arg2[%c0_13, %22, %c0_14, %c0_15] : memref<1x25x33x8xbf16, #tpu.memory_space<vmem>>, vector<1x24x32x8xbf16>
    %24 = vector.shape_cast %23 : vector<1x24x32x8xbf16> to vector<24x32x8xbf16>
    %25 = vector.shape_cast %24 : vector<24x32x8xbf16> to vector<768x8xbf16>
    %c2 = arith.constant 2 : index
    %c0_16 = arith.constant 0 : index
    %c0_17 = arith.constant 0 : index
    %26 = vector.load %arg3[%c2, %c0_16, %c0_17] : memref<4x8x128xbf16, #tpu.memory_space<vmem>>, vector<1x8x128xbf16>
    %27 = vector.shape_cast %26 : vector<1x8x128xbf16> to vector<8x128xbf16>
    %cst_18 = arith.constant dense<0.000000e+00> : vector<768x128xf32>
    %28 = tpu.matmul %25, %27, %cst_18 {dimension_numbers = #tpu.dot_dimension_numbers<[1], [0], [0], [1], [0, 0, 1, 1], [], []>} : vector<768x8xbf16>, vector<8x128xbf16>, vector<768x128xf32> -> vector<768x128xf32>
    %29 = arith.addf %20, %28 : vector<768x128xf32>
    %c1_i32_19 = arith.constant 1 : i32
    %30 = arith.addi %1, %c1_i32_19 : i32
    %c0_20 = arith.constant 0 : index
    %31 = arith.index_cast %30 : i32 to index
    %c1_21 = arith.constant 1 : index
    %c0_22 = arith.constant 0 : index
    %32 = vector.load %arg2[%c0_20, %31, %c1_21, %c0_22] : memref<1x25x33x8xbf16, #tpu.memory_space<vmem>>, vector<1x24x32x8xbf16>
    %33 = vector.shape_cast %32 : vector<1x24x32x8xbf16> to vector<24x32x8xbf16>
    %34 = vector.shape_cast %33 : vector<24x32x8xbf16> to vector<768x8xbf16>
    %c3 = arith.constant 3 : index
    %c0_23 = arith.constant 0 : index
    %c0_24 = arith.constant 0 : index
    %35 = vector.load %arg3[%c3, %c0_23, %c0_24] : memref<4x8x128xbf16, #tpu.memory_space<vmem>>, vector<1x8x128xbf16>
    %36 = vector.shape_cast %35 : vector<1x8x128xbf16> to vector<8x128xbf16>
    %cst_25 = arith.constant dense<0.000000e+00> : vector<768x128xf32>
    %37 = tpu.matmul %34, %36, %cst_25 {dimension_numbers = #tpu.dot_dimension_numbers<[1], [0], [0], [1], [0, 0, 1, 1], [], []>} : vector<768x8xbf16>, vector<8x128xbf16>, vector<768x128xf32> -> vector<768x128xf32>
    %38 = arith.addf %29, %37 : vector<768x128xf32>
    %c0_26 = arith.constant 0 : index
    %c0_27 = arith.constant 0 : index
    %39 = vector.load %arg4[%c0_26, %c0_27] : memref<1x128xf32, #tpu.memory_space<vmem>>, vector<1x128xf32>
    %40 = vector.broadcast %39 : vector<1x128xf32> to vector<768x128xf32>
    %41 = arith.addf %38, %40 : vector<768x128xf32>
    %42 = math.tanh %41 : vector<768x128xf32>
    %43 = vector.shape_cast %42 : vector<768x128xf32> to vector<24x32x128xf32>
    %c0_28 = arith.constant 0 : index
    %c0_29 = arith.constant 0 : index
    %c0_30 = arith.constant 0 : index
    %c0_31 = arith.constant 0 : index
    %44 = vector.load %arg5[%c0_28, %c0_29, %c0_30, %c0_31] : memref<1x24x32x128xf32, #tpu.memory_space<vmem>>, vector<1x24x32x128xf32>
    %45 = vector.shape_cast %44 : vector<1x24x32x128xf32> to vector<24x32x128xf32>
    %46 = vector.shape_cast %43 : vector<24x32x128xf32> to vector<1x24x32x128xf32>
    tpu.vector_store %arg5[%c0_28, %c0_29, %c0_30, %c0_31], %46 {strides = array<i32>} : memref<1x24x32x128xf32, #tpu.memory_space<vmem>>, vector<1x24x32x128xf32>,
    return
  }
  func.func @transform_0(%arg0: i32, %arg1: i32) -> (i32, i32, i32, i32) {
    %c0_i32 = arith.constant 0 : i32
    %c0_i32_0 = arith.constant 0 : i32
    %c0_i32_1 = arith.constant 0 : i32
    %c0_i32_2 = arith.constant 0 : i32
    return %arg0, %c0_i32, %c0_i32_0, %c0_i32_1 : i32, i32, i32, i32
  }
  func.func @transform_1(%arg0: i32, %arg1: i32) -> (i32, i32, i32) {
    %c0_i32 = arith.constant 0 : i32
    %c0_i32_0 = arith.constant 0 : i32
    %c0_i32_1 = arith.constant 0 : i32
    %c0_i32_2 = arith.constant 0 : i32
    return %c0_i32, %c0_i32_0, %c0_i32_1 : i32, i32, i32
  }
  func.func @transform_2(%arg0: i32, %arg1: i32) -> (i32, i32) {
    %c0_i32 = arith.constant 0 : i32
    %c0_i32_0 = arith.constant 0 : i32
    %c0_i32_1 = arith.constant 0 : i32
    return %c0_i32, %c0_i32_0 : i32, i32
  }
  func.func @transform_3(%arg0: i32, %arg1: i32) -> (i32, i32, i32, i32) {
    %c0_i32 = arith.constant 0 : i32
    %c0_i32_0 = arith.constant 0 : i32
    %c0_i32_1 = arith.constant 0 : i32
    return %arg0, %arg1, %c0_i32, %c0_i32_0 : i32, i32, i32, i32
  }
}

</mosaic_0001>

<llo_original>
// kernel: upconv_tanh_forward.1
$region0: #{upconv_tanh_forward.1}
  #allocation0 [shape = 'u32[]', space=smem, size = 0x4, offset = 0x4, fixed_abs, tag = 'smem constant byte address 0x4 - core index']
  #allocation1 [shape = 'u32[144,128]{1,0:T(1,128)}', space=vmem, size = 0x12000, scoped, tag = 'internal scratch']
  %s0 = inlined_call_operand.vmem [shape: bf16[2,25,33,8], index: 0, kind: input, shape index: {}]
  %s1 = inlined_call_operand.vmem [shape: bf16[4,8,128], index: 1, kind: input, shape index: {}]
  %s2 = inlined_call_operand.vmem [shape: f32[1,128], index: 2, kind: input, shape index: {}]
  %s3 = inlined_call_operand.vmem [shape: f32[2,24,32,128], index: 3, kind: output, shape index: {}]
  %s4 = sld [smem:[#allocation0]]
  $region45: #{upconv_tanh_forward.1} parent=0
    _
  %s6 = ssub.s32 1, %s4
  %s7 = scalar_select 0, %s6, %s4
  loop: start=0, step=1, limit=4
  $region2: #{upconv_tanh_forward.1} parent=0 // loop_pre_header
    _
  $region3: #{upconv_tanh_forward.1} parent=0 // loop_header
    %s9 = sphi 0, %s13
    %p10 = scmp.ge.s32.totalorder %s9, 4
    %s16 = sphi 0, %s28
    %s17 = sphi 0, %s24
    %s18 = sphi 0, %s16
    %s19 = sphi 0, %s17
    %s20 = sphi 0, %s18
    %s21 = sphi 0, %s19
    %s31 = sphi 0, %s33
    %s34 = sphi 0, %s31
    %s35 = sphi 0, %s34
    %s51 = sphi 0, %s35
    %s55 = sphi 0, %s55
    %s57 = sphi 0, %s55
    %s58 = sphi 0, %s57
    %s72 = sphi 0, %s58
    %s76 = sphi 0, %s76
    %s78 = sphi 0, %s76
    %s79 = sphi 0, %s78
    %s93 = sphi 0, %s79
    %s101 = sphi 0, %s103
    %s104 = sphi 0, %s101
    %s105 = sphi 0, %s104
    %s121 = sphi 0, %s105
  $region4: #{upconv_tanh_forward.1} parent=0 // loop_header_branch
    %12 = sbr.rel (%p10) target = $region8
  $region5: #{upconv_tanh_forward.1} parent=0 // loop_body
    %s14 = ssub.s32 %s9, 1
    %s15 = ssub.s32 %s9, 2
    %s22 = sadd.s32 1, %s17
    %p23 = scmp.ge.s32.totalorder %s22, 1
    %s24 = scalar_select %p23, 0, %s22
    %s25 = sadd.s32 1, %s16
    %s26 = scalar_select %p23, %s25, %s16
    %p27 = scmp.ge.s32.totalorder %s26, 2
    %s28 = scalar_select %p27, 0, %s26
    %s29 = ssub.s32 %s16, %s28
    %p30 = scmp.eq.s32.totalorder %s29, 0
    %s32 = sadd.s32 %s31, 1
    %s33 = scalar_select %p30, %s31, %s32
    %p36 = pneg %p30
    %p37 = scmp.eq.s32.totalorder %s9, 1
    %p38 = por %p36, %p37
    %p39 = scmp.ne.s32.totalorder %s31, %s34
    %p40 = scmp.eq.s32.totalorder %s9, 0
    %p41 = por %p39, %p40
    %p42 = scmp.ne.s32.totalorder %s31, %s34
    %p43 = scmp.eq.s32.totalorder %s14, 1
    %p44 = por %p42, %p43
    %p45 = scmp.ne.s32.totalorder %s34, %s35
    %p46 = scmp.eq.s32.totalorder %s14, 0
    %p47 = por %p45, %p46
    %p48 = scmp.ne.s32.totalorder %s34, %s35
    %p49 = scmp.eq.s32.totalorder %s15, 1
    %p50 = por %p48, %p49
    %p52 = scmp.ne.s32.totalorder %s35, %s51
    %p53 = scmp.eq.s32.totalorder %s15, 0
    %p54 = por %p52, %p53
    %s56 = sadd.s32 %s55, 1
    %p59 = scmp.eq.s32.totalorder %s9, 1
    %p60 = scmp.ne.s32.totalorder %s55, %s57
    %p61 = scmp.eq.s32.totalorder %s9, 0
    %p62 = por %p60, %p61
    %p63 = scmp.ne.s32.totalorder %s55, %s57
    %p64 = scmp.eq.s32.totalorder %s14, 1
    %p65 = por %p63, %p64
    %p66 = scmp.ne.s32.totalorder %s57, %s58
    %p67 = scmp.eq.s32.totalorder %s14, 0
    %p68 = por %p66, %p67
    %p69 = scmp.ne.s32.totalorder %s57, %s58
    %p70 = scmp.eq.s32.totalorder %s15, 1
    %p71 = por %p69, %p70
    %p73 = scmp.ne.s32.totalorder %s58, %s72
    %p74 = scmp.eq.s32.totalorder %s15, 0
    %p75 = por %p73, %p74
    %s77 = sadd.s32 %s76, 1
    %p80 = scmp.eq.s32.totalorder %s9, 1
    %p81 = scmp.ne.s32.totalorder %s76, %s78
    %p82 = scmp.eq.s32.totalorder %s9, 0
    %p83 = por %p81, %p82
    %p84 = scmp.ne.s32.totalorder %s76, %s78
    %p85 = scmp.eq.s32.totalorder %s14, 1
    %p86 = por %p84, %p85
    %p87 = scmp.ne.s32.totalorder %s78, %s79
    %p88 = scmp.eq.s32.totalorder %s14, 0
    %p89 = por %p87, %p88
    %p90 = scmp.ne.s32.totalorder %s78, %s79
    %p91 = scmp.eq.s32.totalorder %s15, 1
    %p92 = por %p90, %p91
    %p94 = scmp.ne.s32.totalorder %s79, %s93
    %p95 = scmp.eq.s32.totalorder %s15, 0
    %p96 = por %p94, %p95
    %s97 = ssub.s32 %s16, %s28
    %s98 = ssub.s32 %s17, %s24
    %s99 = sor.u32 %s97, %s98
    %p100 = scmp.eq.s32.totalorder %s99, 0
    %s102 = sadd.s32 %s101, 1
    %s103 = scalar_select %p100, %s101, %s102
    %p106 = pneg %p100
    %p107 = scmp.eq.s32.totalorder %s9, 1
    %p108 = por %p106, %p107
    %p109 = scmp.ne.s32.totalorder %s101, %s104
    %p110 = scmp.eq.s32.totalorder %s9, 0
    %p111 = por %p109, %p110
    %p112 = scmp.ne.s32.totalorder %s101, %s104
    %p113 = scmp.eq.s32.totalorder %s14, 1
    %p114 = por %p112, %p113
    %p115 = scmp.ne.s32.totalorder %s104, %s105
    %p116 = scmp.eq.s32.totalorder %s14, 0
    %p117 = por %p115, %p116
    %p118 = scmp.ne.s32.totalorder %s104, %s105
    %p119 = scmp.eq.s32.totalorder %s15, 1
    %p120 = por %p118, %p119
    %p122 = scmp.ne.s32.totalorder %s105, %s121
    %p123 = scmp.eq.s32.totalorder %s15, 0
    %p124 = por %p122, %p123
    %p125 = scmp.le.s32.totalorder 1, %s9
    %p126 = scmp.lt.s32.totalorder %s9, 3
    %p127 = pnand %p125, %p126
    %p128 = pneg %p127
    // Predicated region
    $region9: #{upconv_tanh_forward.1} parent=5 // pred_check
      _
    $region10: #{upconv_tanh_forward.1} parent=5 // pred_check_branch
      %130 = sbr.rel (%p127) target = $region12
    $region11: #{upconv_tanh_forward.1} parent=5 // pred_region
      %s131 = ssub.s32 %s9, 1
      // Predicated region
      $region13: #{upconv_tanh_forward.1} parent=11 // pred_check
        %p132 = pneg %p68
      $region14: #{upconv_tanh_forward.1} parent=11 // pred_check_branch
        %134 = sbr.rel (%p132) target = $region16
      $region15: #{upconv_tanh_forward.1} parent=11 // pred_region
        _
      $region16: #{upconv_tanh_forward.1} parent=11 // pred_fallthru
        _
      // Predicated region
      $region17: #{upconv_tanh_forward.1} parent=11 // pred_check
        %p135 = pneg %p89
      $region18: #{upconv_tanh_forward.1} parent=11 // pred_check_branch
        %137 = sbr.rel (%p135) target = $region20
      $region19: #{upconv_tanh_forward.1} parent=11 // pred_region
        _
      $region20: #{upconv_tanh_forward.1} parent=11 // pred_fallthru
        _
    $region12: #{upconv_tanh_forward.1} parent=5 // pred_fallthru
      _
    %p138 = scmp.lt.s32.totalorder %s9, 2
    // Predicated region
    $region21: #{upconv_tanh_forward.1} parent=5 // pred_check
      %p139 = pneg %p138
    $region22: #{upconv_tanh_forward.1} parent=5 // pred_check_branch
      %141 = sbr.rel (%p139) target = $region24
    $region23: #{upconv_tanh_forward.1} parent=5 // pred_region
      // Predicated region
      $region25: #{upconv_tanh_forward.1} parent=23 // pred_check
        %p142 = pneg %p41
      $region26: #{upconv_tanh_forward.1} parent=23 // pred_check_branch
        %144 = sbr.rel (%p142) target = $region28
      $region27: #{upconv_tanh_forward.1} parent=23 // pred_region
        %p145 = scmp.lt.s32.totalorder %s16, 1
        %s146 = scalar_select %p145, %s16, 1
        %s147 = smul.addr %s146, 125
        %s148 = smul.addr %s147, 4
        %s149 = scalar_lea.vmem %s0, %s148
      $region28: #{upconv_tanh_forward.1} parent=23 // pred_fallthru
        _
    $region24: #{upconv_tanh_forward.1} parent=5 // pred_fallthru
      _
    %p150 = scmp.le.s32.totalorder 1, %s9
    %p151 = scmp.lt.s32.totalorder %s9, 3
    %p152 = pnand %p150, %p151
    %p153 = pneg %p152
    // Predicated region
    $region29: #{upconv_tanh_forward.1} parent=5 // pred_check
      _
    $region30: #{upconv_tanh_forward.1} parent=5 // pred_check_branch
      %155 = sbr.rel (%p152) target = $region32
    $region31: #{upconv_tanh_forward.1} parent=5 // pred_region
      %s156 = ssub.s32 %s9, 1
      %p157 = scmp.lt.s32.totalorder %s18, 1
      %s158 = scalar_select %p157, %s18, 1
      %s159 = smul.addr %s158, 125
      %s160 = smul.addr %s159, 4
      %s161 = scalar_lea.vmem %s0, %s160
      %p162 = pneg %p47
      %p163 = pneg %p44
      %p164 = pneg %p68
      %p165 = pneg %p65
      %p166 = pneg %p89
      %p167 = pneg %p86
      %p168 = pneg %p117
      %p169 = pneg %p114
      %s170 = smul.u32 24, %s19
      %p171 = scmp.lt.s32.totalorder %s18, 1
      %s172 = scalar_select %p171, %s18, 1
      %p173 = scmp.lt.s32.totalorder %s170, 23
      %s174 = scalar_select %p173, %s170, 23
      %s175 = smul.addr %s174, 4
      %s176 = smul.addr %s172, 96
      %s177 = sadd.s32 %s175, %s176
      %s178 = smul.addr %s177, 8
      %s179 = scalar_lea.vmem %s3, %s178
      %p180 = scmp.lt.s32.totalorder %s18, 1
      %s181 = scalar_select %p180, %s18, 1
      %s182 = smul.addr %s181, 125
      %s183 = smul.addr %s182, 4
      %s184 = scalar_lea.vmem %s0, %s183
      %s185 = smul.u32 24, %s19
      %p186 = scmp.lt.s32.totalorder %s18, 1
      %s187 = scalar_select %p186, %s18, 1
      %p188 = scmp.lt.s32.totalorder %s185, 23
      %s189 = scalar_select %p188, %s185, 23
      %s190 = smul.addr %s189, 4
      %s191 = smul.addr %s187, 96
      %s192 = sadd.s32 %s190, %s191
      %s193 = smul.addr %s192, 8
      %s194 = scalar_lea.vmem %s3, %s193
      %s195 = smul.u32 24, %s19
      %s197 = smul.u32 %s19, 24
      %s198 = smul.u32 %s197, 5
      %s199 = smul.addr %s198, 4
      %s200 = scalar_lea.vmem %s184, %s199
      %v201 = vld [vmem:[%s200] sm:$0xf]
      %v202 = vld [vmem:[%s200 + $0x4] sm:$0xf]
      %v203 = vld [vmem:[%s200 + $0x8] sm:$0xf]
      %v204 = vld [vmem:[%s200 + $0xc] sm:$0xf]
      %v205 = vld [vmem:[%s200 + $0x14] sm:$0xf]
      %v206 = vld [vmem:[%s200 + $0x18] sm:$0xf]
      %v207 = vld [vmem:[%s200 + $0x1c] sm:$0xf]
      %v208 = vld [vmem:[%s200 + $0x20] sm:$0xf]
      %v209 = vld [vmem:[%s200 + $0x28] sm:$0xf]
      %v210 = vld [vmem:[%s200 + $0x2c] sm:$0xf]
      %v211 = vld [vmem:[%s200 + $0x30] sm:$0xf]
      %v212 = vld [vmem:[%s200 + $0x34] sm:$0xf]
      %v213 = vld [vmem:[%s200 + $0x3c] sm:$0xf]
      %v214 = vld [vmem:[%s200 + $0x40] sm:$0xf]
      %v215 = vld [vmem:[%s200 + $0x44] sm:$0xf]
      %v216 = vld [vmem:[%s200 + $0x48] sm:$0xf]
      %v217 = vld [vmem:[%s200 + $0x50] sm:$0xf]
      %v218 = vld [vmem:[%s200 + $0x54] sm:$0xf]
      %v219 = vld [vmem:[%s200 + $0x58] sm:$0xf]
      %v220 = vld [vmem:[%s200 + $0x5c] sm:$0xf]
      %v221 = vld [vmem:[%s200 + $0x64] sm:$0xf]
      %v222 = vld [vmem:[%s200 + $0x68] sm:$0xf]
      %v223 = vld [vmem:[%s200 + $0x6c] sm:$0xf]
      %v224 = vld [vmem:[%s200 + $0x70] sm:$0xf]
      %v225 = vld [vmem:[%s200 + $0x78] sm:$0xf]
      %v226 = vld [vmem:[%s200 + $0x7c] sm:$0xf]
      %v227 = vld [vmem:[%s200 + $0x80] sm:$0xf]
      %v228 = vld [vmem:[%s200 + $0x84] sm:$0xf]
      %v229 = vld [vmem:[%s200 + $0x8c] sm:$0xf]
      %v230 = vld [vmem:[%s200 + $0x90] sm:$0xf]
      %v231 = vld [vmem:[%s200 + $0x94] sm:$0xf]
      %v232 = vld [vmem:[%s200 + $0x98] sm:$0xf]
      %v233 = vld [vmem:[%s200 + $0xa0] sm:$0xf]
      %v234 = vld [vmem:[%s200 + $0xa4] sm:$0xf]
      %v235 = vld [vmem:[%s200 + $0xa8] sm:$0xf]
      %v236 = vld [vmem:[%s200 + $0xac] sm:$0xf]
      %v237 = vld [vmem:[%s200 + $0xb4] sm:$0xf]
      %v238 = vld [vmem:[%s200 + $0xb8] sm:$0xf]
      %v239 = vld [vmem:[%s200 + $0xbc] sm:$0xf]
      %v240 = vld [vmem:[%s200 + $0xc0] sm:$0xf]
      %v241 = vld [vmem:[%s200 + $0xc8] sm:$0xf]
      %v242 = vld [vmem:[%s200 + $0xcc] sm:$0xf]
      %v243 = vld [vmem:[%s200 + $0xd0] sm:$0xf]
      %v244 = vld [vmem:[%s200 + $0xd4] sm:$0xf]
      %v245 = vld [vmem:[%s200 + $0xdc] sm:$0xf]
      %v246 = vld [vmem:[%s200 + $0xe0] sm:$0xf]
      %v247 = vld [vmem:[%s200 + $0xe4] sm:$0xf]
      %v248 = vld [vmem:[%s200 + $0xe8] sm:$0xf]
      %v249 = vld [vmem:[%s200 + $0xf0] sm:$0xf]
      %v250 = vld [vmem:[%s200 + $0xf4] sm:$0xf]
      %v251 = vld [vmem:[%s200 + $0xf8] sm:$0xf]
      %v252 = vld [vmem:[%s200 + $0xfc] sm:$0xf]
      %v253 = vld [vmem:[%s200 + $0x104] sm:$0xf]
      %v254 = vld [vmem:[%s200 + $0x108] sm:$0xf]
      %v255 = vld [vmem:[%s200 + $0x10c] sm:$0xf]
      %v256 = vld [vmem:[%s200 + $0x110] sm:$0xf]
      %v257 = vld [vmem:[%s200 + $0x118] sm:$0xf]
      %v258 = vld [vmem:[%s200 + $0x11c] sm:$0xf]
      %v259 = vld [vmem:[%s200 + $0x120] sm:$0xf]
      %v260 = vld [vmem:[%s200 + $0x124] sm:$0xf]
      %v261 = vld [vmem:[%s200 + $0x12c] sm:$0xf]
      %v262 = vld [vmem:[%s200 + $0x130] sm:$0xf]
      %v263 = vld [vmem:[%s200 + $0x134] sm:$0xf]
      %v264 = vld [vmem:[%s200 + $0x138] sm:$0xf]
      %v265 = vld [vmem:[%s200 + $0x140] sm:$0xf]
      %v266 = vld [vmem:[%s200 + $0x144] sm:$0xf]
      %v267 = vld [vmem:[%s200 + $0x148] sm:$0xf]
      %v268 = vld [vmem:[%s200 + $0x14c] sm:$0xf]
      %v269 = vld [vmem:[%s200 + $0x154] sm:$0xf]
      %v270 = vld [vmem:[%s200 + $0x158] sm:$0xf]
      %v271 = vld [vmem:[%s200 + $0x15c] sm:$0xf]
      %v272 = vld [vmem:[%s200 + $0x160] sm:$0xf]
      %v273 = vld [vmem:[%s200 + $0x168] sm:$0xf]
      %v274 = vld [vmem:[%s200 + $0x16c] sm:$0xf]
      %v275 = vld [vmem:[%s200 + $0x170] sm:$0xf]
      %v276 = vld [vmem:[%s200 + $0x174] sm:$0xf]
      %v277 = vld [vmem:[%s200 + $0x17c] sm:$0xf]
      %v278 = vld [vmem:[%s200 + $0x180] sm:$0xf]
      %v279 = vld [vmem:[%s200 + $0x184] sm:$0xf]
      %v280 = vld [vmem:[%s200 + $0x188] sm:$0xf]
      %v281 = vld [vmem:[%s200 + $0x190] sm:$0xf]
      %v282 = vld [vmem:[%s200 + $0x194] sm:$0xf]
      %v283 = vld [vmem:[%s200 + $0x198] sm:$0xf]
      %v284 = vld [vmem:[%s200 + $0x19c] sm:$0xf]
      %v285 = vld [vmem:[%s200 + $0x1a4] sm:$0xf]
      %v286 = vld [vmem:[%s200 + $0x1a8] sm:$0xf]
      %v287 = vld [vmem:[%s200 + $0x1ac] sm:$0xf]
      %v288 = vld [vmem:[%s200 + $0x1b0] sm:$0xf]
      %v289 = vld [vmem:[%s200 + $0x1b8] sm:$0xf]
      %v290 = vld [vmem:[%s200 + $0x1bc] sm:$0xf]
      %v291 = vld [vmem:[%s200 + $0x1c0] sm:$0xf]
      %v292 = vld [vmem:[%s200 + $0x1c4] sm:$0xf]
      %v293 = vld [vmem:[%s200 + $0x1cc] sm:$0xf]
      %v294 = vld [vmem:[%s200 + $0x1d0] sm:$0xf]
      %v295 = vld [vmem:[%s200 + $0x1d4] sm:$0xf]
      %v296 = vld [vmem:[%s200 + $0x1d8] sm:$0xf]
      %v297 = vld [vmem:[%s1] sm:$0xf]
      %v298 = vld [vmem:[%s200 + $0x10] sm:$0x1]
      %v299 = vld [vmem:[%s200 + $0x24] sm:$0x1]
      %v300 = vld [vmem:[%s200 + $0x38] sm:$0x1]
      %v301 = vld [vmem:[%s200 + $0x4c] sm:$0x1]
      %v302 = vld [vmem:[%s200 + $0x60] sm:$0x1]
      %v303 = vld [vmem:[%s200 + $0x74] sm:$0x1]
      %v304 = vld [vmem:[%s200 + $0x88] sm:$0x1]
      %v305 = vld [vmem:[%s200 + $0x9c] sm:$0x1]
      %v306 = vld [vmem:[%s200 + $0xb0] sm:$0x1]
      %v307 = vld [vmem:[%s200 + $0xc4] sm:$0x1]
      %v308 = vld [vmem:[%s200 + $0xd8] sm:$0x1]
      %v309 = vld [vmem:[%s200 + $0xec] sm:$0x1]
      %v310 = vld [vmem:[%s200 + $0x100] sm:$0x1]
      %v311 = vld [vmem:[%s200 + $0x114] sm:$0x1]
      %v312 = vld [vmem:[%s200 + $0x128] sm:$0x1]
      %v313 = vld [vmem:[%s200 + $0x13c] sm:$0x1]
      %v314 = vld [vmem:[%s200 + $0x150] sm:$0x1]
      %v315 = vld [vmem:[%s200 + $0x164] sm:$0x1]
      %v316 = vld [vmem:[%s200 + $0x178] sm:$0x1]
      %v317 = vld [vmem:[%s200 + $0x18c] sm:$0x1]
      %v318 = vld [vmem:[%s200 + $0x1a0] sm:$0x1]
      %v319 = vld [vmem:[%s200 + $0x1b4] sm:$0x1]
      %v320 = vld [vmem:[%s200 + $0x1c8] sm:$0x1]
      %v321 = vld [vmem:[%s200 + $0x1dc] sm:$0x1]
      %vm322 = vsmask.f32 3328
      %vm323 = vsmask.f32 7440
      %vm324 = vmor %vm322, %vm323
      %v326 = vshrl.u32 %v201, 16
      %v328 = vrot.slane %v326, 4
      %v329 = vshll.u32 %v201, 16
      %v331 = vrot.slane %v329, 5
      %v332 = vor.u32 %v328, %v331
      %v333 = vrot.slane %v332, 4
      %v335 = vshll.u32 %v202, 16
      %v337 = vrot.slane %v335, 5
      %v338 = vsel %vm324, %v333, %v337
      %v339 = vshrl.u32 %v202, 16
      %v341 = vrot.slane %v339, 4
      %v342 = vor.u32 %v341, %v337
      %v343 = vrot.slane %v342, 4
      %v345 = vshll.u32 %v203, 16
      %v347 = vrot.slane %v345, 5
      %v348 = vsel %vm324, %v343, %v347
      %v349 = vshrl.u32 %v203, 16
      %v351 = vrot.slane %v349, 4
      %v352 = vor.u32 %v351, %v347
      %v353 = vrot.slane %v352, 4
      %v355 = vshll.u32 %v204, 16
      %v357 = vrot.slane %v355, 5
      %v358 = vsel %vm324, %v353, %v357
      %v359 = vshrl.u32 %v204, 16
      %v361 = vrot.slane %v359, 4
      %v362 = vor.u32 %v361, %v357
      %v363 = vrot.slane %v362, 4
      %v365 = vshll.u32 %v298, 16
      %v367 = vrot.slane %v365, 5
      %v368 = vsel %vm324, %v363, %v367
      %v370 = vshrl.u32 %v205, 16
      %v372 = vrot.slane %v370, 4
      %v373 = vshll.u32 %v205, 16
      %v375 = vrot.slane %v373, 5
      %v376 = vor.u32 %v372, %v375
      %v377 = vrot.slane %v376, 4
      %v379 = vshll.u32 %v206, 16
      %v381 = vrot.slane %v379, 5
      %v382 = vsel %vm324, %v377, %v381
      %v383 = vshrl.u32 %v206, 16
      %v385 = vrot.slane %v383, 4
      %v386 = vor.u32 %v385, %v381
      %v387 = vrot.slane %v386, 4
      %v389 = vshll.u32 %v207, 16
      %v391 = vrot.slane %v389, 5
      %v392 = vsel %vm324, %v387, %v391
      %v393 = vshrl.u32 %v207, 16
      %v395 = vrot.slane %v393, 4
      %v396 = vor.u32 %v395, %v391
      %v397 = vrot.slane %v396, 4
      %v399 = vshll.u32 %v208, 16
      %v401 = vrot.slane %v399, 5
      %v402 = vsel %vm324, %v397, %v401
      %v403 = vshrl.u32 %v208, 16
      %v405 = vrot.slane %v403, 4
      %v406 = vor.u32 %v405, %v401
      %v407 = vrot.slane %v406, 4
      %v409 = vshll.u32 %v299, 16
      %v411 = vrot.slane %v409, 5
      %v412 = vsel %vm324, %v407, %v411
      %v414 = vshrl.u32 %v209, 16
      %v416 = vrot.slane %v414, 4
      %v417 = vshll.u32 %v209, 16
      %v419 = vrot.slane %v417, 5
      %v420 = vor.u32 %v416, %v419
      %v421 = vrot.slane %v420, 4
      %v423 = vshll.u32 %v210, 16
      %v425 = vrot.slane %v423, 5
      %v426 = vsel %vm324, %v421, %v425
      %v427 = vshrl.u32 %v210, 16
      %v429 = vrot.slane %v427, 4
      %v430 = vor.u32 %v429, %v425
      %v431 = vrot.slane %v430, 4
      %v433 = vshll.u32 %v211, 16
      %v435 = vrot.slane %v433, 5
      %v436 = vsel %vm324, %v431, %v435
      %v437 = vshrl.u32 %v211, 16
      %v439 = vrot.slane %v437, 4
      %v440 = vor.u32 %v439, %v435
      %v441 = vrot.slane %v440, 4
      %v443 = vshll.u32 %v212, 16
      %v445 = vrot.slane %v443, 5
      %v446 = vsel %vm324, %v441, %v445
      %v447 = vshrl.u32 %v212, 16
      %v449 = vrot.slane %v447, 4
      %v450 = vor.u32 %v449, %v445
      %v451 = vrot.slane %v450, 4
      %v453 = vshll.u32 %v300, 16
      %v455 = vrot.slane %v453, 5
      %v456 = vsel %vm324, %v451, %v455
      %v458 = vshrl.u32 %v213, 16
      %v460 = vrot.slane %v458, 4
      %v461 = vshll.u32 %v213, 16
      %v463 = vrot.slane %v461, 5
      %v464 = vor.u32 %v460, %v463
      %v465 = vrot.slane %v464, 4
      %v467 = vshll.u32 %v214, 16
      %v469 = vrot.slane %v467, 5
      %v470 = vsel %vm324, %v465, %v469
      %v471 = vshrl.u32 %v214, 16
      %v473 = vrot.slane %v471, 4
      %v474 = vor.u32 %v473, %v469
      %v475 = vrot.slane %v474, 4
      %v477 = vshll.u32 %v215, 16
      %v479 = vrot.slane %v477, 5
      %v480 = vsel %vm324, %v475, %v479
      %v481 = vshrl.u32 %v215, 16
      %v483 = vrot.slane %v481, 4
      %v484 = vor.u32 %v483, %v479
      %v485 = vrot.slane %v484, 4
      %v487 = vshll.u32 %v216, 16
      %v489 = vrot.slane %v487, 5
      %v490 = vsel %vm324, %v485, %v489
      %v491 = vshrl.u32 %v216, 16
      %v493 = vrot.slane %v491, 4
      %v494 = vor.u32 %v493, %v489
      %v495 = vrot.slane %v494, 4
      %v497 = vshll.u32 %v301, 16
      %v499 = vrot.slane %v497, 5
      %v500 = vsel %vm324, %v495, %v499
      %v502 = vshrl.u32 %v217, 16
      %v504 = vrot.slane %v502, 4
      %v505 = vshll.u32 %v217, 16
      %v507 = vrot.slane %v505, 5
      %v508 = vor.u32 %v504, %v507
      %v509 = vrot.slane %v508, 4
      %v511 = vshll.u32 %v218, 16
      %v513 = vrot.slane %v511, 5
      %v514 = vsel %vm324, %v509, %v513
      %v515 = vshrl.u32 %v218, 16
      %v517 = vrot.slane %v515, 4
      %v518 = vor.u32 %v517, %v513
      %v519 = vrot.slane %v518, 4
      %v521 = vshll.u32 %v219, 16
      %v523 = vrot.slane %v521, 5
      %v524 = vsel %vm324, %v519, %v523
      %v525 = vshrl.u32 %v219, 16
      %v527 = vrot.slane %v525, 4
      %v528 = vor.u32 %v527, %v523
      %v529 = vrot.slane %v528, 4
      %v531 = vshll.u32 %v220, 16
      %v533 = vrot.slane %v531, 5
      %v534 = vsel %vm324, %v529, %v533
      %v535 = vshrl.u32 %v220, 16
      %v537 = vrot.slane %v535, 4
      %v538 = vor.u32 %v537, %v533
      %v539 = vrot.slane %v538, 4
      %v541 = vshll.u32 %v302, 16
      %v543 = vrot.slane %v541, 5
      %v544 = vsel %vm324, %v539, %v543
      %v546 = vshrl.u32 %v221, 16
      %v548 = vrot.slane %v546, 4
      %v549 = vshll.u32 %v221, 16
      %v551 = vrot.slane %v549, 5
      %v552 = vor.u32 %v548, %v551
      %v553 = vrot.slane %v552, 4
      %v555 = vshll.u32 %v222, 16
      %v557 = vrot.slane %v555, 5
      %v558 = vsel %vm324, %v553, %v557
      %v559 = vshrl.u32 %v222, 16
      %v561 = vrot.slane %v559, 4
      %v562 = vor.u32 %v561, %v557
      %v563 = vrot.slane %v562, 4
      %v565 = vshll.u32 %v223, 16
      %v567 = vrot.slane %v565, 5
      %v568 = vsel %vm324, %v563, %v567
      %v569 = vshrl.u32 %v223, 16
      %v571 = vrot.slane %v569, 4
      %v572 = vor.u32 %v571, %v567
      %v573 = vrot.slane %v572, 4
      %v575 = vshll.u32 %v224, 16
      %v577 = vrot.slane %v575, 5
      %v578 = vsel %vm324, %v573, %v577
      %v579 = vshrl.u32 %v224, 16
      %v581 = vrot.slane %v579, 4
      %v582 = vor.u32 %v581, %v577
      %v583 = vrot.slane %v582, 4
      %v585 = vshll.u32 %v303, 16
      %v587 = vrot.slane %v585, 5
      %v588 = vsel %vm324, %v583, %v587
      %v590 = vshrl.u32 %v225, 16
      %v592 = vrot.slane %v590, 4
      %v593 = vshll.u32 %v225, 16
      %v595 = vrot.slane %v593, 5
      %v596 = vor.u32 %v592, %v595
      %v597 = vrot.slane %v596, 4
      %v599 = vshll.u32 %v226, 16
      %v601 = vrot.slane %v599, 5
      %v602 = vsel %vm324, %v597, %v601
      %v603 = vshrl.u32 %v226, 16
      %v605 = vrot.slane %v603, 4
      %v606 = vor.u32 %v605, %v601
      %v607 = vrot.slane %v606, 4
      %v609 = vshll.u32 %v227, 16
      %v611 = vrot.slane %v609, 5
      %v612 = vsel %vm324, %v607, %v611
      %v613 = vshrl.u32 %v227, 16
      %v615 = vrot.slane %v613, 4
      %v616 = vor.u32 %v615, %v611
      %v617 = vrot.slane %v616, 4
      %v619 = vshll.u32 %v228, 16
      %v621 = vrot.slane %v619, 5
      %v622 = vsel %vm324, %v617, %v621
      %v623 = vshrl.u32 %v228, 16
      %v625 = vrot.slane %v623, 4
      %v626 = vor.u32 %v625, %v621
      %v627 = vrot.slane %v626, 4
      %v629 = vshll.u32 %v304, 16
      %v631 = vrot.slane %v629, 5
      %v632 = vsel %vm324, %v627, %v631
      %v634 = vshrl.u32 %v229, 16
      %v636 = vrot.slane %v634, 4
      %v637 = vshll.u32 %v229, 16
      %v639 = vrot.slane %v637, 5
      %v640 = vor.u32 %v636, %v639
      %v641 = vrot.slane %v640, 4
      %v643 = vshll.u32 %v230, 16
      %v645 = vrot.slane %v643, 5
      %v646 = vsel %vm324, %v641, %v645
      %v647 = vshrl.u32 %v230, 16
      %v649 = vrot.slane %v647, 4
      %v650 = vor.u32 %v649, %v645
      %v651 = vrot.slane %v650, 4
      %v653 = vshll.u32 %v231, 16
      %v655 = vrot.slane %v653, 5
      %v656 = vsel %vm324, %v651, %v655
      %v657 = vshrl.u32 %v231, 16
      %v659 = vrot.slane %v657, 4
      %v660 = vor.u32 %v659, %v655
      %v661 = vrot.slane %v660, 4
      %v663 = vshll.u32 %v232, 16
      %v665 = vrot.slane %v663, 5
      %v666 = vsel %vm324, %v661, %v665
      %v667 = vshrl.u32 %v232, 16
      %v669 = vrot.slane %v667, 4
      %v670 = vor.u32 %v669, %v665
      %v671 = vrot.slane %v670, 4
      %v673 = vshll.u32 %v305, 16
      %v675 = vrot.slane %v673, 5
      %v676 = vsel %vm324, %v671, %v675
      %v678 = vshrl.u32 %v233, 16
      %v680 = vrot.slane %v678, 4
      %v681 = vshll.u32 %v233, 16
      %v683 = vrot.slane %v681, 5
      %v684 = vor.u32 %v680, %v683
      %v685 = vrot.slane %v684, 4
      %v687 = vshll.u32 %v234, 16
      %v689 = vrot.slane %v687, 5
      %v690 = vsel %vm324, %v685, %v689
      %v691 = vshrl.u32 %v234, 16
      %v693 = vrot.slane %v691, 4
      %v694 = vor.u32 %v693, %v689
      %v695 = vrot.slane %v694, 4
      %v697 = vshll.u32 %v235, 16
      %v699 = vrot.slane %v697, 5
      %v700 = vsel %vm324, %v695, %v699
      %v701 = vshrl.u32 %v235, 16
      %v703 = vrot.slane %v701, 4
      %v704 = vor.u32 %v703, %v699
      %v705 = vrot.slane %v704, 4
      %v707 = vshll.u32 %v236, 16
      %v709 = vrot.slane %v707, 5
      %v710 = vsel %vm324, %v705, %v709
      %v711 = vshrl.u32 %v236, 16
      %v713 = vrot.slane %v711, 4
      %v714 = vor.u32 %v713, %v709
      %v715 = vrot.slane %v714, 4
      %v717 = vshll.u32 %v306, 16
      %v719 = vrot.slane %v717, 5
      %v720 = vsel %vm324, %v715, %v719
      %v722 = vshrl.u32 %v237, 16
      %v724 = vrot.slane %v722, 4
      %v725 = vshll.u32 %v237, 16
      %v727 = vrot.slane %v725, 5
      %v728 = vor.u32 %v724, %v727
      %v729 = vrot.slane %v728, 4
      %v731 = vshll.u32 %v238, 16
      %v733 = vrot.slane %v731, 5
      %v734 = vsel %vm324, %v729, %v733
      %v735 = vshrl.u32 %v238, 16
      %v737 = vrot.slane %v735, 4
      %v738 = vor.u32 %v737, %v733
      %v739 = vrot.slane %v738, 4
      %v741 = vshll.u32 %v239, 16
      %v743 = vrot.slane %v741, 5
      %v744 = vsel %vm324, %v739, %v743
      %v745 = vshrl.u32 %v239, 16
      %v747 = vrot.slane %v745, 4
      %v748 = vor.u32 %v747, %v743
      %v749 = vrot.slane %v748, 4
      %v751 = vshll.u32 %v240, 16
      %v753 = vrot.slane %v751, 5
      %v754 = vsel %vm324, %v749, %v753
      %v755 = vshrl.u32 %v240, 16
      %v757 = vrot.slane %v755, 4
      %v758 = vor.u32 %v757, %v753
      %v759 = vrot.slane %v758, 4
      %v761 = vshll.u32 %v307, 16
      %v763 = vrot.slane %v761, 5
      %v764 = vsel %vm324, %v759, %v763
      %v766 = vshrl.u32 %v241, 16
      %v768 = vrot.slane %v766, 4
      %v769 = vshll.u32 %v241, 16
      %v771 = vrot.slane %v769, 5
      %v772 = vor.u32 %v768, %v771
      %v773 = vrot.slane %v772, 4
      %v775 = vshll.u32 %v242, 16
      %v777 = vrot.slane %v775, 5
      %v778 = vsel %vm324, %v773, %v777
      %v779 = vshrl.u32 %v242, 16
      %v781 = vrot.slane %v779, 4
      %v782 = vor.u32 %v781, %v777
      %v783 = vrot.slane %v782, 4
      %v785 = vshll.u32 %v243, 16
      %v787 = vrot.slane %v785, 5
      %v788 = vsel %vm324, %v783, %v787
      %v789 = vshrl.u32 %v243, 16
      %v791 = vrot.slane %v789, 4
      %v792 = vor.u32 %v791, %v787
      %v793 = vrot.slane %v792, 4
      %v795 = vshll.u32 %v244, 16
      %v797 = vrot.slane %v795, 5
      %v798 = vsel %vm324, %v793, %v797
      %v799 = vshrl.u32 %v244, 16
      %v801 = vrot.slane %v799, 4
      %v802 = vor.u32 %v801, %v797
      %v803 = vrot.slane %v802, 4
      %v805 = vshll.u32 %v308, 16
      %v807 = vrot.slane %v805, 5
      %v808 = vsel %vm324, %v803, %v807
      %v810 = vshrl.u32 %v245, 16
      %v812 = vrot.slane %v810, 4
      %v813 = vshll.u32 %v245, 16
      %v815 = vrot.slane %v813, 5
      %v816 = vor.u32 %v812, %v815
      %v817 = vrot.slane %v816, 4
      %v819 = vshll.u32 %v246, 16
      %v821 = vrot.slane %v819, 5
      %v822 = vsel %vm324, %v817, %v821
      %v823 = vshrl.u32 %v246, 16
      %v825 = vrot.slane %v823, 4
      %v826 = vor.u32 %v825, %v821
      %v827 = vrot.slane %v826, 4
      %v829 = vshll.u32 %v247, 16
      %v831 = vrot.slane %v829, 5
      %v832 = vsel %vm324, %v827, %v831
      %v833 = vshrl.u32 %v247, 16
      %v835 = vrot.slane %v833, 4
      %v836 = vor.u32 %v835, %v831
      %v837 = vrot.slane %v836, 4
      %v839 = vshll.u32 %v248, 16
      %v841 = vrot.slane %v839, 5
      %v842 = vsel %vm324, %v837, %v841
      %v843 = vshrl.u32 %v248, 16
      %v845 = vrot.slane %v843, 4
      %v846 = vor.u32 %v845, %v841
      %v847 = vrot.slane %v846, 4
      %v849 = vshll.u32 %v309, 16
      %v851 = vrot.slane %v849, 5
      %v852 = vsel %vm324, %v847, %v851
      %v854 = vshrl.u32 %v249, 16
      %v856 = vrot.slane %v854, 4
      %v857 = vshll.u32 %v249, 16
      %v859 = vrot.slane %v857, 5
      %v860 = vor.u32 %v856, %v859
      %v861 = vrot.slane %v860, 4
      %v863 = vshll.u32 %v250, 16
      %v865 = vrot.slane %v863, 5
      %v866 = vsel %vm324, %v861, %v865
      %v867 = vshrl.u32 %v250, 16
      %v869 = vrot.slane %v867, 4
      %v870 = vor.u32 %v869, %v865
      %v871 = vrot.slane %v870, 4
      %v873 = vshll.u32 %v251, 16
      %v875 = vrot.slane %v873, 5
      %v876 = vsel %vm324, %v871, %v875
      %v877 = vshrl.u32 %v251, 16
      %v879 = vrot.slane %v877, 4
      %v880 = vor.u32 %v879, %v875
      %v881 = vrot.slane %v880, 4
      %v883 = vshll.u32 %v252, 16
      %v885 = vrot.slane %v883, 5
      %v886 = vsel %vm324, %v881, %v885
      %v887 = vshrl.u32 %v252, 16
      %v889 = vrot.slane %v887, 4
      %v890 = vor.u32 %v889, %v885
      %v891 = vrot.slane %v890, 4
      %v893 = vshll.u32 %v310, 16
      %v895 = vrot.slane %v893, 5
      %v896 = vsel %vm324, %v891, %v895
      %v898 = vshrl.u32 %v253, 16
      %v900 = vrot.slane %v898, 4
      %v901 = vshll.u32 %v253, 16
      %v903 = vrot.slane %v901, 5
      %v904 = vor.u32 %v900, %v903
      %v905 = vrot.slane %v904, 4
      %v907 = vshll.u32 %v254, 16
      %v909 = vrot.slane %v907, 5
      %v910 = vsel %vm324, %v905, %v909
      %v911 = vshrl.u32 %v254, 16
      %v913 = vrot.slane %v911, 4
      %v914 = vor.u32 %v913, %v909
      %v915 = vrot.slane %v914, 4
      %v917 = vshll.u32 %v255, 16
      %v919 = vrot.slane %v917, 5
      %v920 = vsel %vm324, %v915, %v919
      %v921 = vshrl.u32 %v255, 16
      %v923 = vrot.slane %v921, 4
      %v924 = vor.u32 %v923, %v919
      %v925 = vrot.slane %v924, 4
      %v927 = vshll.u32 %v256, 16
      %v929 = vrot.slane %v927, 5
      %v930 = vsel %vm324, %v925, %v929
      %v931 = vshrl.u32 %v256, 16
      %v933 = vrot.slane %v931, 4
      %v934 = vor.u32 %v933, %v929
      %v935 = vrot.slane %v934, 4
      %v937 = vshll.u32 %v311, 16
      %v939 = vrot.slane %v937, 5
      %v940 = vsel %vm324, %v935, %v939
      %v942 = vshrl.u32 %v257, 16
      %v944 = vrot.slane %v942, 4
      %v945 = vshll.u32 %v257, 16
      %v947 = vrot.slane %v945, 5
      %v948 = vor.u32 %v944, %v947
      %v949 = vrot.slane %v948, 4
      %v951 = vshll.u32 %v258, 16
      %v953 = vrot.slane %v951, 5
      %v954 = vsel %vm324, %v949, %v953
      %v955 = vshrl.u32 %v258, 16
      %v957 = vrot.slane %v955, 4
      %v958 = vor.u32 %v957, %v953
      %v959 = vrot.slane %v958, 4
      %v961 = vshll.u32 %v259, 16
      %v963 = vrot.slane %v961, 5
      %v964 = vsel %vm324, %v959, %v963
      %v965 = vshrl.u32 %v259, 16
      %v967 = vrot.slane %v965, 4
      %v968 = vor.u32 %v967, %v963
      %v969 = vrot.slane %v968, 4
      %v971 = vshll.u32 %v260, 16
      %v973 = vrot.slane %v971, 5
      %v974 = vsel %vm324, %v969, %v973
      %v975 = vshrl.u32 %v260, 16
      %v977 = vrot.slane %v975, 4
      %v978 = vor.u32 %v977, %v973
      %v979 = vrot.slane %v978, 4
      %v981 = vshll.u32 %v312, 16
      %v983 = vrot.slane %v981, 5
      %v984 = vsel %vm324, %v979, %v983
      %v986 = vshrl.u32 %v261, 16
      %v988 = vrot.slane %v986, 4
      %v989 = vshll.u32 %v261, 16
      %v991 = vrot.slane %v989, 5
      %v992 = vor.u32 %v988, %v991
      %v993 = vrot.slane %v992, 4
      %v995 = vshll.u32 %v262, 16
      %v997 = vrot.slane %v995, 5
      %v998 = vsel %vm324, %v993, %v997
      %v999 = vshrl.u32 %v262, 16
      %v1001 = vrot.slane %v999, 4
      %v1002 = vor.u32 %v1001, %v997
      %v1003 = vrot.slane %v1002, 4
      %v1005 = vshll.u32 %v263, 16
      %v1007 = vrot.slane %v1005, 5
      %v1008 = vsel %vm324, %v1003, %v1007
      %v1009 = vshrl.u32 %v263, 16
      %v1011 = vrot.slane %v1009, 4
      %v1012 = vor.u32 %v1011, %v1007
      %v1013 = vrot.slane %v1012, 4
      %v1015 = vshll.u32 %v264, 16
      %v1017 = vrot.slane %v1015, 5
      %v1018 = vsel %vm324, %v1013, %v1017
      %v1019 = vshrl.u32 %v264, 16
      %v1021 = vrot.slane %v1019, 4
      %v1022 = vor.u32 %v1021, %v1017
      %v1023 = vrot.slane %v1022, 4
      %v1025 = vshll.u32 %v313, 16
      %v1027 = vrot.slane %v1025, 5
      %v1028 = vsel %vm324, %v1023, %v1027
      %v1030 = vshrl.u32 %v265, 16
      %v1032 = vrot.slane %v1030, 4
      %v1033 = vshll.u32 %v265, 16
      %v1035 = vrot.slane %v1033, 5
      %v1036 = vor.u32 %v1032, %v1035
      %v1037 = vrot.slane %v1036, 4
      %v1039 = vshll.u32 %v266, 16
      %v1041 = vrot.slane %v1039, 5
      %v1042 = vsel %vm324, %v1037, %v1041
      %v1043 = vshrl.u32 %v266, 16
      %v1045 = vrot.slane %v1043, 4
      %v1046 = vor.u32 %v1045, %v1041
      %v1047 = vrot.slane %v1046, 4
      %v1049 = vshll.u32 %v267, 16
      %v1051 = vrot.slane %v1049, 5
      %v1052 = vsel %vm324, %v1047, %v1051
      %v1053 = vshrl.u32 %v267, 16
      %v1055 = vrot.slane %v1053, 4
      %v1056 = vor.u32 %v1055, %v1051
      %v1057 = vrot.slane %v1056, 4
      %v1059 = vshll.u32 %v268, 16
      %v1061 = vrot.slane %v1059, 5
      %v1062 = vsel %vm324, %v1057, %v1061
      %v1063 = vshrl.u32 %v268, 16
      %v1065 = vrot.slane %v1063, 4
      %v1066 = vor.u32 %v1065, %v1061
      %v1067 = vrot.slane %v1066, 4
      %v1069 = vshll.u32 %v314, 16
      %v1071 = vrot.slane %v1069, 5
      %v1072 = vsel %vm324, %v1067, %v1071
      %v1074 = vshrl.u32 %v269, 16
      %v1076 = vrot.slane %v1074, 4
      %v1077 = vshll.u32 %v269, 16
      %v1079 = vrot.slane %v1077, 5
      %v1080 = vor.u32 %v1076, %v1079
      %v1081 = vrot.slane %v1080, 4
      %v1083 = vshll.u32 %v270, 16
      %v1085 = vrot.slane %v1083, 5
      %v1086 = vsel %vm324, %v1081, %v1085
      %v1087 = vshrl.u32 %v270, 16
      %v1089 = vrot.slane %v1087, 4
      %v1090 = vor.u32 %v1089, %v1085
      %v1091 = vrot.slane %v1090, 4
      %v1093 = vshll.u32 %v271, 16
      %v1095 = vrot.slane %v1093, 5
      %v1096 = vsel %vm324, %v1091, %v1095
      %v1097 = vshrl.u32 %v271, 16
      %v1099 = vrot.slane %v1097, 4
      %v1100 = vor.u32 %v1099, %v1095
      %v1101 = vrot.slane %v1100, 4
      %v1103 = vshll.u32 %v272, 16
      %v1105 = vrot.slane %v1103, 5
      %v1106 = vsel %vm324, %v1101, %v1105
      %v1107 = vshrl.u32 %v272, 16
      %v1109 = vrot.slane %v1107, 4
      %v1110 = vor.u32 %v1109, %v1105
      %v1111 = vrot.slane %v1110, 4
      %v1113 = vshll.u32 %v315, 16
      %v1115 = vrot.slane %v1113, 5
      %v1116 = vsel %vm324, %v1111, %v1115
      %v1118 = vshrl.u32 %v273, 16
      %v1120 = vrot.slane %v1118, 4
      %v1121 = vshll.u32 %v273, 16
      %v1123 = vrot.slane %v1121, 5
      %v1124 = vor.u32 %v1120, %v1123
      %v1125 = vrot.slane %v1124, 4
      %v1127 = vshll.u32 %v274, 16
      %v1129 = vrot.slane %v1127, 5
      %v1130 = vsel %vm324, %v1125, %v1129
      %v1131 = vshrl.u32 %v274, 16
      %v1133 = vrot.slane %v1131, 4
      %v1134 = vor.u32 %v1133, %v1129
      %v1135 = vrot.slane %v1134, 4
      %v1137 = vshll.u32 %v275, 16
      %v1139 = vrot.slane %v1137, 5
      %v1140 = vsel %vm324, %v1135, %v1139
      %v1141 = vshrl.u32 %v275, 16
      %v1143 = vrot.slane %v1141, 4
      %v1144 = vor.u32 %v1143, %v1139
      %v1145 = vrot.slane %v1144, 4
      %v1147 = vshll.u32 %v276, 16
      %v1149 = vrot.slane %v1147, 5
      %v1150 = vsel %vm324, %v1145, %v1149
      %v1151 = vshrl.u32 %v276, 16
      %v1153 = vrot.slane %v1151, 4
      %v1154 = vor.u32 %v1153, %v1149
      %v1155 = vrot.slane %v1154, 4
      %v1157 = vshll.u32 %v316, 16
      %v1159 = vrot.slane %v1157, 5
      %v1160 = vsel %vm324, %v1155, %v1159
      %v1162 = vshrl.u32 %v277, 16
      %v1164 = vrot.slane %v1162, 4
      %v1165 = vshll.u32 %v277, 16
      %v1167 = vrot.slane %v1165, 5
      %v1168 = vor.u32 %v1164, %v1167
      %v1169 = vrot.slane %v1168, 4
      %v1171 = vshll.u32 %v278, 16
      %v1173 = vrot.slane %v1171, 5
      %v1174 = vsel %vm324, %v1169, %v1173
      %v1175 = vshrl.u32 %v278, 16
      %v1177 = vrot.slane %v1175, 4
      %v1178 = vor.u32 %v1177, %v1173
      %v1179 = vrot.slane %v1178, 4
      %v1181 = vshll.u32 %v279, 16
      %v1183 = vrot.slane %v1181, 5
      %v1184 = vsel %vm324, %v1179, %v1183
      %v1185 = vshrl.u32 %v279, 16
      %v1187 = vrot.slane %v1185, 4
      %v1188 = vor.u32 %v1187, %v1183
      %v1189 = vrot.slane %v1188, 4
      %v1191 = vshll.u32 %v280, 16
      %v1193 = vrot.slane %v1191, 5
      %v1194 = vsel %vm324, %v1189, %v1193
      %v1195 = vshrl.u32 %v280, 16
      %v1197 = vrot.slane %v1195, 4
      %v1198 = vor.u32 %v1197, %v1193
      %v1199 = vrot.slane %v1198, 4
      %v1201 = vshll.u32 %v317, 16
      %v1203 = vrot.slane %v1201, 5
      %v1204 = vsel %vm324, %v1199, %v1203
      %v1206 = vshrl.u32 %v281, 16
      %v1208 = vrot.slane %v1206, 4
      %v1209 = vshll.u32 %v281, 16
      %v1211 = vrot.slane %v1209, 5
      %v1212 = vor.u32 %v1208, %v1211
      %v1213 = vrot.slane %v1212, 4
      %v1215 = vshll.u32 %v282, 16
      %v1217 = vrot.slane %v1215, 5
      %v1218 = vsel %vm324, %v1213, %v1217
      %v1219 = vshrl.u32 %v282, 16
      %v1221 = vrot.slane %v1219, 4
      %v1222 = vor.u32 %v1221, %v1217
      %v1223 = vrot.slane %v1222, 4
      %v1225 = vshll.u32 %v283, 16
      %v1227 = vrot.slane %v1225, 5
      %v1228 = vsel %vm324, %v1223, %v1227
      %v1229 = vshrl.u32 %v283, 16
      %v1231 = vrot.slane %v1229, 4
      %v1232 = vor.u32 %v1231, %v1227
      %v1233 = vrot.slane %v1232, 4
      %v1235 = vshll.u32 %v284, 16
      %v1237 = vrot.slane %v1235, 5
      %v1238 = vsel %vm324, %v1233, %v1237
      %v1239 = vshrl.u32 %v284, 16
      %v1241 = vrot.slane %v1239, 4
      %v1242 = vor.u32 %v1241, %v1237
      %v1243 = vrot.slane %v1242, 4
      %v1245 = vshll.u32 %v318, 16
      %v1247 = vrot.slane %v1245, 5
      %v1248 = vsel %vm324, %v1243, %v1247
      %v1250 = vshrl.u32 %v285, 16
      %v1252 = vrot.slane %v1250, 4
      %v1253 = vshll.u32 %v285, 16
      %v1255 = vrot.slane %v1253, 5
      %v1256 = vor.u32 %v1252, %v1255
      %v1257 = vrot.slane %v1256, 4
      %v1259 = vshll.u32 %v286, 16
      %v1261 = vrot.slane %v1259, 5
      %v1262 = vsel %vm324, %v1257, %v1261
      %v1263 = vshrl.u32 %v286, 16
      %v1265 = vrot.slane %v1263, 4
      %v1266 = vor.u32 %v1265, %v1261
      %v1267 = vrot.slane %v1266, 4
      %v1269 = vshll.u32 %v287, 16
      %v1271 = vrot.slane %v1269, 5
      %v1272 = vsel %vm324, %v1267, %v1271
      %v1273 = vshrl.u32 %v287, 16
      %v1275 = vrot.slane %v1273, 4
      %v1276 = vor.u32 %v1275, %v1271
      %v1277 = vrot.slane %v1276, 4
      %v1279 = vshll.u32 %v288, 16
      %v1281 = vrot.slane %v1279, 5
      %v1282 = vsel %vm324, %v1277, %v1281
      %v1283 = vshrl.u32 %v288, 16
      %v1285 = vrot.slane %v1283, 4
      %v1286 = vor.u32 %v1285, %v1281
      %v1287 = vrot.slane %v1286, 4
      %v1289 = vshll.u32 %v319, 16
      %v1291 = vrot.slane %v1289, 5
      %v1292 = vsel %vm324, %v1287, %v1291
      %v1294 = vshrl.u32 %v289, 16
      %v1296 = vrot.slane %v1294, 4
      %v1297 = vshll.u32 %v289, 16
      %v1299 = vrot.slane %v1297, 5
      %v1300 = vor.u32 %v1296, %v1299
      %v1301 = vrot.slane %v1300, 4
      %v1303 = vshll.u32 %v290, 16
      %v1305 = vrot.slane %v1303, 5
      %v1306 = vsel %vm324, %v1301, %v1305
      %v1307 = vshrl.u32 %v290, 16
      %v1309 = vrot.slane %v1307, 4
      %v1310 = vor.u32 %v1309, %v1305
      %v1311 = vrot.slane %v1310, 4
      %v1313 = vshll.u32 %v291, 16
      %v1315 = vrot.slane %v1313, 5
      %v1316 = vsel %vm324, %v1311, %v1315
      %v1317 = vshrl.u32 %v291, 16
      %v1319 = vrot.slane %v1317, 4
      %v1320 = vor.u32 %v1319, %v1315
      %v1321 = vrot.slane %v1320, 4
      %v1323 = vshll.u32 %v292, 16
      %v1325 = vrot.slane %v1323, 5
      %v1326 = vsel %vm324, %v1321, %v1325
      %v1327 = vshrl.u32 %v292, 16
      %v1329 = vrot.slane %v1327, 4
      %v1330 = vor.u32 %v1329, %v1325
      %v1331 = vrot.slane %v1330, 4
      %v1333 = vshll.u32 %v320, 16
      %v1335 = vrot.slane %v1333, 5
      %v1336 = vsel %vm324, %v1331, %v1335
      %v1338 = vshrl.u32 %v293, 16
      %v1340 = vrot.slane %v1338, 4
      %v1341 = vshll.u32 %v293, 16
      %v1343 = vrot.slane %v1341, 5
      %v1344 = vor.u32 %v1340, %v1343
      %v1345 = vrot.slane %v1344, 4
      %v1347 = vshll.u32 %v294, 16
      %v1349 = vrot.slane %v1347, 5
      %v1350 = vsel %vm324, %v1345, %v1349
      %v1351 = vshrl.u32 %v294, 16
      %v1353 = vrot.slane %v1351, 4
      %v1354 = vor.u32 %v1353, %v1349
      %v1355 = vrot.slane %v1354, 4
      %v1357 = vshll.u32 %v295, 16
      %v1359 = vrot.slane %v1357, 5
      %v1360 = vsel %vm324, %v1355, %v1359
      %v1361 = vshrl.u32 %v295, 16
      %v1363 = vrot.slane %v1361, 4
      %v1364 = vor.u32 %v1363, %v1359
      %v1365 = vrot.slane %v1364, 4
      %v1367 = vshll.u32 %v296, 16
      %v1369 = vrot.slane %v1367, 5
      %v1370 = vsel %vm324, %v1365, %v1369
      %v1371 = vshrl.u32 %v296, 16
      %v1373 = vrot.slane %v1371, 4
      %v1374 = vor.u32 %v1373, %v1369
      %v1375 = vrot.slane %v1374, 4
      %v1377 = vshll.u32 %v321, 16
      %v1379 = vrot.slane %v1377, 5
      %v1380 = vsel %vm324, %v1375, %v1379
      %s1381 = scalar_lea.vmem %s1, 4
      %v1382 = vld [vmem:[%s1381] sm:$0xf]
      %v1383 = vunpack.c.l.b16 %v338
      %v1384 = vunpack.c.l.b16 %v348
      %v1385 = vunpack.c.l.b16 %v358
      %v1386 = vunpack.c.l.b16 %v368
      %v1387 = vunpack.c.l.b16 %v382
      %v1388 = vunpack.c.l.b16 %v392
      %v1389 = vunpack.c.l.b16 %v402
      %v1390 = vunpack.c.l.b16 %v412
      %v1391 = vunpack.c.l.b16 %v426
      %v1392 = vunpack.c.l.b16 %v436
      %v1393 = vunpack.c.l.b16 %v446
      %v1394 = vunpack.c.l.b16 %v456
      %v1395 = vunpack.c.l.b16 %v470
      %v1396 = vunpack.c.l.b16 %v480
      %v1397 = vunpack.c.l.b16 %v490
      %v1398 = vunpack.c.l.b16 %v500
      %v1399 = vunpack.c.l.b16 %v514
      %v1400 = vunpack.c.l.b16 %v524
      %v1401 = vunpack.c.l.b16 %v534
      %v1402 = vunpack.c.l.b16 %v544
      %v1403 = vunpack.c.l.b16 %v558
      %v1404 = vunpack.c.l.b16 %v568
      %v1405 = vunpack.c.l.b16 %v578
      %v1406 = vunpack.c.l.b16 %v588
      %v1407 = vunpack.c.l.b16 %v602
      %v1408 = vunpack.c.l.b16 %v612
      %v1409 = vunpack.c.l.b16 %v622
      %v1410 = vunpack.c.l.b16 %v632
      %v1411 = vunpack.c.l.b16 %v646
      %v1412 = vunpack.c.l.b16 %v656
      %v1413 = vunpack.c.l.b16 %v666
      %v1414 = vunpack.c.l.b16 %v676
      %v1415 = vunpack.c.l.b16 %v690
      %v1416 = vunpack.c.l.b16 %v700
      %v1417 = vunpack.c.l.b16 %v710
      %v1418 = vunpack.c.l.b16 %v720
      %v1419 = vunpack.c.l.b16 %v734
      %v1420 = vunpack.c.l.b16 %v744
      %v1421 = vunpack.c.l.b16 %v754
      %v1422 = vunpack.c.l.b16 %v764
      %v1423 = vunpack.c.l.b16 %v778
      %v1424 = vunpack.c.l.b16 %v788
      %v1425 = vunpack.c.l.b16 %v798
      %v1426 = vunpack.c.l.b16 %v808
      %v1427 = vunpack.c.l.b16 %v822
      %v1428 = vunpack.c.l.b16 %v832
      %v1429 = vunpack.c.l.b16 %v842
      %v1430 = vunpack.c.l.b16 %v852
      %v1431 = vunpack.c.l.b16 %v866
      %v1432 = vunpack.c.l.b16 %v876
      %v1433 = vunpack.c.l.b16 %v886
      %v1434 = vunpack.c.l.b16 %v896
      %v1435 = vunpack.c.l.b16 %v910
      %v1436 = vunpack.c.l.b16 %v920
      %v1437 = vunpack.c.l.b16 %v930
      %v1438 = vunpack.c.l.b16 %v940
      %v1439 = vunpack.c.l.b16 %v954
      %v1440 = vunpack.c.l.b16 %v964
      %v1441 = vunpack.c.l.b16 %v974
      %v1442 = vunpack.c.l.b16 %v984
      %v1443 = vunpack.c.l.b16 %v998
      %v1444 = vunpack.c.l.b16 %v1008
      %v1445 = vunpack.c.l.b16 %v1018
      %v1446 = vunpack.c.l.b16 %v1028
      %v1447 = vunpack.c.l.b16 %v1042
      %v1448 = vunpack.c.l.b16 %v1052
      %v1449 = vunpack.c.l.b16 %v1062
      %v1450 = vunpack.c.l.b16 %v1072
      %v1451 = vunpack.c.l.b16 %v1086
      %v1452 = vunpack.c.l.b16 %v1096
      %v1453 = vunpack.c.l.b16 %v1106
      %v1454 = vunpack.c.l.b16 %v1116
      %v1455 = vunpack.c.l.b16 %v1130
      %v1456 = vunpack.c.l.b16 %v1140
      %v1457 = vunpack.c.l.b16 %v1150
      %v1458 = vunpack.c.l.b16 %v1160
      %v1459 = vunpack.c.l.b16 %v1174
      %v1460 = vunpack.c.l.b16 %v1184
      %v1461 = vunpack.c.l.b16 %v1194
      %v1462 = vunpack.c.l.b16 %v1204
      %v1463 = vunpack.c.l.b16 %v1218
      %v1464 = vunpack.c.l.b16 %v1228
      %v1465 = vunpack.c.l.b16 %v1238
      %v1466 = vunpack.c.l.b16 %v1248
      %v1467 = vunpack.c.l.b16 %v1262
      %v1468 = vunpack.c.l.b16 %v1272
      %v1469 = vunpack.c.l.b16 %v1282
      %v1470 = vunpack.c.l.b16 %v1292
      %v1471 = vunpack.c.l.b16 %v1306
      %v1472 = vunpack.c.l.b16 %v1316
      %v1473 = vunpack.c.l.b16 %v1326
      %v1474 = vunpack.c.l.b16 %v1336
      %v1475 = vunpack.c.l.b16 %v1350
      %v1476 = vunpack.c.l.b16 %v1360
      %v1477 = vunpack.c.l.b16 %v1370
      %v1478 = vunpack.c.l.b16 %v1380
      %v1479 = vpack.c.b16 %v1384, %v1383
      %v1480 = vpack.c.b16 %v1386, %v1385
      %v1481 = vpack.c.b16 %v1388, %v1387
      %v1482 = vpack.c.b16 %v1390, %v1389
      %v1483 = vpack.c.b16 %v1392, %v1391
      %v1484 = vpack.c.b16 %v1394, %v1393
      %v1485 = vpack.c.b16 %v1396, %v1395
      %v1486 = vpack.c.b16 %v1398, %v1397
      %v1487 = vpack.c.b16 %v1400, %v1399
      %v1488 = vpack.c.b16 %v1402, %v1401
      %v1489 = vpack.c.b16 %v1404, %v1403
      %v1490 = vpack.c.b16 %v1406, %v1405
      %v1491 = vpack.c.b16 %v1408, %v1407
      %v1492 = vpack.c.b16 %v1410, %v1409
      %v1493 = vpack.c.b16 %v1412, %v1411
      %v1494 = vpack.c.b16 %v1414, %v1413
      %v1495 = vpack.c.b16 %v1416, %v1415
      %v1496 = vpack.c.b16 %v1418, %v1417
      %v1497 = vpack.c.b16 %v1420, %v1419
      %v1498 = vpack.c.b16 %v1422, %v1421
      %v1499 = vpack.c.b16 %v1424, %v1423
      %v1500 = vpack.c.b16 %v1426, %v1425
      %v1501 = vpack.c.b16 %v1428, %v1427
      %v1502 = vpack.c.b16 %v1430, %v1429
      %v1503 = vpack.c.b16 %v1432, %v1431
      %v1504 = vpack.c.b16 %v1434, %v1433
      %v1505 = vpack.c.b16 %v1436, %v1435
      %v1506 = vpack.c.b16 %v1438, %v1437
      %v1507 = vpack.c.b16 %v1440, %v1439
      %v1508 = vpack.c.b16 %v1442, %v1441
      %v1509 = vpack.c.b16 %v1444, %v1443
      %v1510 = vpack.c.b16 %v1446, %v1445
      %v1511 = vpack.c.b16 %v1448, %v1447
      %v1512 = vpack.c.b16 %v1450, %v1449
      %v1513 = vpack.c.b16 %v1452, %v1451
      %v1514 = vpack.c.b16 %v1454, %v1453
      %v1515 = vpack.c.b16 %v1456, %v1455
      %v1516 = vpack.c.b16 %v1458, %v1457
      %v1517 = vpack.c.b16 %v1460, %v1459
      %v1518 = vpack.c.b16 %v1462, %v1461
      %v1519 = vpack.c.b16 %v1464, %v1463
      %v1520 = vpack.c.b16 %v1466, %v1465
      %v1521 = vpack.c.b16 %v1468, %v1467
      %v1522 = vpack.c.b16 %v1470, %v1469
      %v1523 = vpack.c.b16 %v1472, %v1471
      %v1524 = vpack.c.b16 %v1474, %v1473
      %v1525 = vpack.c.b16 %v1476, %v1475
      %v1526 = vpack.c.b16 %v1478, %v1477
      %vm1527 = vcmask 64512
      %v1529 = vsel %vm1527, %v1479, 0
      %v1532 = vsel %vm1527, %v1480, 0
      %v1535 = vsel %vm1527, %v1481, 0
      %v1538 = vsel %vm1527, %v1482, 0
      %v1541 = vsel %vm1527, %v1483, 0
      %v1544 = vsel %vm1527, %v1484, 0
      %v1547 = vsel %vm1527, %v1485, 0
      %v1550 = vsel %vm1527, %v1486, 0
      %v1553 = vsel %vm1527, %v1487, 0
      %v1556 = vsel %vm1527, %v1488, 0
      %v1559 = vsel %vm1527, %v1489, 0
      %v1562 = vsel %vm1527, %v1490, 0
      %v1565 = vsel %vm1527, %v1491, 0
      %v1568 = vsel %vm1527, %v1492, 0
      %v1571 = vsel %vm1527, %v1493, 0
      %v1574 = vsel %vm1527, %v1494, 0
      %v1577 = vsel %vm1527, %v1495, 0
      %v1580 = vsel %vm1527, %v1496, 0
      %v1583 = vsel %vm1527, %v1497, 0
      %v1586 = vsel %vm1527, %v1498, 0
      %v1589 = vsel %vm1527, %v1499, 0
      %v1592 = vsel %vm1527, %v1500, 0
      %v1595 = vsel %vm1527, %v1501, 0
      %v1598 = vsel %vm1527, %v1502, 0
      %v1601 = vsel %vm1527, %v1503, 0
      %v1604 = vsel %vm1527, %v1504, 0
      %v1607 = vsel %vm1527, %v1505, 0
      %v1610 = vsel %vm1527, %v1506, 0
      %v1613 = vsel %vm1527, %v1507, 0
      %v1616 = vsel %vm1527, %v1508, 0
      %v1619 = vsel %vm1527, %v1509, 0
      %v1622 = vsel %vm1527, %v1510, 0
      %v1625 = vsel %vm1527, %v1511, 0
      %v1628 = vsel %vm1527, %v1512, 0
      %v1631 = vsel %vm1527, %v1513, 0
      %v1634 = vsel %vm1527, %v1514, 0
      %v1637 = vsel %vm1527, %v1515, 0
      %v1640 = vsel %vm1527, %v1516, 0
      %v1643 = vsel %vm1527, %v1517, 0
      %v1646 = vsel %vm1527, %v1518, 0
      %v1649 = vsel %vm1527, %v1519, 0
      %v1652 = vsel %vm1527, %v1520, 0
      %v1655 = vsel %vm1527, %v1521, 0
      %v1658 = vsel %vm1527, %v1522, 0
      %v1661 = vsel %vm1527, %v1523, 0
      %v1664 = vsel %vm1527, %v1524, 0
      %v1667 = vsel %vm1527, %v1525, 0
      %v1670 = vsel %vm1527, %v1526, 0
      %vm1672 = vcmask 1043456
      %v1674 = vsel %vm1672, %v1382, 0
      %1676 = vmatprep.subr.bf16.mxu0 0
      %1677 = vmatpush1.bf16.msra.mxu0 %v1674
      %1678 = vmatprep.subr.bf16.mxu0 0
      %1679 = vmatpush1.bf16.msra.mxu0 0
      %1680 = vmatprep.subr.bf16.mxu0 0
      %1681 = vmatpush1.bf16.msra.mxu0 0
      %1682 = vmatprep.subr.bf16.mxu0 0
      %1683 = vmatpush1.bf16.msra.mxu0 0
      %1684 = vmatprep.subr.bf16.mxu0 0
      %1685 = vmatpush1.bf16.msra.mxu0 0
      %1686 = vmatprep.subr.bf16.mxu0 0
      %1687 = vmatpush1.bf16.msra.mxu0 0
      %1688 = vmatprep.subr.bf16.mxu0 0
      %1689 = vmatpush1.bf16.msra.mxu0 0
      %1690 = vmatprep.subr.bf16.mxu0 0
      %1691 = vmatpush1.bf16.msra.mxu0 0
      %1692 = vmatprep.subr.bf16.mxu0 0
      %1693 = vmatpush1.bf16.msra.mxu0 0
      %1694 = vmatprep.subr.bf16.mxu0 0
      %1695 = vmatpush1.bf16.msra.mxu0 0
      %1696 = vmatprep.subr.bf16.mxu0 0
      %1697 = vmatpush1.bf16.msra.mxu0 0
      %1698 = vmatprep.subr.bf16.mxu0 0
      %1699 = vmatpush1.bf16.msra.mxu0 0
      %1700 = vmatprep.subr.bf16.mxu0 0
      %1701 = vmatpush1.bf16.msra.mxu0 0
      %1702 = vmatprep.subr.bf16.mxu0 0
      %1703 = vmatpush1.bf16.msra.mxu0 0
      %1704 = vmatprep.subr.bf16.mxu0 0
      %1705 = vmatpush1.bf16.msra.mxu0 0
      %1706 = vmatprep.subr.bf16.mxu0 0
      %1707 = vmatpush1.bf16.msra.mxu0 0
      %1708 = vmatprep.mubr.bf16.mxu0 0
      %1709 = vmatmul.mubr.bf16.gmra.mrb[0].mxu0 %v1529
      %v1710 = vpop.f32.mrb[0].mxu0
      %v1711 = vadd.f32 0.0, %v1710
      %v1712 = vpop.f32.mrb[0].mxu0
      %v1713 = vpop.f32.mrb[0].mxu0
      %v1714 = vadd.f32 0.0, %v1713
      %v1715 = vpop.f32.mrb[0].mxu0
      %1716 = vmatprep.mubr.bf16.mxu0 0
      %1717 = vmatmul.mubr.bf16.gmra.mrb[0].mxu0 %v1532
      %v1718 = vpop.f32.mrb[0].mxu0
      %v1719 = vadd.f32 0.0, %v1718
      %v1720 = vpop.f32.mrb[0].mxu0
      %v1721 = vpop.f32.mrb[0].mxu0
      %v1722 = vadd.f32 0.0, %v1721
      %v1723 = vpop.f32.mrb[0].mxu0
      %1724 = vmatprep.mubr.bf16.mxu0 0
      %1725 = vmatmul.mubr.bf16.gmra.mrb[0].mxu0 %v1535
      %v1726 = vpop.f32.mrb[0].mxu0
      %v1727 = vadd.f32 0.0, %v1726
      %v1728 = vpop.f32.mrb[0].mxu0
      %v1729 = vpop.f32.mrb[0].mxu0
      %v1730 = vadd.f32 0.0, %v1729
      %v1731 = vpop.f32.mrb[0].mxu0
      %1732 = vmatprep.mubr.bf16.mxu0 0
      %1733 = vmatmul.mubr.bf16.gmra.mrb[0].mxu0 %v1538
      %v1734 = vpop.f32.mrb[0].mxu0
      %v1735 = vadd.f32 0.0, %v1734
      %v1736 = vpop.f32.mrb[0].mxu0
      %v1737 = vpop.f32.mrb[0].mxu0
      %v1738 = vadd.f32 0.0, %v1737
      %v1739 = vpop.f32.mrb[0].mxu0
      %1740 = vmatprep.mubr.bf16.mxu0 0
      %1741 = vmatmul.mubr.bf16.gmra.mrb[0].mxu0 %v1541
      %v1742 = vpop.f32.mrb[0].mxu0
      %v1743 = vadd.f32 0.0, %v1742
      %v1744 = vpop.f32.mrb[0].mxu0
      %v1745 = vpop.f32.mrb[0].mxu0
      %v1746 = vadd.f32 0.0, %v1745
      %v1747 = vpop.f32.mrb[0].mxu0
      %1748 = vmatprep.mubr.bf16.mxu0 0
      %1749 = vmatmul.mubr.bf16.gmra.mrb[0].mxu0 %v1544
      %v1750 = vpop.f32.mrb[0].mxu0
      %v1751 = vadd.f32 0.0, %v1750
      %v1752 = vpop.f32.mrb[0].mxu0
      %v1753 = vpop.f32.mrb[0].mxu0
      %v1754 = vadd.f32 0.0, %v1753
      %v1755 = vpop.f32.mrb[0].mxu0
      %1756 = vmatprep.mubr.bf16.mxu0 0
      %1757 = vmatmul.mubr.bf16.gmra.mrb[0].mxu0 %v1547
      %v1758 = vpop.f32.mrb[0].mxu0
      %v1759 = vadd.f32 0.0, %v1758
      %v1760 = vpop.f32.mrb[0].mxu0
      %v1761 = vpop.f32.mrb[0].mxu0
      %v1762 = vadd.f32 0.0, %v1761
      %v1763 = vpop.f32.mrb[0].mxu0
      %1764 = vmatprep.mubr.bf16.mxu0 0
      %1765 = vmatmul.mubr.bf16.gmra.mrb[0].mxu0 %v1550
      %v1766 = vpop.f32.mrb[0].mxu0
      %v1767 = vadd.f32 0.0, %v1766
      %v1768 = vpop.f32.mrb[0].mxu0
      %v1769 = vpop.f32.mrb[0].mxu0
      %v1770 = vadd.f32 0.0, %v1769
      %v1771 = vpop.f32.mrb[0].mxu0
      %1772 = vmatprep.mubr.bf16.mxu0 0
      %1773 = vmatmul.mubr.bf16.gmra.mrb[0].mxu0 %v1553
      %v1774 = vpop.f32.mrb[0].mxu0
      %v1775 = vadd.f32 0.0, %v1774
      %v1776 = vpop.f32.mrb[0].mxu0
      %v1777 = vpop.f32.mrb[0].mxu0
      %v1778 = vadd.f32 0.0, %v1777
      %v1779 = vpop.f32.mrb[0].mxu0
      %1780 = vmatprep.mubr.bf16.mxu0 0
      %1781 = vmatmul.mubr.bf16.gmra.mrb[0].mxu0 %v1556
      %v1782 = vpop.f32.mrb[0].mxu0
      %v1783 = vadd.f32 0.0, %v1782
      %v1784 = vpop.f32.mrb[0].mxu0
      %v1785 = vpop.f32.mrb[0].mxu0
      %v1786 = vadd.f32 0.0, %v1785
      %v1787 = vpop.f32.mrb[0].mxu0
      %1788 = vmatprep.mubr.bf16.mxu0 0
      %1789 = vmatmul.mubr.bf16.gmra.mrb[0].mxu0 %v1559
      %v1790 = vpop.f32.mrb[0].mxu0
      %v1791 = vadd.f32 0.0, %v1790
      %v1792 = vpop.f32.mrb[0].mxu0
      %v1793 = vpop.f32.mrb[0].mxu0
      %v1794 = vadd.f32 0.0, %v1793
      %v1795 = vpop.f32.mrb[0].mxu0
      %1796 = vmatprep.mubr.bf16.mxu0 0
      %1797 = vmatmul.mubr.bf16.gmra.mrb[0].mxu0 %v1562
      %v1798 = vpop.f32.mrb[0].mxu0
      %v1799 = vadd.f32 0.0, %v1798
      %v1800 = vpop.f32.mrb[0].mxu0
      %v1801 = vpop.f32.mrb[0].mxu0
      %v1802 = vadd.f32 0.0, %v1801
      %v1803 = vpop.f32.mrb[0].mxu0
      %1804 = vmatprep.mubr.bf16.mxu0 0
      %1805 = vmatmul.mubr.bf16.gmra.mrb[0].mxu0 %v1565
      %v1806 = vpop.f32.mrb[0].mxu0
      %v1807 = vadd.f32 0.0, %v1806
      %v1808 = vpop.f32.mrb[0].mxu0
      %v1809 = vpop.f32.mrb[0].mxu0
      %v1810 = vadd.f32 0.0, %v1809
      %v1811 = vpop.f32.mrb[0].mxu0
      %1812 = vmatprep.mubr.bf16.mxu0 0
      %1813 = vmatmul.mubr.bf16.gmra.mrb[0].mxu0 %v1568
      %v1814 = vpop.f32.mrb[0].mxu0
      %v1815 = vadd.f32 0.0, %v1814
      %v1816 = vpop.f32.mrb[0].mxu0
      %v1817 = vpop.f32.mrb[0].mxu0
      %v1818 = vadd.f32 0.0, %v1817
      %v1819 = vpop.f32.mrb[0].mxu0
      %1820 = vmatprep.mubr.bf16.mxu0 0
      %1821 = vmatmul.mubr.bf16.gmra.mrb[0].mxu0 %v1571
      %v1822 = vpop.f32.mrb[0].mxu0
      %v1823 = vadd.f32 0.0, %v1822
      %v1824 = vpop.f32.mrb[0].mxu0
      %v1825 = vpop.f32.mrb[0].mxu0
      %v1826 = vadd.f32 0.0, %v1825
      %v1827 = vpop.f32.mrb[0].mxu0
      %1828 = vmatprep.mubr.bf16.mxu0 0
      %1829 = vmatmul.mubr.bf16.gmra.mrb[0].mxu0 %v1574
      %v1830 = vpop.f32.mrb[0].mxu0
      %v1831 = vadd.f32 0.0, %v1830
      %v1832 = vpop.f32.mrb[0].mxu0
      %v1833 = vpop.f32.mrb[0].mxu0
      %v1834 = vadd.f32 0.0, %v1833
      %v1835 = vpop.f32.mrb[0].mxu0
      %1836 = vmatprep.mubr.bf16.mxu0 0
      %1837 = vmatmul.mubr.bf16.gmra.mrb[0].mxu0 %v1577
      %v1838 = vpop.f32.mrb[0].mxu0
      %v1839 = vadd.f32 0.0, %v1838
      %v1840 = vpop.f32.mrb[0].mxu0
      %v1841 = vpop.f32.mrb[0].mxu0
      %v1842 = vadd.f32 0.0, %v1841
      %v1843 = vpop.f32.mrb[0].mxu0
      %1844 = vmatprep.mubr.bf16.mxu0 0
      %1845 = vmatmul.mubr.bf16.gmra.mrb[0].mxu0 %v1580
      %v1846 = vpop.f32.mrb[0].mxu0
      %v1847 = vadd.f32 0.0, %v1846
      %v1848 = vpop.f32.mrb[0].mxu0
      %v1849 = vpop.f32.mrb[0].mxu0
      %v1850 = vadd.f32 0.0, %v1849
      %v1851 = vpop.f32.mrb[0].mxu0
      %1852 = vmatprep.mubr.bf16.mxu0 0
      %1853 = vmatmul.mubr.bf16.gmra.mrb[0].mxu0 %v1583
      %v1854 = vpop.f32.mrb[0].mxu0
      %v1855 = vadd.f32 0.0, %v1854
      %v1856 = vpop.f32.mrb[0].mxu0
      %v1857 = vpop.f32.mrb[0].mxu0
      %v1858 = vadd.f32 0.0, %v1857
      %v1859 = vpop.f32.mrb[0].mxu0
      %1860 = vmatprep.mubr.bf16.mxu0 0
      %1861 = vmatmul.mubr.bf16.gmra.mrb[0].mxu0 %v1586
      %v1862 = vpop.f32.mrb[0].mxu0
      %v1863 = vadd.f32 0.0, %v1862
      %v1864 = vpop.f32.mrb[0].mxu0
      %v1865 = vpop.f32.mrb[0].mxu0
      %v1866 = vadd.f32 0.0, %v1865
      %v1867 = vpop.f32.mrb[0].mxu0
      %1868 = vmatprep.mubr.bf16.mxu0 0
      %1869 = vmatmul.mubr.bf16.gmra.mrb[0].mxu0 %v1589
      %v1870 = vpop.f32.mrb[0].mxu0
      %v1871 = vadd.f32 0.0, %v1870
      %v1872 = vpop.f32.mrb[0].mxu0
      %v1873 = vpop.f32.mrb[0].mxu0
      %v1874 = vadd.f32 0.0, %v1873
      %v1875 = vpop.f32.mrb[0].mxu0
      %1876 = vmatprep.mubr.bf16.mxu0 0
      %1877 = vmatmul.mubr.bf16.gmra.mrb[0].mxu0 %v1592
      %v1878 = vpop.f32.mrb[0].mxu0
      %v1879 = vadd.f32 0.0, %v1878
      %v1880 = vpop.f32.mrb[0].mxu0
      %v1881 = vpop.f32.mrb[0].mxu0
      %v1882 = vadd.f32 0.0, %v1881
      %v1883 = vpop.f32.mrb[0].mxu0
      %1884 = vmatprep.mubr.bf16.mxu0 0
      %1885 = vmatmul.mubr.bf16.gmra.mrb[0].mxu0 %v1595
      %v1886 = vpop.f32.mrb[0].mxu0
      %v1887 = vadd.f32 0.0, %v1886
      %v1888 = vpop.f32.mrb[0].mxu0
      %v1889 = vpop.f32.mrb[0].mxu0
      %v1890 = vadd.f32 0.0, %v1889
      %v1891 = vpop.f32.mrb[0].mxu0
      %1892 = vmatprep.mubr.bf16.mxu0 0
      %1893 = vmatmul.mubr.bf16.gmra.mrb[0].mxu0 %v1598
      %v1894 = vpop.f32.mrb[0].mxu0
      %v1895 = vadd.f32 0.0, %v1894
      %v1896 = vpop.f32.mrb[0].mxu0
      %v1897 = vpop.f32.mrb[0].mxu0
      %v1898 = vadd.f32 0.0, %v1897
      %v1899 = vpop.f32.mrb[0].mxu0
      %1900 = vmatprep.mubr.bf16.mxu0 0
      %1901 = vmatmul.mubr.bf16.gmra.mrb[0].mxu0 %v1601
      %v1902 = vpop.f32.mrb[0].mxu0
      %v1903 = vadd.f32 0.0, %v1902
      %v1904 = vpop.f32.mrb[0].mxu0
      %v1905 = vpop.f32.mrb[0].mxu0
      %v1906 = vadd.f32 0.0, %v1905
      %v1907 = vpop.f32.mrb[0].mxu0
      %1908 = vmatprep.mubr.bf16.mxu0 0
      %1909 = vmatmul.mubr.bf16.gmra.mrb[0].mxu0 %v1604
      %v1910 = vpop.f32.mrb[0].mxu0
      %v1911 = vadd.f32 0.0, %v1910
      %v1912 = vpop.f32.mrb[0].mxu0
      %v1913 = vpop.f32.mrb[0].mxu0
      %v1914 = vadd.f32 0.0, %v1913
      %v1915 = vpop.f32.mrb[0].mxu0
      %1916 = vmatprep.mubr.bf16.mxu0 0
      %1917 = vmatmul.mubr.bf16.gmra.mrb[0].mxu0 %v1607
      %v1918 = vpop.f32.mrb[0].mxu0
      %v1919 = vadd.f32 0.0, %v1918
      %v1920 = vpop.f32.mrb[0].mxu0
      %v1921 = vpop.f32.mrb[0].mxu0
      %v1922 = vadd.f32 0.0, %v1921
      %v1923 = vpop.f32.mrb[0].mxu0
      %1924 = vmatprep.mubr.bf16.mxu0 0
      %1925 = vmatmul.mubr.bf16.gmra.mrb[0].mxu0 %v1610
      %v1926 = vpop.f32.mrb[0].mxu0
      %v1927 = vadd.f32 0.0, %v1926
      %v1928 = vpop.f32.mrb[0].mxu0
      %v1929 = vpop.f32.mrb[0].mxu0
      %v1930 = vadd.f32 0.0, %v1929
      %v1931 = vpop.f32.mrb[0].mxu0
      %1932 = vmatprep.mubr.bf16.mxu0 0
      %1933 = vmatmul.mubr.bf16.gmra.mrb[0].mxu0 %v1613
      %v1934 = vpop.f32.mrb[0].mxu0
      %v1935 = vadd.f32 0.0, %v1934
      %v1936 = vpop.f32.mrb[0].mxu0
      %v1937 = vpop.f32.mrb[0].mxu0
      %v1938 = vadd.f32 0.0, %v1937
      %v1939 = vpop.f32.mrb[0].mxu0
      %1940 = vmatprep.mubr.bf16.mxu0 0
      %1941 = vmatmul.mubr.bf16.gmra.mrb[0].mxu0 %v1616
      %v1942 = vpop.f32.mrb[0].mxu0
      %v1943 = vadd.f32 0.0, %v1942
      %v1944 = vpop.f32.mrb[0].mxu0
      %v1945 = vpop.f32.mrb[0].mxu0
      %v1946 = vadd.f32 0.0, %v1945
      %v1947 = vpop.f32.mrb[0].mxu0
      %1948 = vmatprep.mubr.bf16.mxu0 0
      %1949 = vmatmul.mubr.bf16.gmra.mrb[0].mxu0 %v1619
      %v1950 = vpop.f32.mrb[0].mxu0
      %v1951 = vadd.f32 0.0, %v1950
      %v1952 = vpop.f32.mrb[0].mxu0
      %v1953 = vpop.f32.mrb[0].mxu0
      %v1954 = vadd.f32 0.0, %v1953
      %v1955 = vpop.f32.mrb[0].mxu0
      %1956 = vmatprep.mubr.bf16.mxu0 0
      %1957 = vmatmul.mubr.bf16.gmra.mrb[0].mxu0 %v1622
      %v1958 = vpop.f32.mrb[0].mxu0
      %v1959 = vadd.f32 0.0, %v1958
      %v1960 = vpop.f32.mrb[0].mxu0
      %v1961 = vpop.f32.mrb[0].mxu0
      %v1962 = vadd.f32 0.0, %v1961
      %v1963 = vpop.f32.mrb[0].mxu0
      %1964 = vmatprep.mubr.bf16.mxu0 0
      %1965 = vmatmul.mubr.bf16.gmra.mrb[0].mxu0 %v1625
      %v1966 = vpop.f32.mrb[0].mxu0
      %v1967 = vadd.f32 0.0, %v1966
      %v1968 = vpop.f32.mrb[0].mxu0
      %v1969 = vpop.f32.mrb[0].mxu0
      %v1970 = vadd.f32 0.0, %v1969
      %v1971 = vpop.f32.mrb[0].mxu0
      %1972 = vmatprep.mubr.bf16.mxu0 0
      %1973 = vmatmul.mubr.bf16.gmra.mrb[0].mxu0 %v1628
      %v1974 = vpop.f32.mrb[0].mxu0
      %v1975 = vadd.f32 0.0, %v1974
      %v1976 = vpop.f32.mrb[0].mxu0
      %v1977 = vpop.f32.mrb[0].mxu0
      %v1978 = vadd.f32 0.0, %v1977
      %v1979 = vpop.f32.mrb[0].mxu0
      %1980 = vmatprep.mubr.bf16.mxu0 0
      %1981 = vmatmul.mubr.bf16.gmra.mrb[0].mxu0 %v1631
      %v1982 = vpop.f32.mrb[0].mxu0
      %v1983 = vadd.f32 0.0, %v1982
      %v1984 = vpop.f32.mrb[0].mxu0
      %v1985 = vpop.f32.mrb[0].mxu0
      %v1986 = vadd.f32 0.0, %v1985
      %v1987 = vpop.f32.mrb[0].mxu0
      %1988 = vmatprep.mubr.bf16.mxu0 0
      %1989 = vmatmul.mubr.bf16.gmra.mrb[0].mxu0 %v1634
      %v1990 = vpop.f32.mrb[0].mxu0
      %v1991 = vadd.f32 0.0, %v1990
      %v1992 = vpop.f32.mrb[0].mxu0
      %v1993 = vpop.f32.mrb[0].mxu0
      %v1994 = vadd.f32 0.0, %v1993
      %v1995 = vpop.f32.mrb[0].mxu0
      %1996 = vmatprep.mubr.bf16.mxu0 0
      %1997 = vmatmul.mubr.bf16.gmra.mrb[0].mxu0 %v1637
      %v1998 = vpop.f32.mrb[0].mxu0
      %v1999 = vadd.f32 0.0, %v1998
      %v2000 = vpop.f32.mrb[0].mxu0
      %v2001 = vpop.f32.mrb[0].mxu0
      %v2002 = vadd.f32 0.0, %v2001
      %v2003 = vpop.f32.mrb[0].mxu0
      %2004 = vmatprep.mubr.bf16.mxu0 0
      %2005 = vmatmul.mubr.bf16.gmra.mrb[0].mxu0 %v1640
      %v2006 = vpop.f32.mrb[0].mxu0
      %v2007 = vadd.f32 0.0, %v2006
      %v2008 = vpop.f32.mrb[0].mxu0
      %v2009 = vpop.f32.mrb[0].mxu0
      %v2010 = vadd.f32 0.0, %v2009
      %v2011 = vpop.f32.mrb[0].mxu0
      %2012 = vmatprep.mubr.bf16.mxu0 0
      %2013 = vmatmul.mubr.bf16.gmra.mrb[0].mxu0 %v1643
      %v2014 = vpop.f32.mrb[0].mxu0
      %v2015 = vadd.f32 0.0, %v2014
      %v2016 = vpop.f32.mrb[0].mxu0
      %v2017 = vpop.f32.mrb[0].mxu0
      %v2018 = vadd.f32 0.0, %v2017
      %v2019 = vpop.f32.mrb[0].mxu0
      %2020 = vmatprep.mubr.bf16.mxu0 0
      %2021 = vmatmul.mubr.bf16.gmra.mrb[0].mxu0 %v1646
      %v2022 = vpop.f32.mrb[0].mxu0
      %v2023 = vadd.f32 0.0, %v2022
      %v2024 = vpop.f32.mrb[0].mxu0
      %v2025 = vpop.f32.mrb[0].mxu0
      %v2026 = vadd.f32 0.0, %v2025
      %v2027 = vpop.f32.mrb[0].mxu0
      %2028 = vmatprep.mubr.bf16.mxu0 0
      %2029 = vmatmul.mubr.bf16.gmra.mrb[0].mxu0 %v1649
      %v2030 = vpop.f32.mrb[0].mxu0
      %v2031 = vadd.f32 0.0, %v2030
      %v2032 = vpop.f32.mrb[0].mxu0
      %v2033 = vpop.f32.mrb[0].mxu0
      %v2034 = vadd.f32 0.0, %v2033
      %v2035 = vpop.f32.mrb[0].mxu0
      %2036 = vmatprep.mubr.bf16.mxu0 0
      %2037 = vmatmul.mubr.bf16.gmra.mrb[0].mxu0 %v1652
      %v2038 = vpop.f32.mrb[0].mxu0
      %v2039 = vadd.f32 0.0, %v2038
      %v2040 = vpop.f32.mrb[0].mxu0
      %v2041 = vpop.f32.mrb[0].mxu0
      %v2042 = vadd.f32 0.0, %v2041
      %v2043 = vpop.f32.mrb[0].mxu0
      %2044 = vmatprep.mubr.bf16.mxu0 0
      %2045 = vmatmul.mubr.bf16.gmra.mrb[0].mxu0 %v1655
      %v2046 = vpop.f32.mrb[0].mxu0
      %v2047 = vadd.f32 0.0, %v2046
      %v2048 = vpop.f32.mrb[0].mxu0
      %v2049 = vpop.f32.mrb[0].mxu0
      %v2050 = vadd.f32 0.0, %v2049
      %v2051 = vpop.f32.mrb[0].mxu0
      %2052 = vmatprep.mubr.bf16.mxu0 0
      %2053 = vmatmul.mubr.bf16.gmra.mrb[0].mxu0 %v1658
      %v2054 = vpop.f32.mrb[0].mxu0
      %v2055 = vadd.f32 0.0, %v2054
      %v2056 = vpop.f32.mrb[0].mxu0
      %v2057 = vpop.f32.mrb[0].mxu0
      %v2058 = vadd.f32 0.0, %v2057
      %v2059 = vpop.f32.mrb[0].mxu0
      %2060 = vmatprep.mubr.bf16.mxu0 0
      %2061 = vmatmul.mubr.bf16.gmra.mrb[0].mxu0 %v1661
      %v2062 = vpop.f32.mrb[0].mxu0
      %v2063 = vadd.f32 0.0, %v2062
      %v2064 = vpop.f32.mrb[0].mxu0
      %v2065 = vpop.f32.mrb[0].mxu0
      %v2066 = vadd.f32 0.0, %v2065
      %v2067 = vpop.f32.mrb[0].mxu0
      %2068 = vmatprep.mubr.bf16.mxu0 0
      %2069 = vmatmul.mubr.bf16.gmra.mrb[0].mxu0 %v1664
      %v2070 = vpop.f32.mrb[0].mxu0
      %v2071 = vadd.f32 0.0, %v2070
      %v2072 = vpop.f32.mrb[0].mxu0
      %v2073 = vpop.f32.mrb[0].mxu0
      %v2074 = vadd.f32 0.0, %v2073
      %v2075 = vpop.f32.mrb[0].mxu0
      %2076 = vmatprep.mubr.bf16.mxu0 0
      %2077 = vmatmul.mubr.bf16.gmra.mrb[0].mxu0 %v1667
      %v2078 = vpop.f32.mrb[0].mxu0
      %v2079 = vadd.f32 0.0, %v2078
      %v2080 = vpop.f32.mrb[0].mxu0
      %v2081 = vpop.f32.mrb[0].mxu0
      %v2082 = vadd.f32 0.0, %v2081
      %v2083 = vpop.f32.mrb[0].mxu0
      %2084 = vmatprep.mubr.bf16.mxu0 0
      %2085 = vmatmul.mubr.bf16.gmra.mrb[0].mxu0 %v1670
      %v2086 = vpop.f32.mrb[0].mxu0
      %v2087 = vadd.f32 0.0, %v2086
      %v2088 = vpop.f32.mrb[0].mxu0
      %v2089 = vpop.f32.mrb[0].mxu0
      %v2090 = vadd.f32 0.0, %v2089
      %v2091 = vpop.f32.mrb[0].mxu0
      %2092 = vdwg.mxu0
      %v2189 = vunpack.c.l.b16 %v201
      %v2190 = vunpack.c.l.b16 %v202
      %v2191 = vunpack.c.l.b16 %v203
      %v2192 = vunpack.c.l.b16 %v204
      %v2193 = vunpack.c.l.b16 %v205
      %v2194 = vunpack.c.l.b16 %v206
      %v2195 = vunpack.c.l.b16 %v207
      %v2196 = vunpack.c.l.b16 %v208
      %v2197 = vunpack.c.l.b16 %v209
      %v2198 = vunpack.c.l.b16 %v210
      %v2199 = vunpack.c.l.b16 %v211
      %v2200 = vunpack.c.l.b16 %v212
      %v2201 = vunpack.c.l.b16 %v213
      %v2202 = vunpack.c.l.b16 %v214
      %v2203 = vunpack.c.l.b16 %v215
      %v2204 = vunpack.c.l.b16 %v216
      %v2205 = vunpack.c.l.b16 %v217
      %v2206 = vunpack.c.l.b16 %v218
      %v2207 = vunpack.c.l.b16 %v219
      %v2208 = vunpack.c.l.b16 %v220
      %v2209 = vunpack.c.l.b16 %v221
      %v2210 = vunpack.c.l.b16 %v222
      %v2211 = vunpack.c.l.b16 %v223
      %v2212 = vunpack.c.l.b16 %v224
      %v2213 = vunpack.c.l.b16 %v225
      %v2214 = vunpack.c.l.b16 %v226
      %v2215 = vunpack.c.l.b16 %v227
      %v2216 = vunpack.c.l.b16 %v228
      %v2217 = vunpack.c.l.b16 %v229
      %v2218 = vunpack.c.l.b16 %v230
      %v2219 = vunpack.c.l.b16 %v231
      %v2220 = vunpack.c.l.b16 %v232
      %v2221 = vunpack.c.l.b16 %v233
      %v2222 = vunpack.c.l.b16 %v234
      %v2223 = vunpack.c.l.b16 %v235
      %v2224 = vunpack.c.l.b16 %v236
      %v2225 = vunpack.c.l.b16 %v237
      %v2226 = vunpack.c.l.b16 %v238
      %v2227 = vunpack.c.l.b16 %v239
      %v2228 = vunpack.c.l.b16 %v240
      %v2229 = vunpack.c.l.b16 %v241
      %v2230 = vunpack.c.l.b16 %v242
      %v2231 = vunpack.c.l.b16 %v243
      %v2232 = vunpack.c.l.b16 %v244
      %v2233 = vunpack.c.l.b16 %v245
      %v2234 = vunpack.c.l.b16 %v246
      %v2235 = vunpack.c.l.b16 %v247
      %v2236 = vunpack.c.l.b16 %v248
      %v2237 = vunpack.c.l.b16 %v249
      %v2238 = vunpack.c.l.b16 %v250
      %v2239 = vunpack.c.l.b16 %v251
      %v2240 = vunpack.c.l.b16 %v252
      %v2241 = vunpack.c.l.b16 %v253
      %v2242 = vunpack.c.l.b16 %v254
      %v2243 = vunpack.c.l.b16 %v255
      %v2244 = vunpack.c.l.b16 %v256
      %v2245 = vunpack.c.l.b16 %v257
      %v2246 = vunpack.c.l.b16 %v258
      %v2247 = vunpack.c.l.b16 %v259
      %v2248 = vunpack.c.l.b16 %v260
      %v2249 = vunpack.c.l.b16 %v261
      %v2250 = vunpack.c.l.b16 %v262
      %v2251 = vunpack.c.l.b16 %v263
      %v2252 = vunpack.c.l.b16 %v264
      %v2253 = vunpack.c.l.b16 %v265
      %v2254 = vunpack.c.l.b16 %v266
      %v2255 = vunpack.c.l.b16 %v267
      %v2256 = vunpack.c.l.b16 %v268
      %v2257 = vunpack.c.l.b16 %v269
      %v2258 = vunpack.c.l.b16 %v270
      %v2259 = vunpack.c.l.b16 %v271
      %v2260 = vunpack.c.l.b16 %v272
      %v2261 = vunpack.c.l.b16 %v273
      %v2262 = vunpack.c.l.b16 %v274
      %v2263 = vunpack.c.l.b16 %v275
      %v2264 = vunpack.c.l.b16 %v276
      %v2265 = vunpack.c.l.b16 %v277
      %v2266 = vunpack.c.l.b16 %v278
      %v2267 = vunpack.c.l.b16 %v279
      %v2268 = vunpack.c.l.b16 %v280
      %v2269 = vunpack.c.l.b16 %v281
      %v2270 = vunpack.c.l.b16 %v282
      %v2271 = vunpack.c.l.b16 %v283
      %v2272 = vunpack.c.l.b16 %v284
      %v2273 = vunpack.c.l.b16 %v285
      %v2274 = vunpack.c.l.b16 %v286
      %v2275 = vunpack.c.l.b16 %v287
      %v2276 = vunpack.c.l.b16 %v288
      %v2277 = vunpack.c.l.b16 %v289
      %v2278 = vunpack.c.l.b16 %v290
      %v2279 = vunpack.c.l.b16 %v291
      %v2280 = vunpack.c.l.b16 %v292
      %v2281 = vunpack.c.l.b16 %v293
      %v2282 = vunpack.c.l.b16 %v294
      %v2283 = vunpack.c.l.b16 %v295
      %v2284 = vunpack.c.l.b16 %v296
      %v2285 = vpack.c.b16 %v2190, %v2189
      %v2286 = vpack.c.b16 %v2192, %v2191
      %v2287 = vpack.c.b16 %v2194, %v2193
      %v2288 = vpack.c.b16 %v2196, %v2195
      %v2289 = vpack.c.b16 %v2198, %v2197
      %v2290 = vpack.c.b16 %v2200, %v2199
      %v2291 = vpack.c.b16 %v2202, %v2201
      %v2292 = vpack.c.b16 %v2204, %v2203
      %v2293 = vpack.c.b16 %v2206, %v2205
      %v2294 = vpack.c.b16 %v2208, %v2207
      %v2295 = vpack.c.b16 %v2210, %v2209
      %v2296 = vpack.c.b16 %v2212, %v2211
      %v2297 = vpack.c.b16 %v2214, %v2213
      %v2298 = vpack.c.b16 %v2216, %v2215
      %v2299 = vpack.c.b16 %v2218, %v2217
      %v2300 = vpack.c.b16 %v2220, %v2219
      %v2301 = vpack.c.b16 %v2222, %v2221
      %v2302 = vpack.c.b16 %v2224, %v2223
      %v2303 = vpack.c.b16 %v2226, %v2225
      %v2304 = vpack.c.b16 %v2228, %v2227
      %v2305 = vpack.c.b16 %v2230, %v2229
      %v2306 = vpack.c.b16 %v2232, %v2231
      %v2307 = vpack.c.b16 %v2234, %v2233
      %v2308 = vpack.c.b16 %v2236, %v2235
      %v2309 = vpack.c.b16 %v2238, %v2237
      %v2310 = vpack.c.b16 %v2240, %v2239
      %v2311 = vpack.c.b16 %v2242, %v2241
      %v2312 = vpack.c.b16 %v2244, %v2243
      %v2313 = vpack.c.b16 %v2246, %v2245
      %v2314 = vpack.c.b16 %v2248, %v2247
      %v2315 = vpack.c.b16 %v2250, %v2249
      %v2316 = vpack.c.b16 %v2252, %v2251
      %v2317 = vpack.c.b16 %v2254, %v2253
      %v2318 = vpack.c.b16 %v2256, %v2255
      %v2319 = vpack.c.b16 %v2258, %v2257
      %v2320 = vpack.c.b16 %v2260, %v2259
      %v2321 = vpack.c.b16 %v2262, %v2261
      %v2322 = vpack.c.b16 %v2264, %v2263
      %v2323 = vpack.c.b16 %v2266, %v2265
      %v2324 = vpack.c.b16 %v2268, %v2267
      %v2325 = vpack.c.b16 %v2270, %v2269
      %v2326 = vpack.c.b16 %v2272, %v2271
      %v2327 = vpack.c.b16 %v2274, %v2273
      %v2328 = vpack.c.b16 %v2276, %v2275
      %v2329 = vpack.c.b16 %v2278, %v2277
      %v2330 = vpack.c.b16 %v2280, %v2279
      %v2331 = vpack.c.b16 %v2282, %v2281
      %v2332 = vpack.c.b16 %v2284, %v2283
      %v2334 = vsel %vm1527, %v2285, 0
      %v2337 = vsel %vm1527, %v2286, 0
      %v2340 = vsel %vm1527, %v2287, 0
      %v2343 = vsel %vm1527, %v2288, 0
      %v2346 = vsel %vm1527, %v2289, 0
      %v2349 = vsel %vm1527, %v2290, 0
      %v2352 = vsel %vm1527, %v2291, 0
      %v2355 = vsel %vm1527, %v2292, 0
      %v2358 = vsel %vm1527, %v2293, 0
      %v2361 = vsel %vm1527, %v2294, 0
      %v2364 = vsel %vm1527, %v2295, 0
      %v2367 = vsel %vm1527, %v2296, 0
      %v2370 = vsel %vm1527, %v2297, 0
      %v2373 = vsel %vm1527, %v2298, 0
      %v2376 = vsel %vm1527, %v2299, 0
      %v2379 = vsel %vm1527, %v2300, 0
      %v2382 = vsel %vm1527, %v2301, 0
      %v2385 = vsel %vm1527, %v2302, 0
      %v2388 = vsel %vm1527, %v2303, 0
      %v2391 = vsel %vm1527, %v2304, 0
      %v2394 = vsel %vm1527, %v2305, 0
      %v2397 = vsel %vm1527, %v2306, 0
      %v2400 = vsel %vm1527, %v2307, 0
      %v2403 = vsel %vm1527, %v2308, 0
      %v2406 = vsel %vm1527, %v2309, 0
      %v2409 = vsel %vm1527, %v2310, 0
      %v2412 = vsel %vm1527, %v2311, 0
      %v2415 = vsel %vm1527, %v2312, 0
      %v2418 = vsel %vm1527, %v2313, 0
      %v2421 = vsel %vm1527, %v2314, 0
      %v2424 = vsel %vm1527, %v2315, 0
      %v2427 = vsel %vm1527, %v2316, 0
      %v2430 = vsel %vm1527, %v2317, 0
      %v2433 = vsel %vm1527, %v2318, 0
      %v2436 = vsel %vm1527, %v2319, 0
      %v2439 = vsel %vm1527, %v2320, 0
      %v2442 = vsel %vm1527, %v2321, 0
      %v2445 = vsel %vm1527, %v2322, 0
      %v2448 = vsel %vm1527, %v2323, 0
      %v2451 = vsel %vm1527, %v2324, 0
      %v2454 = vsel %vm1527, %v2325, 0
      %v2457 = vsel %vm1527, %v2326, 0
      %v2460 = vsel %vm1527, %v2327, 0
      %v2463 = vsel %vm1527, %v2328, 0
      %v2466 = vsel %vm1527, %v2329, 0
      %v2469 = vsel %vm1527, %v2330, 0
      %v2472 = vsel %vm1527, %v2331, 0
      %v2475 = vsel %vm1527, %v2332, 0
      %v2478 = vsel %vm1672, %v297, 0
      %2480 = vmatprep.subr.bf16.mxu0 0
      %2481 = vmatpush1.bf16.msra.mxu0 %v2478
      %2482 = vmatprep.subr.bf16.mxu0 0
      %2483 = vmatpush1.bf16.msra.mxu0 0
      %2484 = vmatprep.subr.bf16.mxu0 0
      %2485 = vmatpush1.bf16.msra.mxu0 0
      %2486 = vmatprep.subr.bf16.mxu0 0
      %2487 = vmatpush1.bf16.msra.mxu0 0
      %2488 = vmatprep.subr.bf16.mxu0 0
      %2489 = vmatpush1.bf16.msra.mxu0 0
      %2490 = vmatprep.subr.bf16.mxu0 0
      %2491 = vmatpush1.bf16.msra.mxu0 0
      %2492 = vmatprep.subr.bf16.mxu0 0
      %2493 = vmatpush1.bf16.msra.mxu0 0
      %2494 = vmatprep.subr.bf16.mxu0 0
      %2495 = vmatpush1.bf16.msra.mxu0 0
      %2496 = vmatprep.subr.bf16.mxu0 0
      %2497 = vmatpush1.bf16.msra.mxu0 0
      %2498 = vmatprep.subr.bf16.mxu0 0
      %2499 = vmatpush1.bf16.msra.mxu0 0
      %2500 = vmatprep.subr.bf16.mxu0 0
      %2501 = vmatpush1.bf16.msra.mxu0 0
      %2502 = vmatprep.subr.bf16.mxu0 0
      %2503 = vmatpush1.bf16.msra.mxu0 0
      %2504 = vmatprep.subr.bf16.mxu0 0
      %2505 = vmatpush1.bf16.msra.mxu0 0
      %2506 = vmatprep.subr.bf16.mxu0 0
      %2507 = vmatpush1.bf16.msra.mxu0 0
      %2508 = vmatprep.subr.bf16.mxu0 0
      %2509 = vmatpush1.bf16.msra.mxu0 0
      %2510 = vmatprep.subr.bf16.mxu0 0
      %2511 = vmatpush1.bf16.msra.mxu0 0
      %2512 = vmatprep.mubr.bf16.mxu0 0
      %2513 = vmatmul.mubr.bf16.gmra.mrb[0].mxu0 %v2334
      %v2514 = vpop.f32.mrb[0].mxu0
      %v2515 = vadd.f32 %v1711, %v2514
      %v2516 = vpop.f32.mrb[0].mxu0
      %v2517 = vpop.f32.mrb[0].mxu0
      %v2518 = vadd.f32 %v1714, %v2517
      %v2519 = vpop.f32.mrb[0].mxu0
      %2520 = vmatprep.mubr.bf16.mxu0 0
      %2521 = vmatmul.mubr.bf16.gmra.mrb[0].mxu0 %v2337
      %v2522 = vpop.f32.mrb[0].mxu0
      %v2523 = vadd.f32 %v1719, %v2522
      %v2524 = vpop.f32.mrb[0].mxu0
      %v2525 = vpop.f32.mrb[0].mxu0
      %v2526 = vadd.f32 %v1722, %v2525
      %v2527 = vpop.f32.mrb[0].mxu0
      %2528 = vmatprep.mubr.bf16.mxu0 0
      %2529 = vmatmul.mubr.bf16.gmra.mrb[0].mxu0 %v2340
      %v2530 = vpop.f32.mrb[0].mxu0
      %v2531 = vadd.f32 %v1727, %v2530
      %v2532 = vpop.f32.mrb[0].mxu0
      %v2533 = vpop.f32.mrb[0].mxu0
      %v2534 = vadd.f32 %v1730, %v2533
      %v2535 = vpop.f32.mrb[0].mxu0
      %2536 = vmatprep.mubr.bf16.mxu0 0
      %2537 = vmatmul.mubr.bf16.gmra.mrb[0].mxu0 %v2343
      %v2538 = vpop.f32.mrb[0].mxu0
      %v2539 = vadd.f32 %v1735, %v2538
      %v2540 = vpop.f32.mrb[0].mxu0
      %v2541 = vpop.f32.mrb[0].mxu0
      %v2542 = vadd.f32 %v1738, %v2541
      %v2543 = vpop.f32.mrb[0].mxu0
      %2544 = vmatprep.mubr.bf16.mxu0 0
      %2545 = vmatmul.mubr.bf16.gmra.mrb[0].mxu0 %v2346
      %v2546 = vpop.f32.mrb[0].mxu0
      %v2547 = vadd.f32 %v1743, %v2546
      %v2548 = vpop.f32.mrb[0].mxu0
      %v2549 = vpop.f32.mrb[0].mxu0
      %v2550 = vadd.f32 %v1746, %v2549
      %v2551 = vpop.f32.mrb[0].mxu0
      %2552 = vmatprep.mubr.bf16.mxu0 0
      %2553 = vmatmul.mubr.bf16.gmra.mrb[0].mxu0 %v2349
      %v2554 = vpop.f32.mrb[0].mxu0
      %v2555 = vadd.f32 %v1751, %v2554
      %v2556 = vpop.f32.mrb[0].mxu0
      %v2557 = vpop.f32.mrb[0].mxu0
      %v2558 = vadd.f32 %v1754, %v2557
      %v2559 = vpop.f32.mrb[0].mxu0
      %2560 = vmatprep.mubr.bf16.mxu0 0
      %2561 = vmatmul.mubr.bf16.gmra.mrb[0].mxu0 %v2352
      %v2562 = vpop.f32.mrb[0].mxu0
      %v2563 = vadd.f32 %v1759, %v2562
      %v2564 = vpop.f32.mrb[0].mxu0
      %v2565 = vpop.f32.mrb[0].mxu0
      %v2566 = vadd.f32 %v1762, %v2565
      %v2567 = vpop.f32.mrb[0].mxu0
      %2568 = vmatprep.mubr.bf16.mxu0 0
      %2569 = vmatmul.mubr.bf16.gmra.mrb[0].mxu0 %v2355
      %v2570 = vpop.f32.mrb[0].mxu0
      %v2571 = vadd.f32 %v1767, %v2570
      %v2572 = vpop.f32.mrb[0].mxu0
      %v2573 = vpop.f32.mrb[0].mxu0
      %v2574 = vadd.f32 %v1770, %v2573
      %v2575 = vpop.f32.mrb[0].mxu0
      %2576 = vmatprep.mubr.bf16.mxu0 0
      %2577 = vmatmul.mubr.bf16.gmra.mrb[0].mxu0 %v2358
      %v2578 = vpop.f32.mrb[0].mxu0
      %v2579 = vadd.f32 %v1775, %v2578
      %v2580 = vpop.f32.mrb[0].mxu0
      %v2581 = vpop.f32.mrb[0].mxu0
      %v2582 = vadd.f32 %v1778, %v2581
      %v2583 = vpop.f32.mrb[0].mxu0
      %2584 = vmatprep.mubr.bf16.mxu0 0
      %2585 = vmatmul.mubr.bf16.gmra.mrb[0].mxu0 %v2361
      %v2586 = vpop.f32.mrb[0].mxu0
      %v2587 = vadd.f32 %v1783, %v2586
      %v2588 = vpop.f32.mrb[0].mxu0
      %v2589 = vpop.f32.mrb[0].mxu0
      %v2590 = vadd.f32 %v1786, %v2589
      %v2591 = vpop.f32.mrb[0].mxu0
      %2592 = vmatprep.mubr.bf16.mxu0 0
      %2593 = vmatmul.mubr.bf16.gmra.mrb[0].mxu0 %v2364
      %v2594 = vpop.f32.mrb[0].mxu0
      %v2595 = vadd.f32 %v1791, %v2594
      %v2596 = vpop.f32.mrb[0].mxu0
      %v2597 = vpop.f32.mrb[0].mxu0
      %v2598 = vadd.f32 %v1794, %v2597
      %v2599 = vpop.f32.mrb[0].mxu0
      %2600 = vmatprep.mubr.bf16.mxu0 0
      %2601 = vmatmul.mubr.bf16.gmra.mrb[0].mxu0 %v2367
      %v2602 = vpop.f32.mrb[0].mxu0
      %v2603 = vadd.f32 %v1799, %v2602
      %v2604 = vpop.f32.mrb[0].mxu0
      %v2605 = vpop.f32.mrb[0].mxu0
      %v2606 = vadd.f32 %v1802, %v2605
      %v2607 = vpop.f32.mrb[0].mxu0
      %2608 = vmatprep.mubr.bf16.mxu0 0
      %2609 = vmatmul.mubr.bf16.gmra.mrb[0].mxu0 %v2370
      %v2610 = vpop.f32.mrb[0].mxu0
      %v2611 = vadd.f32 %v1807, %v2610
      %v2612 = vpop.f32.mrb[0].mxu0
      %v2613 = vpop.f32.mrb[0].mxu0
      %v2614 = vadd.f32 %v1810, %v2613
      %v2615 = vpop.f32.mrb[0].mxu0
      %2616 = vmatprep.mubr.bf16.mxu0 0
      %2617 = vmatmul.mubr.bf16.gmra.mrb[0].mxu0 %v2373
      %v2618 = vpop.f32.mrb[0].mxu0
      %v2619 = vadd.f32 %v1815, %v2618
      %v2620 = vpop.f32.mrb[0].mxu0
      %v2621 = vpop.f32.mrb[0].mxu0
      %v2622 = vadd.f32 %v1818, %v2621
      %v2623 = vpop.f32.mrb[0].mxu0
      %2624 = vmatprep.mubr.bf16.mxu0 0
      %2625 = vmatmul.mubr.bf16.gmra.mrb[0].mxu0 %v2376
      %v2626 = vpop.f32.mrb[0].mxu0
      %v2627 = vadd.f32 %v1823, %v2626
      %v2628 = vpop.f32.mrb[0].mxu0
      %v2629 = vpop.f32.mrb[0].mxu0
      %v2630 = vadd.f32 %v1826, %v2629
      %v2631 = vpop.f32.mrb[0].mxu0
      %2632 = vmatprep.mubr.bf16.mxu0 0
      %2633 = vmatmul.mubr.bf16.gmra.mrb[0].mxu0 %v2379
      %v2634 = vpop.f32.mrb[0].mxu0
      %v2635 = vadd.f32 %v1831, %v2634
      %v2636 = vpop.f32.mrb[0].mxu0
      %v2637 = vpop.f32.mrb[0].mxu0
      %v2638 = vadd.f32 %v1834, %v2637
      %v2639 = vpop.f32.mrb[0].mxu0
      %2640 = vmatprep.mubr.bf16.mxu0 0
      %2641 = vmatmul.mubr.bf16.gmra.mrb[0].mxu0 %v2382
      %v2642 = vpop.f32.mrb[0].mxu0
      %v2643 = vadd.f32 %v1839, %v2642
      %v2644 = vpop.f32.mrb[0].mxu0
      %v2645 = vpop.f32.mrb[0].mxu0
      %v2646 = vadd.f32 %v1842, %v2645
      %v2647 = vpop.f32.mrb[0].mxu0
      %2648 = vmatprep.mubr.bf16.mxu0 0
      %2649 = vmatmul.mubr.bf16.gmra.mrb[0].mxu0 %v2385
      %v2650 = vpop.f32.mrb[0].mxu0
      %v2651 = vadd.f32 %v1847, %v2650
      %v2652 = vpop.f32.mrb[0].mxu0
      %v2653 = vpop.f32.mrb[0].mxu0
      %v2654 = vadd.f32 %v1850, %v2653
      %v2655 = vpop.f32.mrb[0].mxu0
      %2656 = vmatprep.mubr.bf16.mxu0 0
      %2657 = vmatmul.mubr.bf16.gmra.mrb[0].mxu0 %v2388
      %v2658 = vpop.f32.mrb[0].mxu0
      %v2659 = vadd.f32 %v1855, %v2658
      %v2660 = vpop.f32.mrb[0].mxu0
      %v2661 = vpop.f32.mrb[0].mxu0
      %v2662 = vadd.f32 %v1858, %v2661
      %v2663 = vpop.f32.mrb[0].mxu0
      %2664 = vmatprep.mubr.bf16.mxu0 0
      %2665 = vmatmul.mubr.bf16.gmra.mrb[0].mxu0 %v2391
      %v2666 = vpop.f32.mrb[0].mxu0
      %v2667 = vadd.f32 %v1863, %v2666
      %v2668 = vpop.f32.mrb[0].mxu0
      %v2669 = vpop.f32.mrb[0].mxu0
      %v2670 = vadd.f32 %v1866, %v2669
      %v2671 = vpop.f32.mrb[0].mxu0
      %2672 = vmatprep.mubr.bf16.mxu0 0
      %2673 = vmatmul.mubr.bf16.gmra.mrb[0].mxu0 %v2394
      %v2674 = vpop.f32.mrb[0].mxu0
      %v2675 = vadd.f32 %v1871, %v2674
      %v2676 = vpop.f32.mrb[0].mxu0
      %v2677 = vpop.f32.mrb[0].mxu0
      %v2678 = vadd.f32 %v1874, %v2677
      %v2679 = vpop.f32.mrb[0].mxu0
      %2680 = vmatprep.mubr.bf16.mxu0 0
      %2681 = vmatmul.mubr.bf16.gmra.mrb[0].mxu0 %v2397
      %v2682 = vpop.f32.mrb[0].mxu0
      %v2683 = vadd.f32 %v1879, %v2682
      %v2684 = vpop.f32.mrb[0].mxu0
      %v2685 = vpop.f32.mrb[0].mxu0
      %v2686 = vadd.f32 %v1882, %v2685
      %v2687 = vpop.f32.mrb[0].mxu0
      %2688 = vmatprep.mubr.bf16.mxu0 0
      %2689 = vmatmul.mubr.bf16.gmra.mrb[0].mxu0 %v2400
      %v2690 = vpop.f32.mrb[0].mxu0
      %v2691 = vadd.f32 %v1887, %v2690
      %v2692 = vpop.f32.mrb[0].mxu0
      %v2693 = vpop.f32.mrb[0].mxu0
      %v2694 = vadd.f32 %v1890, %v2693
      %v2695 = vpop.f32.mrb[0].mxu0
      %2696 = vmatprep.mubr.bf16.mxu0 0
      %2697 = vmatmul.mubr.bf16.gmra.mrb[0].mxu0 %v2403
      %v2698 = vpop.f32.mrb[0].mxu0
      %v2699 = vadd.f32 %v1895, %v2698
      %v2700 = vpop.f32.mrb[0].mxu0
      %v2701 = vpop.f32.mrb[0].mxu0
      %v2702 = vadd.f32 %v1898, %v2701
      %v2703 = vpop.f32.mrb[0].mxu0
      %2704 = vmatprep.mubr.bf16.mxu0 0
      %2705 = vmatmul.mubr.bf16.gmra.mrb[0].mxu0 %v2406
      %v2706 = vpop.f32.mrb[0].mxu0
      %v2707 = vadd.f32 %v1903, %v2706
      %v2708 = vpop.f32.mrb[0].mxu0
      %v2709 = vpop.f32.mrb[0].mxu0
      %v2710 = vadd.f32 %v1906, %v2709
      %v2711 = vpop.f32.mrb[0].mxu0
      %2712 = vmatprep.mubr.bf16.mxu0 0
      %2713 = vmatmul.mubr.bf16.gmra.mrb[0].mxu0 %v2409
      %v2714 = vpop.f32.mrb[0].mxu0
      %v2715 = vadd.f32 %v1911, %v2714
      %v2716 = vpop.f32.mrb[0].mxu0
      %v2717 = vpop.f32.mrb[0].mxu0
      %v2718 = vadd.f32 %v1914, %v2717
      %v2719 = vpop.f32.mrb[0].mxu0
      %2720 = vmatprep.mubr.bf16.mxu0 0
      %2721 = vmatmul.mubr.bf16.gmra.mrb[0].mxu0 %v2412
      %v2722 = vpop.f32.mrb[0].mxu0
      %v2723 = vadd.f32 %v1919, %v2722
      %v2724 = vpop.f32.mrb[0].mxu0
      %v2725 = vpop.f32.mrb[0].mxu0
      %v2726 = vadd.f32 %v1922, %v2725
      %v2727 = vpop.f32.mrb[0].mxu0
      %2728 = vmatprep.mubr.bf16.mxu0 0
      %2729 = vmatmul.mubr.bf16.gmra.mrb[0].mxu0 %v2415
      %v2730 = vpop.f32.mrb[0].mxu0
      %v2731 = vadd.f32 %v1927, %v2730
      %v2732 = vpop.f32.mrb[0].mxu0
      %v2733 = vpop.f32.mrb[0].mxu0
      %v2734 = vadd.f32 %v1930, %v2733
      %v2735 = vpop.f32.mrb[0].mxu0
      %2736 = vmatprep.mubr.bf16.mxu0 0
      %2737 = vmatmul.mubr.bf16.gmra.mrb[0].mxu0 %v2418
      %v2738 = vpop.f32.mrb[0].mxu0
      %v2739 = vadd.f32 %v1935, %v2738
      %v2740 = vpop.f32.mrb[0].mxu0
      %v2741 = vpop.f32.mrb[0].mxu0
      %v2742 = vadd.f32 %v1938, %v2741
      %v2743 = vpop.f32.mrb[0].mxu0
      %2744 = vmatprep.mubr.bf16.mxu0 0
      %2745 = vmatmul.mubr.bf16.gmra.mrb[0].mxu0 %v2421
      %v2746 = vpop.f32.mrb[0].mxu0
      %v2747 = vadd.f32 %v1943, %v2746
      %v2748 = vpop.f32.mrb[0].mxu0
      %v2749 = vpop.f32.mrb[0].mxu0
      %v2750 = vadd.f32 %v1946, %v2749
      %v2751 = vpop.f32.mrb[0].mxu0
      %2752 = vmatprep.mubr.bf16.mxu0 0
      %2753 = vmatmul.mubr.bf16.gmra.mrb[0].mxu0 %v2424
      %v2754 = vpop.f32.mrb[0].mxu0
      %v2755 = vadd.f32 %v1951, %v2754
      %v2756 = vpop.f32.mrb[0].mxu0
      %v2757 = vpop.f32.mrb[0].mxu0
      %v2758 = vadd.f32 %v1954, %v2757
      %v2759 = vpop.f32.mrb[0].mxu0
      %2760 = vmatprep.mubr.bf16.mxu0 0
      %2761 = vmatmul.mubr.bf16.gmra.mrb[0].mxu0 %v2427
      %v2762 = vpop.f32.mrb[0].mxu0
      %v2763 = vadd.f32 %v1959, %v2762
      %v2764 = vpop.f32.mrb[0].mxu0
      %v2765 = vpop.f32.mrb[0].mxu0
      %v2766 = vadd.f32 %v1962, %v2765
      %v2767 = vpop.f32.mrb[0].mxu0
      %2768 = vmatprep.mubr.bf16.mxu0 0
      %2769 = vmatmul.mubr.bf16.gmra.mrb[0].mxu0 %v2430
      %v2770 = vpop.f32.mrb[0].mxu0
      %v2771 = vadd.f32 %v1967, %v2770
      %v2772 = vpop.f32.mrb[0].mxu0
      %v2773 = vpop.f32.mrb[0].mxu0
      %v2774 = vadd.f32 %v1970, %v2773
      %v2775 = vpop.f32.mrb[0].mxu0
      %2776 = vmatprep.mubr.bf16.mxu0 0
      %2777 = vmatmul.mubr.bf16.gmra.mrb[0].mxu0 %v2433
      %v2778 = vpop.f32.mrb[0].mxu0
      %v2779 = vadd.f32 %v1975, %v2778
      %v2780 = vpop.f32.mrb[0].mxu0
      %v2781 = vpop.f32.mrb[0].mxu0
      %v2782 = vadd.f32 %v1978, %v2781
      %v2783 = vpop.f32.mrb[0].mxu0
      %2784 = vmatprep.mubr.bf16.mxu0 0
      %2785 = vmatmul.mubr.bf16.gmra.mrb[0].mxu0 %v2436
      %v2786 = vpop.f32.mrb[0].mxu0
      %v2787 = vadd.f32 %v1983, %v2786
      %v2788 = vpop.f32.mrb[0].mxu0
      %v2789 = vpop.f32.mrb[0].mxu0
      %v2790 = vadd.f32 %v1986, %v2789
      %v2791 = vpop.f32.mrb[0].mxu0
      %2792 = vmatprep.mubr.bf16.mxu0 0
      %2793 = vmatmul.mubr.bf16.gmra.mrb[0].mxu0 %v2439
      %v2794 = vpop.f32.mrb[0].mxu0
      %v2795 = vadd.f32 %v1991, %v2794
      %v2796 = vpop.f32.mrb[0].mxu0
      %v2797 = vpop.f32.mrb[0].mxu0
      %v2798 = vadd.f32 %v1994, %v2797
      %v2799 = vpop.f32.mrb[0].mxu0
      %2800 = vmatprep.mubr.bf16.mxu0 0
      %2801 = vmatmul.mubr.bf16.gmra.mrb[0].mxu0 %v2442
      %v2802 = vpop.f32.mrb[0].mxu0
      %v2803 = vadd.f32 %v1999, %v2802
      %v2804 = vpop.f32.mrb[0].mxu0
      %v2805 = vpop.f32.mrb[0].mxu0
      %v2806 = vadd.f32 %v2002, %v2805
      %v2807 = vpop.f32.mrb[0].mxu0
      %2808 = vmatprep.mubr.bf16.mxu0 0
      %2809 = vmatmul.mubr.bf16.gmra.mrb[0].mxu0 %v2445
      %v2810 = vpop.f32.mrb[0].mxu0
      %v2811 = vadd.f32 %v2007, %v2810
      %v2812 = vpop.f32.mrb[0].mxu0
      %v2813 = vpop.f32.mrb[0].mxu0
      %v2814 = vadd.f32 %v2010, %v2813
      %v2815 = vpop.f32.mrb[0].mxu0
      %2816 = vmatprep.mubr.bf16.mxu0 0
      %2817 = vmatmul.mubr.bf16.gmra.mrb[0].mxu0 %v2448
      %v2818 = vpop.f32.mrb[0].mxu0
      %v2819 = vadd.f32 %v2015, %v2818
      %v2820 = vpop.f32.mrb[0].mxu0
      %v2821 = vpop.f32.mrb[0].mxu0
      %v2822 = vadd.f32 %v2018, %v2821
      %v2823 = vpop.f32.mrb[0].mxu0
      %2824 = vmatprep.mubr.bf16.mxu0 0
      %2825 = vmatmul.mubr.bf16.gmra.mrb[0].mxu0 %v2451
      %v2826 = vpop.f32.mrb[0].mxu0
      %v2827 = vadd.f32 %v2023, %v2826
      %v2828 = vpop.f32.mrb[0].mxu0
      %v2829 = vpop.f32.mrb[0].mxu0
      %v2830 = vadd.f32 %v2026, %v2829
      %v2831 = vpop.f32.mrb[0].mxu0
      %2832 = vmatprep.mubr.bf16.mxu0 0
      %2833 = vmatmul.mubr.bf16.gmra.mrb[0].mxu0 %v2454
      %v2834 = vpop.f32.mrb[0].mxu0
      %v2835 = vadd.f32 %v2031, %v2834
      %v2836 = vpop.f32.mrb[0].mxu0
      %v2837 = vpop.f32.mrb[0].mxu0
      %v2838 = vadd.f32 %v2034, %v2837
      %v2839 = vpop.f32.mrb[0].mxu0
      %2840 = vmatprep.mubr.bf16.mxu0 0
      %2841 = vmatmul.mubr.bf16.gmra.mrb[0].mxu0 %v2457
      %v2842 = vpop.f32.mrb[0].mxu0
      %v2843 = vadd.f32 %v2039, %v2842
      %v2844 = vpop.f32.mrb[0].mxu0
      %v2845 = vpop.f32.mrb[0].mxu0
      %v2846 = vadd.f32 %v2042, %v2845
      %v2847 = vpop.f32.mrb[0].mxu0
      %2848 = vmatprep.mubr.bf16.mxu0 0
      %2849 = vmatmul.mubr.bf16.gmra.mrb[0].mxu0 %v2460
      %v2850 = vpop.f32.mrb[0].mxu0
      %v2851 = vadd.f32 %v2047, %v2850
      %v2852 = vpop.f32.mrb[0].mxu0
      %v2853 = vpop.f32.mrb[0].mxu0
      %v2854 = vadd.f32 %v2050, %v2853
      %v2855 = vpop.f32.mrb[0].mxu0
      %2856 = vmatprep.mubr.bf16.mxu0 0
      %2857 = vmatmul.mubr.bf16.gmra.mrb[0].mxu0 %v2463
      %v2858 = vpop.f32.mrb[0].mxu0
      %v2859 = vadd.f32 %v2055, %v2858
      %v2860 = vpop.f32.mrb[0].mxu0
      %v2861 = vpop.f32.mrb[0].mxu0
      %v2862 = vadd.f32 %v2058, %v2861
      %v2863 = vpop.f32.mrb[0].mxu0
      %2864 = vmatprep.mubr.bf16.mxu0 0
      %2865 = vmatmul.mubr.bf16.gmra.mrb[0].mxu0 %v2466
      %v2866 = vpop.f32.mrb[0].mxu0
      %v2867 = vadd.f32 %v2063, %v2866
      %v2868 = vpop.f32.mrb[0].mxu0
      %v2869 = vpop.f32.mrb[0].mxu0
      %v2870 = vadd.f32 %v2066, %v2869
      %v2871 = vpop.f32.mrb[0].mxu0
      %2872 = vmatprep.mubr.bf16.mxu0 0
      %2873 = vmatmul.mubr.bf16.gmra.mrb[0].mxu0 %v2469
      %v2874 = vpop.f32.mrb[0].mxu0
      %v2875 = vadd.f32 %v2071, %v2874
      %v2876 = vpop.f32.mrb[0].mxu0
      %v2877 = vpop.f32.mrb[0].mxu0
      %v2878 = vadd.f32 %v2074, %v2877
      %v2879 = vpop.f32.mrb[0].mxu0
      %2880 = vmatprep.mubr.bf16.mxu0 0
      %2881 = vmatmul.mubr.bf16.gmra.mrb[0].mxu0 %v2472
      %v2882 = vpop.f32.mrb[0].mxu0
      %v2883 = vadd.f32 %v2079, %v2882
      %v2884 = vpop.f32.mrb[0].mxu0
      %v2885 = vpop.f32.mrb[0].mxu0
      %v2886 = vadd.f32 %v2082, %v2885
      %v2887 = vpop.f32.mrb[0].mxu0
      %2888 = vmatprep.mubr.bf16.mxu0 0
      %2889 = vmatmul.mubr.bf16.gmra.mrb[0].mxu0 %v2475
      %v2890 = vpop.f32.mrb[0].mxu0
      %v2891 = vadd.f32 %v2087, %v2890
      %v2892 = vpop.f32.mrb[0].mxu0
      %v2893 = vpop.f32.mrb[0].mxu0
      %v2894 = vadd.f32 %v2090, %v2893
      %v2895 = vpop.f32.mrb[0].mxu0
      %2896 = vdwg.mxu0
      %s2897 = sadd.s32 %s197, 1
      %s2898 = smul.u32 %s2897, 5
      %s2899 = smul.addr %s2898, 4
      %s2900 = scalar_lea.vmem %s184, %s2899
      %v2901 = vld [vmem:[%s2900] sm:$0xf]
      %v2902 = vld [vmem:[%s2900 + $0x4] sm:$0xf]
      %v2903 = vld [vmem:[%s2900 + $0x8] sm:$0xf]
      %v2904 = vld [vmem:[%s2900 + $0xc] sm:$0xf]
      %v2905 = vld [vmem:[%s2900 + $0x14] sm:$0xf]
      %v2906 = vld [vmem:[%s2900 + $0x18] sm:$0xf]
      %v2907 = vld [vmem:[%s2900 + $0x1c] sm:$0xf]
      %v2908 = vld [vmem:[%s2900 + $0x20] sm:$0xf]
      %v2909 = vld [vmem:[%s2900 + $0x28] sm:$0xf]
      %v2910 = vld [vmem:[%s2900 + $0x2c] sm:$0xf]
      %v2911 = vld [vmem:[%s2900 + $0x30] sm:$0xf]
      %v2912 = vld [vmem:[%s2900 + $0x34] sm:$0xf]
      %v2913 = vld [vmem:[%s2900 + $0x3c] sm:$0xf]
      %v2914 = vld [vmem:[%s2900 + $0x40] sm:$0xf]
      %v2915 = vld [vmem:[%s2900 + $0x44] sm:$0xf]
      %v2916 = vld [vmem:[%s2900 + $0x48] sm:$0xf]
      %v2917 = vld [vmem:[%s2900 + $0x50] sm:$0xf]
      %v2918 = vld [vmem:[%s2900 + $0x54] sm:$0xf]
      %v2919 = vld [vmem:[%s2900 + $0x58] sm:$0xf]
      %v2920 = vld [vmem:[%s2900 + $0x5c] sm:$0xf]
      %v2921 = vld [vmem:[%s2900 + $0x64] sm:$0xf]
      %v2922 = vld [vmem:[%s2900 + $0x68] sm:$0xf]
      %v2923 = vld [vmem:[%s2900 + $0x6c] sm:$0xf]
      %v2924 = vld [vmem:[%s2900 + $0x70] sm:$0xf]
      %v2925 = vld [vmem:[%s2900 + $0x78] sm:$0xf]
      %v2926 = vld [vmem:[%s2900 + $0x7c] sm:$0xf]
      %v2927 = vld [vmem:[%s2900 + $0x80] sm:$0xf]
      %v2928 = vld [vmem:[%s2900 + $0x84] sm:$0xf]
      %v2929 = vld [vmem:[%s2900 + $0x8c] sm:$0xf]
      %v2930 = vld [vmem:[%s2900 + $0x90] sm:$0xf]
      %v2931 = vld [vmem:[%s2900 + $0x94] sm:$0xf]
      %v2932 = vld [vmem:[%s2900 + $0x98] sm:$0xf]
      %v2933 = vld [vmem:[%s2900 + $0xa0] sm:$0xf]
      %v2934 = vld [vmem:[%s2900 + $0xa4] sm:$0xf]
      %v2935 = vld [vmem:[%s2900 + $0xa8] sm:$0xf]
      %v2936 = vld [vmem:[%s2900 + $0xac] sm:$0xf]
      %v2937 = vld [vmem:[%s2900 + $0xb4] sm:$0xf]
      %v2938 = vld [vmem:[%s2900 + $0xb8] sm:$0xf]
      %v2939 = vld [vmem:[%s2900 + $0xbc] sm:$0xf]
      %v2940 = vld [vmem:[%s2900 + $0xc0] sm:$0xf]
      %v2941 = vld [vmem:[%s2900 + $0xc8] sm:$0xf]
      %v2942 = vld [vmem:[%s2900 + $0xcc] sm:$0xf]
      %v2943 = vld [vmem:[%s2900 + $0xd0] sm:$0xf]
      %v2944 = vld [vmem:[%s2900 + $0xd4] sm:$0xf]
      %v2945 = vld [vmem:[%s2900 + $0xdc] sm:$0xf]
      %v2946 = vld [vmem:[%s2900 + $0xe0] sm:$0xf]
      %v2947 = vld [vmem:[%s2900 + $0xe4] sm:$0xf]
      %v2948 = vld [vmem:[%s2900 + $0xe8] sm:$0xf]
      %v2949 = vld [vmem:[%s2900 + $0xf0] sm:$0xf]
      %v2950 = vld [vmem:[%s2900 + $0xf4] sm:$0xf]
      %v2951 = vld [vmem:[%s2900 + $0xf8] sm:$0xf]
      %v2952 = vld [vmem:[%s2900 + $0xfc] sm:$0xf]
      %v2953 = vld [vmem:[%s2900 + $0x104] sm:$0xf]
      %v2954 = vld [vmem:[%s2900 + $0x108] sm:$0xf]
      %v2955 = vld [vmem:[%s2900 + $0x10c] sm:$0xf]
      %v2956 = vld [vmem:[%s2900 + $0x110] sm:$0xf]
      %v2957 = vld [vmem:[%s2900 + $0x118] sm:$0xf]
      %v2958 = vld [vmem:[%s2900 + $0x11c] sm:$0xf]
      %v2959 = vld [vmem:[%s2900 + $0x120] sm:$0xf]
      %v2960 = vld [vmem:[%s2900 + $0x124] sm:$0xf]
      %v2961 = vld [vmem:[%s2900 + $0x12c] sm:$0xf]
      %v2962 = vld [vmem:[%s2900 + $0x130] sm:$0xf]
      %v2963 = vld [vmem:[%s2900 + $0x134] sm:$0xf]
      %v2964 = vld [vmem:[%s2900 + $0x138] sm:$0xf]
      %v2965 = vld [vmem:[%s2900 + $0x140] sm:$0xf]
      %v2966 = vld [vmem:[%s2900 + $0x144] sm:$0xf]
      %v2967 = vld [vmem:[%s2900 + $0x148] sm:$0xf]
      %v2968 = vld [vmem:[%s2900 + $0x14c] sm:$0xf]
      %v2969 = vld [vmem:[%s2900 + $0x154] sm:$0xf]
      %v2970 = vld [vmem:[%s2900 + $0x158] sm:$0xf]
      %v2971 = vld [vmem:[%s2900 + $0x15c] sm:$0xf]
      %v2972 = vld [vmem:[%s2900 + $0x160] sm:$0xf]
      %v2973 = vld [vmem:[%s2900 + $0x168] sm:$0xf]
      %v2974 = vld [vmem:[%s2900 + $0x16c] sm:$0xf]
      %v2975 = vld [vmem:[%s2900 + $0x170] sm:$0xf]
      %v2976 = vld [vmem:[%s2900 + $0x174] sm:$0xf]
      %v2977 = vld [vmem:[%s2900 + $0x17c] sm:$0xf]
      %v2978 = vld [vmem:[%s2900 + $0x180] sm:$0xf]
      %v2979 = vld [vmem:[%s2900 + $0x184] sm:$0xf]
      %v2980 = vld [vmem:[%s2900 + $0x188] sm:$0xf]
      %v2981 = vld [vmem:[%s2900 + $0x190] sm:$0xf]
      %v2982 = vld [vmem:[%s2900 + $0x194] sm:$0xf]
      %v2983 = vld [vmem:[%s2900 + $0x198] sm:$0xf]
      %v2984 = vld [vmem:[%s2900 + $0x19c] sm:$0xf]
      %v2985 = vld [vmem:[%s2900 + $0x1a4] sm:$0xf]
      %v2986 = vld [vmem:[%s2900 + $0x1a8] sm:$0xf]
      %v2987 = vld [vmem:[%s2900 + $0x1ac] sm:$0xf]
      %v2988 = vld [vmem:[%s2900 + $0x1b0] sm:$0xf]
      %v2989 = vld [vmem:[%s2900 + $0x1b8] sm:$0xf]
      %v2990 = vld [vmem:[%s2900 + $0x1bc] sm:$0xf]
      %v2991 = vld [vmem:[%s2900 + $0x1c0] sm:$0xf]
      %v2992 = vld [vmem:[%s2900 + $0x1c4] sm:$0xf]
      %v2993 = vld [vmem:[%s2900 + $0x1cc] sm:$0xf]
      %v2994 = vld [vmem:[%s2900 + $0x1d0] sm:$0xf]
      %v2995 = vld [vmem:[%s2900 + $0x1d4] sm:$0xf]
      %v2996 = vld [vmem:[%s2900 + $0x1d8] sm:$0xf]
      %s2997 = scalar_lea.vmem %s1, 8
      %v2998 = vld [vmem:[%s2997] sm:$0xf]
      %v3095 = vunpack.c.l.b16 %v2901
      %v3096 = vunpack.c.l.b16 %v2902
      %v3097 = vunpack.c.l.b16 %v2903
      %v3098 = vunpack.c.l.b16 %v2904
      %v3099 = vunpack.c.l.b16 %v2905
      %v3100 = vunpack.c.l.b16 %v2906
      %v3101 = vunpack.c.l.b16 %v2907
      %v3102 = vunpack.c.l.b16 %v2908
      %v3103 = vunpack.c.l.b16 %v2909
      %v3104 = vunpack.c.l.b16 %v2910
      %v3105 = vunpack.c.l.b16 %v2911
      %v3106 = vunpack.c.l.b16 %v2912
      %v3107 = vunpack.c.l.b16 %v2913
      %v3108 = vunpack.c.l.b16 %v2914
      %v3109 = vunpack.c.l.b16 %v2915
      %v3110 = vunpack.c.l.b16 %v2916
      %v3111 = vunpack.c.l.b16 %v2917
      %v3112 = vunpack.c.l.b16 %v2918
      %v3113 = vunpack.c.l.b16 %v2919
      %v3114 = vunpack.c.l.b16 %v2920
      %v3115 = vunpack.c.l.b16 %v2921
      %v3116 = vunpack.c.l.b16 %v2922
      %v3117 = vunpack.c.l.b16 %v2923
      %v3118 = vunpack.c.l.b16 %v2924
      %v3119 = vunpack.c.l.b16 %v2925
      %v3120 = vunpack.c.l.b16 %v2926
      %v3121 = vunpack.c.l.b16 %v2927
      %v3122 = vunpack.c.l.b16 %v2928
      %v3123 = vunpack.c.l.b16 %v2929
      %v3124 = vunpack.c.l.b16 %v2930
      %v3125 = vunpack.c.l.b16 %v2931
      %v3126 = vunpack.c.l.b16 %v2932
      %v3127 = vunpack.c.l.b16 %v2933
      %v3128 = vunpack.c.l.b16 %v2934
      %v3129 = vunpack.c.l.b16 %v2935
      %v3130 = vunpack.c.l.b16 %v2936
      %v3131 = vunpack.c.l.b16 %v2937
      %v3132 = vunpack.c.l.b16 %v2938
      %v3133 = vunpack.c.l.b16 %v2939
      %v3134 = vunpack.c.l.b16 %v2940
      %v3135 = vunpack.c.l.b16 %v2941
      %v3136 = vunpack.c.l.b16 %v2942
      %v3137 = vunpack.c.l.b16 %v2943
      %v3138 = vunpack.c.l.b16 %v2944
      %v3139 = vunpack.c.l.b16 %v2945
      %v3140 = vunpack.c.l.b16 %v2946
      %v3141 = vunpack.c.l.b16 %v2947
      %v3142 = vunpack.c.l.b16 %v2948
      %v3143 = vunpack.c.l.b16 %v2949
      %v3144 = vunpack.c.l.b16 %v2950
      %v3145 = vunpack.c.l.b16 %v2951
      %v3146 = vunpack.c.l.b16 %v2952
      %v3147 = vunpack.c.l.b16 %v2953
      %v3148 = vunpack.c.l.b16 %v2954
      %v3149 = vunpack.c.l.b16 %v2955
      %v3150 = vunpack.c.l.b16 %v2956
      %v3151 = vunpack.c.l.b16 %v2957
      %v3152 = vunpack.c.l.b16 %v2958
      %v3153 = vunpack.c.l.b16 %v2959
      %v3154 = vunpack.c.l.b16 %v2960
      %v3155 = vunpack.c.l.b16 %v2961
      %v3156 = vunpack.c.l.b16 %v2962
      %v3157 = vunpack.c.l.b16 %v2963
      %v3158 = vunpack.c.l.b16 %v2964
      %v3159 = vunpack.c.l.b16 %v2965
      %v3160 = vunpack.c.l.b16 %v2966
      %v3161 = vunpack.c.l.b16 %v2967
      %v3162 = vunpack.c.l.b16 %v2968
      %v3163 = vunpack.c.l.b16 %v2969
      %v3164 = vunpack.c.l.b16 %v2970
      %v3165 = vunpack.c.l.b16 %v2971
      %v3166 = vunpack.c.l.b16 %v2972
      %v3167 = vunpack.c.l.b16 %v2973
      %v3168 = vunpack.c.l.b16 %v2974
      %v3169 = vunpack.c.l.b16 %v2975
      %v3170 = vunpack.c.l.b16 %v2976
      %v3171 = vunpack.c.l.b16 %v2977
      %v3172 = vunpack.c.l.b16 %v2978
      %v3173 = vunpack.c.l.b16 %v2979
      %v3174 = vunpack.c.l.b16 %v2980
      %v3175 = vunpack.c.l.b16 %v2981
      %v3176 = vunpack.c.l.b16 %v2982
      %v3177 = vunpack.c.l.b16 %v2983
      %v3178 = vunpack.c.l.b16 %v2984
      %v3179 = vunpack.c.l.b16 %v2985
      %v3180 = vunpack.c.l.b16 %v2986
      %v3181 = vunpack.c.l.b16 %v2987
      %v3182 = vunpack.c.l.b16 %v2988
      %v3183 = vunpack.c.l.b16 %v2989
      %v3184 = vunpack.c.l.b16 %v2990
      %v3185 = vunpack.c.l.b16 %v2991
      %v3186 = vunpack.c.l.b16 %v2992
      %v3187 = vunpack.c.l.b16 %v2993
      %v3188 = vunpack.c.l.b16 %v2994
      %v3189 = vunpack.c.l.b16 %v2995
      %v3190 = vunpack.c.l.b16 %v2996
      %v3191 = vpack.c.b16 %v3096, %v3095
      %v3192 = vpack.c.b16 %v3098, %v3097
      %v3193 = vpack.c.b16 %v3100, %v3099
      %v3194 = vpack.c.b16 %v3102, %v3101
      %v3195 = vpack.c.b16 %v3104, %v3103
      %v3196 = vpack.c.b16 %v3106, %v3105
      %v3197 = vpack.c.b16 %v3108, %v3107
      %v3198 = vpack.c.b16 %v3110, %v3109
      %v3199 = vpack.c.b16 %v3112, %v3111
      %v3200 = vpack.c.b16 %v3114, %v3113
      %v3201 = vpack.c.b16 %v3116, %v3115
      %v3202 = vpack.c.b16 %v3118, %v3117
      %v3203 = vpack.c.b16 %v3120, %v3119
      %v3204 = vpack.c.b16 %v3122, %v3121
      %v3205 = vpack.c.b16 %v3124, %v3123
      %v3206 = vpack.c.b16 %v3126, %v3125
      %v3207 = vpack.c.b16 %v3128, %v3127
      %v3208 = vpack.c.b16 %v3130, %v3129
      %v3209 = vpack.c.b16 %v3132, %v3131
      %v3210 = vpack.c.b16 %v3134, %v3133
      %v3211 = vpack.c.b16 %v3136, %v3135
      %v3212 = vpack.c.b16 %v3138, %v3137
      %v3213 = vpack.c.b16 %v3140, %v3139
      %v3214 = vpack.c.b16 %v3142, %v3141
      %v3215 = vpack.c.b16 %v3144, %v3143
      %v3216 = vpack.c.b16 %v3146, %v3145
      %v3217 = vpack.c.b16 %v3148, %v3147
      %v3218 = vpack.c.b16 %v3150, %v3149
      %v3219 = vpack.c.b16 %v3152, %v3151
      %v3220 = vpack.c.b16 %v3154, %v3153
      %v3221 = vpack.c.b16 %v3156, %v3155
      %v3222 = vpack.c.b16 %v3158, %v3157
      %v3223 = vpack.c.b16 %v3160, %v3159
      %v3224 = vpack.c.b16 %v3162, %v3161
      %v3225 = vpack.c.b16 %v3164, %v3163
      %v3226 = vpack.c.b16 %v3166, %v3165
      %v3227 = vpack.c.b16 %v3168, %v3167
      %v3228 = vpack.c.b16 %v3170, %v3169
      %v3229 = vpack.c.b16 %v3172, %v3171
      %v3230 = vpack.c.b16 %v3174, %v3173
      %v3231 = vpack.c.b16 %v3176, %v3175
      %v3232 = vpack.c.b16 %v3178, %v3177
      %v3233 = vpack.c.b16 %v3180, %v3179
      %v3234 = vpack.c.b16 %v3182, %v3181
      %v3235 = vpack.c.b16 %v3184, %v3183
      %v3236 = vpack.c.b16 %v3186, %v3185
      %v3237 = vpack.c.b16 %v3188, %v3187
      %v3238 = vpack.c.b16 %v3190, %v3189
      %v3240 = vsel %vm1527, %v3191, 0
      %v3243 = vsel %vm1527, %v3192, 0
      %v3246 = vsel %vm1527, %v3193, 0
      %v3249 = vsel %vm1527, %v3194, 0
      %v3252 = vsel %vm1527, %v3195, 0
      %v3255 = vsel %vm1527, %v3196, 0
      %v3258 = vsel %vm1527, %v3197, 0
      %v3261 = vsel %vm1527, %v3198, 0
      %v3264 = vsel %vm1527, %v3199, 0
      %v3267 = vsel %vm1527, %v3200, 0
      %v3270 = vsel %vm1527, %v3201, 0
      %v3273 = vsel %vm1527, %v3202, 0
      %v3276 = vsel %vm1527, %v3203, 0
      %v3279 = vsel %vm1527, %v3204, 0
      %v3282 = vsel %vm1527, %v3205, 0
      %v3285 = vsel %vm1527, %v3206, 0
      %v3288 = vsel %vm1527, %v3207, 0
      %v3291 = vsel %vm1527, %v3208, 0
      %v3294 = vsel %vm1527, %v3209, 0
      %v3297 = vsel %vm1527, %v3210, 0
      %v3300 = vsel %vm1527, %v3211, 0
      %v3303 = vsel %vm1527, %v3212, 0
      %v3306 = vsel %vm1527, %v3213, 0
      %v3309 = vsel %vm1527, %v3214, 0
      %v3312 = vsel %vm1527, %v3215, 0
      %v3315 = vsel %vm1527, %v3216, 0
      %v3318 = vsel %vm1527, %v3217, 0
      %v3321 = vsel %vm1527, %v3218, 0
      %v3324 = vsel %vm1527, %v3219, 0
      %v3327 = vsel %vm1527, %v3220, 0
      %v3330 = vsel %vm1527, %v3221, 0
      %v3333 = vsel %vm1527, %v3222, 0
      %v3336 = vsel %vm1527, %v3223, 0
      %v3339 = vsel %vm1527, %v3224, 0
      %v3342 = vsel %vm1527, %v3225, 0
      %v3345 = vsel %vm1527, %v3226, 0
      %v3348 = vsel %vm1527, %v3227, 0
      %v3351 = vsel %vm1527, %v3228, 0
      %v3354 = vsel %vm1527, %v3229, 0
      %v3357 = vsel %vm1527, %v3230, 0
      %v3360 = vsel %vm1527, %v3231, 0
      %v3363 = vsel %vm1527, %v3232, 0
      %v3366 = vsel %vm1527, %v3233, 0
      %v3369 = vsel %vm1527, %v3234, 0
      %v3372 = vsel %vm1527, %v3235, 0
      %v3375 = vsel %vm1527, %v3236, 0
      %v3378 = vsel %vm1527, %v3237, 0
      %v3381 = vsel %vm1527, %v3238, 0
      %v3384 = vsel %vm1672, %v2998, 0
      %3386 = vmatprep.subr.bf16.mxu0 0
      %3387 = vmatpush1.bf16.msra.mxu0 %v3384
      %3388 = vmatprep.subr.bf16.mxu0 0
      %3389 = vmatpush1.bf16.msra.mxu0 0
      %3390 = vmatprep.subr.bf16.mxu0 0
      %3391 = vmatpush1.bf16.msra.mxu0 0
      %3392 = vmatprep.subr.bf16.mxu0 0
      %3393 = vmatpush1.bf16.msra.mxu0 0
      %3394 = vmatprep.subr.bf16.mxu0 0
      %3395 = vmatpush1.bf16.msra.mxu0 0
      %3396 = vmatprep.subr.bf16.mxu0 0
      %3397 = vmatpush1.bf16.msra.mxu0 0
      %3398 = vmatprep.subr.bf16.mxu0 0
      %3399 = vmatpush1.bf16.msra.mxu0 0
      %3400 = vmatprep.subr.bf16.mxu0 0
      %3401 = vmatpush1.bf16.msra.mxu0 0
      %3402 = vmatprep.subr.bf16.mxu0 0
      %3403 = vmatpush1.bf16.msra.mxu0 0
      %3404 = vmatprep.subr.bf16.mxu0 0
      %3405 = vmatpush1.bf16.msra.mxu0 0
      %3406 = vmatprep.subr.bf16.mxu0 0
      %3407 = vmatpush1.bf16.msra.mxu0 0
      %3408 = vmatprep.subr.bf16.mxu0 0
      %3409 = vmatpush1.bf16.msra.mxu0 0
      %3410 = vmatprep.subr.bf16.mxu0 0
      %3411 = vmatpush1.bf16.msra.mxu0 0
      %3412 = vmatprep.subr.bf16.mxu0 0
      %3413 = vmatpush1.bf16.msra.mxu0 0
      %3414 = vmatprep.subr.bf16.mxu0 0
      %3415 = vmatpush1.bf16.msra.mxu0 0
      %3416 = vmatprep.subr.bf16.mxu0 0
      %3417 = vmatpush1.bf16.msra.mxu0 0
      %3418 = vmatprep.mubr.bf16.mxu0 0
      %3419 = vmatmul.mubr.bf16.gmra.mrb[0].mxu0 %v3240
      %v3420 = vpop.f32.mrb[0].mxu0
      %v3421 = vadd.f32 0.0, %v3420
      %v3422 = vpop.f32.mrb[0].mxu0
      %v3423 = vpop.f32.mrb[0].mxu0
      %v3424 = vadd.f32 0.0, %v3423
      %v3425 = vpop.f32.mrb[0].mxu0
      %3426 = vmatprep.mubr.bf16.mxu0 0
      %3427 = vmatmul.mubr.bf16.gmra.mrb[0].mxu0 %v3243
      %v3428 = vpop.f32.mrb[0].mxu0
      %v3429 = vadd.f32 0.0, %v3428
      %v3430 = vpop.f32.mrb[0].mxu0
      %v3431 = vpop.f32.mrb[0].mxu0
      %v3432 = vadd.f32 0.0, %v3431
      %v3433 = vpop.f32.mrb[0].mxu0
      %3434 = vmatprep.mubr.bf16.mxu0 0
      %3435 = vmatmul.mubr.bf16.gmra.mrb[0].mxu0 %v3246
      %v3436 = vpop.f32.mrb[0].mxu0
      %v3437 = vadd.f32 0.0, %v3436
      %v3438 = vpop.f32.mrb[0].mxu0
      %v3439 = vpop.f32.mrb[0].mxu0
      %v3440 = vadd.f32 0.0, %v3439
      %v3441 = vpop.f32.mrb[0].mxu0
      %3442 = vmatprep.mubr.bf16.mxu0 0
      %3443 = vmatmul.mubr.bf16.gmra.mrb[0].mxu0 %v3249
      %v3444 = vpop.f32.mrb[0].mxu0
      %v3445 = vadd.f32 0.0, %v3444
      %v3446 = vpop.f32.mrb[0].mxu0
      %v3447 = vpop.f32.mrb[0].mxu0
      %v3448 = vadd.f32 0.0, %v3447
      %v3449 = vpop.f32.mrb[0].mxu0
      %3450 = vmatprep.mubr.bf16.mxu0 0
      %3451 = vmatmul.mubr.bf16.gmra.mrb[0].mxu0 %v3252
      %v3452 = vpop.f32.mrb[0].mxu0
      %v3453 = vadd.f32 0.0, %v3452
      %v3454 = vpop.f32.mrb[0].mxu0
      %v3455 = vpop.f32.mrb[0].mxu0
      %v3456 = vadd.f32 0.0, %v3455
      %v3457 = vpop.f32.mrb[0].mxu0
      %3458 = vmatprep.mubr.bf16.mxu0 0
      %3459 = vmatmul.mubr.bf16.gmra.mrb[0].mxu0 %v3255
      %v3460 = vpop.f32.mrb[0].mxu0
      %v3461 = vadd.f32 0.0, %v3460
      %v3462 = vpop.f32.mrb[0].mxu0
      %v3463 = vpop.f32.mrb[0].mxu0
      %v3464 = vadd.f32 0.0, %v3463
      %v3465 = vpop.f32.mrb[0].mxu0
      %3466 = vmatprep.mubr.bf16.mxu0 0
      %3467 = vmatmul.mubr.bf16.gmra.mrb[0].mxu0 %v3258
      %v3468 = vpop.f32.mrb[0].mxu0
      %v3469 = vadd.f32 0.0, %v3468
      %v3470 = vpop.f32.mrb[0].mxu0
      %v3471 = vpop.f32.mrb[0].mxu0
      %v3472 = vadd.f32 0.0, %v3471
      %v3473 = vpop.f32.mrb[0].mxu0
      %3474 = vmatprep.mubr.bf16.mxu0 0
      %3475 = vmatmul.mubr.bf16.gmra.mrb[0].mxu0 %v3261
      %v3476 = vpop.f32.mrb[0].mxu0
      %v3477 = vadd.f32 0.0, %v3476
      %v3478 = vpop.f32.mrb[0].mxu0
      %v3479 = vpop.f32.mrb[0].mxu0
      %v3480 = vadd.f32 0.0, %v3479
      %v3481 = vpop.f32.mrb[0].mxu0
      %3482 = vmatprep.mubr.bf16.mxu0 0
      %3483 = vmatmul.mubr.bf16.gmra.mrb[0].mxu0 %v3264
      %v3484 = vpop.f32.mrb[0].mxu0
      %v3485 = vadd.f32 0.0, %v3484
      %v3486 = vpop.f32.mrb[0].mxu0
      %v3487 = vpop.f32.mrb[0].mxu0
      %v3488 = vadd.f32 0.0, %v3487
      %v3489 = vpop.f32.mrb[0].mxu0
      %3490 = vmatprep.mubr.bf16.mxu0 0
      %3491 = vmatmul.mubr.bf16.gmra.mrb[0].mxu0 %v3267
      %v3492 = vpop.f32.mrb[0].mxu0
      %v3493 = vadd.f32 0.0, %v3492
      %v3494 = vpop.f32.mrb[0].mxu0
      %v3495 = vpop.f32.mrb[0].mxu0
      %v3496 = vadd.f32 0.0, %v3495
      %v3497 = vpop.f32.mrb[0].mxu0
      %3498 = vmatprep.mubr.bf16.mxu0 0
      %3499 = vmatmul.mubr.bf16.gmra.mrb[0].mxu0 %v3270
      %v3500 = vpop.f32.mrb[0].mxu0
      %v3501 = vadd.f32 0.0, %v3500
      %v3502 = vpop.f32.mrb[0].mxu0
      %v3503 = vpop.f32.mrb[0].mxu0
      %v3504 = vadd.f32 0.0, %v3503
      %v3505 = vpop.f32.mrb[0].mxu0
      %3506 = vmatprep.mubr.bf16.mxu0 0
      %3507 = vmatmul.mubr.bf16.gmra.mrb[0].mxu0 %v3273
      %v3508 = vpop.f32.mrb[0].mxu0
      %v3509 = vadd.f32 0.0, %v3508
      %v3510 = vpop.f32.mrb[0].mxu0
      %v3511 = vpop.f32.mrb[0].mxu0
      %v3512 = vadd.f32 0.0, %v3511
      %v3513 = vpop.f32.mrb[0].mxu0
      %3514 = vmatprep.mubr.bf16.mxu0 0
      %3515 = vmatmul.mubr.bf16.gmra.mrb[0].mxu0 %v3276
      %v3516 = vpop.f32.mrb[0].mxu0
      %v3517 = vadd.f32 0.0, %v3516
      %v3518 = vpop.f32.mrb[0].mxu0
      %v3519 = vpop.f32.mrb[0].mxu0
      %v3520 = vadd.f32 0.0, %v3519
      %v3521 = vpop.f32.mrb[0].mxu0
      %3522 = vmatprep.mubr.bf16.mxu0 0
      %3523 = vmatmul.mubr.bf16.gmra.mrb[0].mxu0 %v3279
      %v3524 = vpop.f32.mrb[0].mxu0
      %v3525 = vadd.f32 0.0, %v3524
      %v3526 = vpop.f32.mrb[0].mxu0
      %v3527 = vpop.f32.mrb[0].mxu0
      %v3528 = vadd.f32 0.0, %v3527
      %v3529 = vpop.f32.mrb[0].mxu0
      %3530 = vmatprep.mubr.bf16.mxu0 0
      %3531 = vmatmul.mubr.bf16.gmra.mrb[0].mxu0 %v3282
      %v3532 = vpop.f32.mrb[0].mxu0
      %v3533 = vadd.f32 0.0, %v3532
      %v3534 = vpop.f32.mrb[0].mxu0
      %v3535 = vpop.f32.mrb[0].mxu0
      %v3536 = vadd.f32 0.0, %v3535
      %v3537 = vpop.f32.mrb[0].mxu0
      %3538 = vmatprep.mubr.bf16.mxu0 0
      %3539 = vmatmul.mubr.bf16.gmra.mrb[0].mxu0 %v3285
      %v3540 = vpop.f32.mrb[0].mxu0
      %v3541 = vadd.f32 0.0, %v3540
      %v3542 = vpop.f32.mrb[0].mxu0
      %v3543 = vpop.f32.mrb[0].mxu0
      %v3544 = vadd.f32 0.0, %v3543
      %v3545 = vpop.f32.mrb[0].mxu0
      %3546 = vmatprep.mubr.bf16.mxu0 0
      %3547 = vmatmul.mubr.bf16.gmra.mrb[0].mxu0 %v3288
      %v3548 = vpop.f32.mrb[0].mxu0
      %v3549 = vadd.f32 0.0, %v3548
      %v3550 = vpop.f32.mrb[0].mxu0
      %v3551 = vpop.f32.mrb[0].mxu0
      %v3552 = vadd.f32 0.0, %v3551
      %v3553 = vpop.f32.mrb[0].mxu0
      %3554 = vmatprep.mubr.bf16.mxu0 0
      %3555 = vmatmul.mubr.bf16.gmra.mrb[0].mxu0 %v3291
      %v3556 = vpop.f32.mrb[0].mxu0
      %v3557 = vadd.f32 0.0, %v3556
      %v3558 = vpop.f32.mrb[0].mxu0
      %v3559 = vpop.f32.mrb[0].mxu0
      %v3560 = vadd.f32 0.0, %v3559
      %v3561 = vpop.f32.mrb[0].mxu0
      %3562 = vmatprep.mubr.bf16.mxu0 0
      %3563 = vmatmul.mubr.bf16.gmra.mrb[0].mxu0 %v3294
      %v3564 = vpop.f32.mrb[0].mxu0
      %v3565 = vadd.f32 0.0, %v3564
      %v3566 = vpop.f32.mrb[0].mxu0
      %v3567 = vpop.f32.mrb[0].mxu0
      %v3568 = vadd.f32 0.0, %v3567
      %v3569 = vpop.f32.mrb[0].mxu0
      %3570 = vmatprep.mubr.bf16.mxu0 0
      %3571 = vmatmul.mubr.bf16.gmra.mrb[0].mxu0 %v3297
      %v3572 = vpop.f32.mrb[0].mxu0
      %v3573 = vadd.f32 0.0, %v3572
      %v3574 = vpop.f32.mrb[0].mxu0
      %v3575 = vpop.f32.mrb[0].mxu0
      %v3576 = vadd.f32 0.0, %v3575
      %v3577 = vpop.f32.mrb[0].mxu0
      %3578 = vmatprep.mubr.bf16.mxu0 0
      %3579 = vmatmul.mubr.bf16.gmra.mrb[0].mxu0 %v3300
      %v3580 = vpop.f32.mrb[0].mxu0
      %v3581 = vadd.f32 0.0, %v3580
      %v3582 = vpop.f32.mrb[0].mxu0
      %v3583 = vpop.f32.mrb[0].mxu0
      %v3584 = vadd.f32 0.0, %v3583
      %v3585 = vpop.f32.mrb[0].mxu0
      %3586 = vmatprep.mubr.bf16.mxu0 0
      %3587 = vmatmul.mubr.bf16.gmra.mrb[0].mxu0 %v3303
      %v3588 = vpop.f32.mrb[0].mxu0
      %v3589 = vadd.f32 0.0, %v3588
      %v3590 = vpop.f32.mrb[0].mxu0
      %v3591 = vpop.f32.mrb[0].mxu0
      %v3592 = vadd.f32 0.0, %v3591
      %v3593 = vpop.f32.mrb[0].mxu0
      %3594 = vmatprep.mubr.bf16.mxu0 0
      %3595 = vmatmul.mubr.bf16.gmra.mrb[0].mxu0 %v3306
      %v3596 = vpop.f32.mrb[0].mxu0
      %v3597 = vadd.f32 0.0, %v3596
      %v3598 = vpop.f32.mrb[0].mxu0
      %v3599 = vpop.f32.mrb[0].mxu0
      %v3600 = vadd.f32 0.0, %v3599
      %v3601 = vpop.f32.mrb[0].mxu0
      %3602 = vmatprep.mubr.bf16.mxu0 0
      %3603 = vmatmul.mubr.bf16.gmra.mrb[0].mxu0 %v3309
      %v3604 = vpop.f32.mrb[0].mxu0
      %v3605 = vadd.f32 0.0, %v3604
      %v3606 = vpop.f32.mrb[0].mxu0
      %v3607 = vpop.f32.mrb[0].mxu0
      %v3608 = vadd.f32 0.0, %v3607
      %v3609 = vpop.f32.mrb[0].mxu0
      %3610 = vmatprep.mubr.bf16.mxu0 0
      %3611 = vmatmul.mubr.bf16.gmra.mrb[0].mxu0 %v3312
      %v3612 = vpop.f32.mrb[0].mxu0
      %v3613 = vadd.f32 0.0, %v3612
      %v3614 = vpop.f32.mrb[0].mxu0
      %v3615 = vpop.f32.mrb[0].mxu0
      %v3616 = vadd.f32 0.0, %v3615
      %v3617 = vpop.f32.mrb[0].mxu0
      %3618 = vmatprep.mubr.bf16.mxu0 0
      %3619 = vmatmul.mubr.bf16.gmra.mrb[0].mxu0 %v3315
      %v3620 = vpop.f32.mrb[0].mxu0
      %v3621 = vadd.f32 0.0, %v3620
      %v3622 = vpop.f32.mrb[0].mxu0
      %v3623 = vpop.f32.mrb[0].mxu0
      %v3624 = vadd.f32 0.0, %v3623
      %v3625 = vpop.f32.mrb[0].mxu0
      %3626 = vmatprep.mubr.bf16.mxu0 0
      %3627 = vmatmul.mubr.bf16.gmra.mrb[0].mxu0 %v3318
      %v3628 = vpop.f32.mrb[0].mxu0
      %v3629 = vadd.f32 0.0, %v3628
      %v3630 = vpop.f32.mrb[0].mxu0
      %v3631 = vpop.f32.mrb[0].mxu0
      %v3632 = vadd.f32 0.0, %v3631
      %v3633 = vpop.f32.mrb[0].mxu0
      %3634 = vmatprep.mubr.bf16.mxu0 0
      %3635 = vmatmul.mubr.bf16.gmra.mrb[0].mxu0 %v3321
      %v3636 = vpop.f32.mrb[0].mxu0
      %v3637 = vadd.f32 0.0, %v3636
      %v3638 = vpop.f32.mrb[0].mxu0
      %v3639 = vpop.f32.mrb[0].mxu0
      %v3640 = vadd.f32 0.0, %v3639
      %v3641 = vpop.f32.mrb[0].mxu0
      %3642 = vmatprep.mubr.bf16.mxu0 0
      %3643 = vmatmul.mubr.bf16.gmra.mrb[0].mxu0 %v3324
      %v3644 = vpop.f32.mrb[0].mxu0
      %v3645 = vadd.f32 0.0, %v3644
      %v3646 = vpop.f32.mrb[0].mxu0
      %v3647 = vpop.f32.mrb[0].mxu0
      %v3648 = vadd.f32 0.0, %v3647
      %v3649 = vpop.f32.mrb[0].mxu0
      %3650 = vmatprep.mubr.bf16.mxu0 0
      %3651 = vmatmul.mubr.bf16.gmra.mrb[0].mxu0 %v3327
      %v3652 = vpop.f32.mrb[0].mxu0
      %v3653 = vadd.f32 0.0, %v3652
      %v3654 = vpop.f32.mrb[0].mxu0
      %v3655 = vpop.f32.mrb[0].mxu0
      %v3656 = vadd.f32 0.0, %v3655
      %v3657 = vpop.f32.mrb[0].mxu0
      %3658 = vmatprep.mubr.bf16.mxu0 0
      %3659 = vmatmul.mubr.bf16.gmra.mrb[0].mxu0 %v3330
      %v3660 = vpop.f32.mrb[0].mxu0
      %v3661 = vadd.f32 0.0, %v3660
      %v3662 = vpop.f32.mrb[0].mxu0
      %v3663 = vpop.f32.mrb[0].mxu0
      %v3664 = vadd.f32 0.0, %v3663
      %v3665 = vpop.f32.mrb[0].mxu0
      %3666 = vmatprep.mubr.bf16.mxu0 0
      %3667 = vmatmul.mubr.bf16.gmra.mrb[0].mxu0 %v3333
      %v3668 = vpop.f32.mrb[0].mxu0
      %v3669 = vadd.f32 0.0, %v3668
      %v3670 = vpop.f32.mrb[0].mxu0
      %v3671 = vpop.f32.mrb[0].mxu0
      %v3672 = vadd.f32 0.0, %v3671
      %v3673 = vpop.f32.mrb[0].mxu0
      %3674 = vmatprep.mubr.bf16.mxu0 0
      %3675 = vmatmul.mubr.bf16.gmra.mrb[0].mxu0 %v3336
      %v3676 = vpop.f32.mrb[0].mxu0
      %v3677 = vadd.f32 0.0, %v3676
      %v3678 = vpop.f32.mrb[0].mxu0
      %v3679 = vpop.f32.mrb[0].mxu0
      %v3680 = vadd.f32 0.0, %v3679
      %v3681 = vpop.f32.mrb[0].mxu0
      %3682 = vmatprep.mubr.bf16.mxu0 0
      %3683 = vmatmul.mubr.bf16.gmra.mrb[0].mxu0 %v3339
      %v3684 = vpop.f32.mrb[0].mxu0
      %v3685 = vadd.f32 0.0, %v3684
      %v3686 = vpop.f32.mrb[0].mxu0
      %v3687 = vpop.f32.mrb[0].mxu0
      %v3688 = vadd.f32 0.0, %v3687
      %v3689 = vpop.f32.mrb[0].mxu0
      %3690 = vmatprep.mubr.bf16.mxu0 0
      %3691 = vmatmul.mubr.bf16.gmra.mrb[0].mxu0 %v3342
      %v3692 = vpop.f32.mrb[0].mxu0
      %v3693 = vadd.f32 0.0, %v3692
      %v3694 = vpop.f32.mrb[0].mxu0
      %v3695 = vpop.f32.mrb[0].mxu0
      %v3696 = vadd.f32 0.0, %v3695
      %v3697 = vpop.f32.mrb[0].mxu0
      %3698 = vmatprep.mubr.bf16.mxu0 0
      %3699 = vmatmul.mubr.bf16.gmra.mrb[0].mxu0 %v3345
      %v3700 = vpop.f32.mrb[0].mxu0
      %v3701 = vadd.f32 0.0, %v3700
      %v3702 = vpop.f32.mrb[0].mxu0
      %v3703 = vpop.f32.mrb[0].mxu0
      %v3704 = vadd.f32 0.0, %v3703
      %v3705 = vpop.f32.mrb[0].mxu0
      %3706 = vmatprep.mubr.bf16.mxu0 0
      %3707 = vmatmul.mubr.bf16.gmra.mrb[0].mxu0 %v3348
      %v3708 = vpop.f32.mrb[0].mxu0
      %v3709 = vadd.f32 0.0, %v3708
      %v3710 = vpop.f32.mrb[0].mxu0
      %v3711 = vpop.f32.mrb[0].mxu0
      %v3712 = vadd.f32 0.0, %v3711
      %v3713 = vpop.f32.mrb[0].mxu0
      %3714 = vmatprep.mubr.bf16.mxu0 0
      %3715 = vmatmul.mubr.bf16.gmra.mrb[0].mxu0 %v3351
      %v3716 = vpop.f32.mrb[0].mxu0
      %v3717 = vadd.f32 0.0, %v3716
      %v3718 = vpop.f32.mrb[0].mxu0
      %v3719 = vpop.f32.mrb[0].mxu0
      %v3720 = vadd.f32 0.0, %v3719
      %v3721 = vpop.f32.mrb[0].mxu0
      %3722 = vmatprep.mubr.bf16.mxu0 0
      %3723 = vmatmul.mubr.bf16.gmra.mrb[0].mxu0 %v3354
      %v3724 = vpop.f32.mrb[0].mxu0
      %v3725 = vadd.f32 0.0, %v3724
      %v3726 = vpop.f32.mrb[0].mxu0
      %v3727 = vpop.f32.mrb[0].mxu0
      %v3728 = vadd.f32 0.0, %v3727
      %v3729 = vpop.f32.mrb[0].mxu0
      %3730 = vmatprep.mubr.bf16.mxu0 0
      %3731 = vmatmul.mubr.bf16.gmra.mrb[0].mxu0 %v3357
      %v3732 = vpop.f32.mrb[0].mxu0
      %v3733 = vadd.f32 0.0, %v3732
      %v3734 = vpop.f32.mrb[0].mxu0
      %v3735 = vpop.f32.mrb[0].mxu0
      %v3736 = vadd.f32 0.0, %v3735
      %v3737 = vpop.f32.mrb[0].mxu0
      %3738 = vmatprep.mubr.bf16.mxu0 0
      %3739 = vmatmul.mubr.bf16.gmra.mrb[0].mxu0 %v3360
      %v3740 = vpop.f32.mrb[0].mxu0
      %v3741 = vadd.f32 0.0, %v3740
      %v3742 = vpop.f32.mrb[0].mxu0
      %v3743 = vpop.f32.mrb[0].mxu0
      %v3744 = vadd.f32 0.0, %v3743
      %v3745 = vpop.f32.mrb[0].mxu0
      %3746 = vmatprep.mubr.bf16.mxu0 0
      %3747 = vmatmul.mubr.bf16.gmra.mrb[0].mxu0 %v3363
      %v3748 = vpop.f32.mrb[0].mxu0
      %v3749 = vadd.f32 0.0, %v3748
      %v3750 = vpop.f32.mrb[0].mxu0
      %v3751 = vpop.f32.mrb[0].mxu0
      %v3752 = vadd.f32 0.0, %v3751
      %v3753 = vpop.f32.mrb[0].mxu0
      %3754 = vmatprep.mubr.bf16.mxu0 0
      %3755 = vmatmul.mubr.bf16.gmra.mrb[0].mxu0 %v3366
      %v3756 = vpop.f32.mrb[0].mxu0
      %v3757 = vadd.f32 0.0, %v3756
      %v3758 = vpop.f32.mrb[0].mxu0
      %v3759 = vpop.f32.mrb[0].mxu0
      %v3760 = vadd.f32 0.0, %v3759
      %v3761 = vpop.f32.mrb[0].mxu0
      %3762 = vmatprep.mubr.bf16.mxu0 0
      %3763 = vmatmul.mubr.bf16.gmra.mrb[0].mxu0 %v3369
      %v3764 = vpop.f32.mrb[0].mxu0
      %v3765 = vadd.f32 0.0, %v3764
      %v3766 = vpop.f32.mrb[0].mxu0
      %v3767 = vpop.f32.mrb[0].mxu0
      %v3768 = vadd.f32 0.0, %v3767
      %v3769 = vpop.f32.mrb[0].mxu0
      %3770 = vmatprep.mubr.bf16.mxu0 0
      %3771 = vmatmul.mubr.bf16.gmra.mrb[0].mxu0 %v3372
      %v3772 = vpop.f32.mrb[0].mxu0
      %v3773 = vadd.f32 0.0, %v3772
      %v3774 = vpop.f32.mrb[0].mxu0
      %v3775 = vpop.f32.mrb[0].mxu0
      %v3776 = vadd.f32 0.0, %v3775
      %v3777 = vpop.f32.mrb[0].mxu0
      %3778 = vmatprep.mubr.bf16.mxu0 0
      %3779 = vmatmul.mubr.bf16.gmra.mrb[0].mxu0 %v3375
      %v3780 = vpop.f32.mrb[0].mxu0
      %v3781 = vadd.f32 0.0, %v3780
      %v3782 = vpop.f32.mrb[0].mxu0
      %v3783 = vpop.f32.mrb[0].mxu0
      %v3784 = vadd.f32 0.0, %v3783
      %v3785 = vpop.f32.mrb[0].mxu0
      %3786 = vmatprep.mubr.bf16.mxu0 0
      %3787 = vmatmul.mubr.bf16.gmra.mrb[0].mxu0 %v3378
      %v3788 = vpop.f32.mrb[0].mxu0
      %v3789 = vadd.f32 0.0, %v3788
      %v3790 = vpop.f32.mrb[0].mxu0
      %v3791 = vpop.f32.mrb[0].mxu0
      %v3792 = vadd.f32 0.0, %v3791
      %v3793 = vpop.f32.mrb[0].mxu0
      %3794 = vmatprep.mubr.bf16.mxu0 0
      %3795 = vmatmul.mubr.bf16.gmra.mrb[0].mxu0 %v3381
      %v3796 = vpop.f32.mrb[0].mxu0
      %v3797 = vadd.f32 0.0, %v3796
      %v3798 = vpop.f32.mrb[0].mxu0
      %v3799 = vpop.f32.mrb[0].mxu0
      %v3800 = vadd.f32 0.0, %v3799
      %v3801 = vpop.f32.mrb[0].mxu0
      %3802 = vdwg.mxu0
      %v3803 = vadd.f32 %v2515, %v3421
      %v3804 = vadd.f32 %v2518, %v3424
      %v3805 = vadd.f32 %v2523, %v3429
      %v3806 = vadd.f32 %v2526, %v3432
      %v3807 = vadd.f32 %v2531, %v3437
      %v3808 = vadd.f32 %v2534, %v3440
      %v3809 = vadd.f32 %v2539, %v3445
      %v3810 = vadd.f32 %v2542, %v3448
      %v3811 = vadd.f32 %v2547, %v3453
      %v3812 = vadd.f32 %v2550, %v3456
      %v3813 = vadd.f32 %v2555, %v3461
      %v3814 = vadd.f32 %v2558, %v3464
      %v3815 = vadd.f32 %v2563, %v3469
      %v3816 = vadd.f32 %v2566, %v3472
      %v3817 = vadd.f32 %v2571, %v3477
      %v3818 = vadd.f32 %v2574, %v3480
      %v3819 = vadd.f32 %v2579, %v3485
      %v3820 = vadd.f32 %v2582, %v3488
      %v3821 = vadd.f32 %v2587, %v3493
      %v3822 = vadd.f32 %v2590, %v3496
      %v3823 = vadd.f32 %v2595, %v3501
      %v3824 = vadd.f32 %v2598, %v3504
      %v3825 = vadd.f32 %v2603, %v3509
      %v3826 = vadd.f32 %v2606, %v3512
      %v3827 = vadd.f32 %v2611, %v3517
      %v3828 = vadd.f32 %v2614, %v3520
      %v3829 = vadd.f32 %v2619, %v3525
      %v3830 = vadd.f32 %v2622, %v3528
      %v3831 = vadd.f32 %v2627, %v3533
      %v3832 = vadd.f32 %v2630, %v3536
      %v3833 = vadd.f32 %v2635, %v3541
      %v3834 = vadd.f32 %v2638, %v3544
      %v3835 = vadd.f32 %v2643, %v3549
      %v3836 = vadd.f32 %v2646, %v3552
      %v3837 = vadd.f32 %v2651, %v3557
      %v3838 = vadd.f32 %v2654, %v3560
      %v3839 = vadd.f32 %v2659, %v3565
      %v3840 = vadd.f32 %v2662, %v3568
      %v3841 = vadd.f32 %v2667, %v3573
      %v3842 = vadd.f32 %v2670, %v3576
      %v3843 = vadd.f32 %v2675, %v3581
      %v3844 = vadd.f32 %v2678, %v3584
      %v3845 = vadd.f32 %v2683, %v3589
      %v3846 = vadd.f32 %v2686, %v3592
      %v3847 = vadd.f32 %v2691, %v3597
      %v3848 = vadd.f32 %v2694, %v3600
      %v3849 = vadd.f32 %v2699, %v3605
      %v3850 = vadd.f32 %v2702, %v3608
      %v3851 = vadd.f32 %v2707, %v3613
      %v3852 = vadd.f32 %v2710, %v3616
      %v3853 = vadd.f32 %v2715, %v3621
      %v3854 = vadd.f32 %v2718, %v3624
      %v3855 = vadd.f32 %v2723, %v3629
      %v3856 = vadd.f32 %v2726, %v3632
      %v3857 = vadd.f32 %v2731, %v3637
      %v3858 = vadd.f32 %v2734, %v3640
      %v3859 = vadd.f32 %v2739, %v3645
      %v3860 = vadd.f32 %v2742, %v3648
      %v3861 = vadd.f32 %v2747, %v3653
      %v3862 = vadd.f32 %v2750, %v3656
      %v3863 = vadd.f32 %v2755, %v3661
      %v3864 = vadd.f32 %v2758, %v3664
      %v3865 = vadd.f32 %v2763, %v3669
      %v3866 = vadd.f32 %v2766, %v3672
      %v3867 = vadd.f32 %v2771, %v3677
      %v3868 = vadd.f32 %v2774, %v3680
      %v3869 = vadd.f32 %v2779, %v3685
      %v3870 = vadd.f32 %v2782, %v3688
      %v3871 = vadd.f32 %v2787, %v3693
      %v3872 = vadd.f32 %v2790, %v3696
      %v3873 = vadd.f32 %v2795, %v3701
      %v3874 = vadd.f32 %v2798, %v3704
      %v3875 = vadd.f32 %v2803, %v3709
      %v3876 = vadd.f32 %v2806, %v3712
      %v3877 = vadd.f32 %v2811, %v3717
      %v3878 = vadd.f32 %v2814, %v3720
      %v3879 = vadd.f32 %v2819, %v3725
      %v3880 = vadd.f32 %v2822, %v3728
      %v3881 = vadd.f32 %v2827, %v3733
      %v3882 = vadd.f32 %v2830, %v3736
      %v3883 = vadd.f32 %v2835, %v3741
      %v3884 = vadd.f32 %v2838, %v3744
      %v3885 = vadd.f32 %v2843, %v3749
      %v3886 = vadd.f32 %v2846, %v3752
      %v3887 = vadd.f32 %v2851, %v3757
      %v3888 = vadd.f32 %v2854, %v3760
      %v3889 = vadd.f32 %v2859, %v3765
      %v3890 = vadd.f32 %v2862, %v3768
      %v3891 = vadd.f32 %v2867, %v3773
      %v3892 = vadd.f32 %v2870, %v3776
      %v3893 = vadd.f32 %v2875, %v3781
      %v3894 = vadd.f32 %v2878, %v3784
      %v3895 = vadd.f32 %v2883, %v3789
      %v3896 = vadd.f32 %v2886, %v3792
      %v3897 = vadd.f32 %v2891, %v3797
      %v3898 = vadd.f32 %v2894, %v3800
      %v3899 = vld [vmem:[%s2900] sm:$0xf]
      %v3900 = vld [vmem:[%s2900 + $0x4] sm:$0xf]
      %v3901 = vld [vmem:[%s2900 + $0x8] sm:$0xf]
      %v3902 = vld [vmem:[%s2900 + $0xc] sm:$0xf]
      %v3903 = vld [vmem:[%s2900 + $0x10] sm:$0x1]
      %v3904 = vld [vmem:[%s2900 + $0x14] sm:$0xf]
      %v3905 = vld [vmem:[%s2900 + $0x18] sm:$0xf]
      %v3906 = vld [vmem:[%s2900 + $0x1c] sm:$0xf]
      %v3907 = vld [vmem:[%s2900 + $0x20] sm:$0xf]
      %v3908 = vld [vmem:[%s2900 + $0x24] sm:$0x1]
      %v3909 = vld [vmem:[%s2900 + $0x28] sm:$0xf]
      %v3910 = vld [vmem:[%s2900 + $0x2c] sm:$0xf]
      %v3911 = vld [vmem:[%s2900 + $0x30] sm:$0xf]
      %v3912 = vld [vmem:[%s2900 + $0x34] sm:$0xf]
      %v3913 = vld [vmem:[%s2900 + $0x38] sm:$0x1]
      %v3914 = vld [vmem:[%s2900 + $0x3c] sm:$0xf]
      %v3915 = vld [vmem:[%s2900 + $0x40] sm:$0xf]
      %v3916 = vld [vmem:[%s2900 + $0x44] sm:$0xf]
      %v3917 = vld [vmem:[%s2900 + $0x48] sm:$0xf]
      %v3918 = vld [vmem:[%s2900 + $0x4c] sm:$0x1]
      %v3919 = vld [vmem:[%s2900 + $0x50] sm:$0xf]
      %v3920 = vld [vmem:[%s2900 + $0x54] sm:$0xf]
      %v3921 = vld [vmem:[%s2900 + $0x58] sm:$0xf]
      %v3922 = vld [vmem:[%s2900 + $0x5c] sm:$0xf]
      %v3923 = vld [vmem:[%s2900 + $0x60] sm:$0x1]
      %v3924 = vld [vmem:[%s2900 + $0x64] sm:$0xf]
      %v3925 = vld [vmem:[%s2900 + $0x68] sm:$0xf]
      %v3926 = vld [vmem:[%s2900 + $0x6c] sm:$0xf]
      %v3927 = vld [vmem:[%s2900 + $0x70] sm:$0xf]
      %v3928 = vld [vmem:[%s2900 + $0x74] sm:$0x1]
      %v3929 = vld [vmem:[%s2900 + $0x78] sm:$0xf]
      %v3930 = vld [vmem:[%s2900 + $0x7c] sm:$0xf]
      %v3931 = vld [vmem:[%s2900 + $0x80] sm:$0xf]
      %v3932 = vld [vmem:[%s2900 + $0x84] sm:$0xf]
      %v3933 = vld [vmem:[%s2900 + $0x88] sm:$0x1]
      %v3934 = vld [vmem:[%s2900 + $0x8c] sm:$0xf]
      %v3935 = vld [vmem:[%s2900 + $0x90] sm:$0xf]
      %v3936 = vld [vmem:[%s2900 + $0x94] sm:$0xf]
      %v3937 = vld [vmem:[%s2900 + $0x98] sm:$0xf]
      %v3938 = vld [vmem:[%s2900 + $0x9c] sm:$0x1]
      %v3939 = vld [vmem:[%s2900 + $0xa0] sm:$0xf]
      %v3940 = vld [vmem:[%s2900 + $0xa4] sm:$0xf]
      %v3941 = vld [vmem:[%s2900 + $0xa8] sm:$0xf]
      %v3942 = vld [vmem:[%s2900 + $0xac] sm:$0xf]
      %v3943 = vld [vmem:[%s2900 + $0xb0] sm:$0x1]
      %v3944 = vld [vmem:[%s2900 + $0xb4] sm:$0xf]
      %v3945 = vld [vmem:[%s2900 + $0xb8] sm:$0xf]
      %v3946 = vld [vmem:[%s2900 + $0xbc] sm:$0xf]
      %v3947 = vld [vmem:[%s2900 + $0xc0] sm:$0xf]
      %v3948 = vld [vmem:[%s2900 + $0xc4] sm:$0x1]
      %v3949 = vld [vmem:[%s2900 + $0xc8] sm:$0xf]
      %v3950 = vld [vmem:[%s2900 + $0xcc] sm:$0xf]
      %v3951 = vld [vmem:[%s2900 + $0xd0] sm:$0xf]
      %v3952 = vld [vmem:[%s2900 + $0xd4] sm:$0xf]
      %v3953 = vld [vmem:[%s2900 + $0xd8] sm:$0x1]
      %v3954 = vld [vmem:[%s2900 + $0xdc] sm:$0xf]
      %v3955 = vld [vmem:[%s2900 + $0xe0] sm:$0xf]
      %v3956 = vld [vmem:[%s2900 + $0xe4] sm:$0xf]
      %v3957 = vld [vmem:[%s2900 + $0xe8] sm:$0xf]
      %v3958 = vld [vmem:[%s2900 + $0xec] sm:$0x1]
      %v3959 = vld [vmem:[%s2900 + $0xf0] sm:$0xf]
      %v3960 = vld [vmem:[%s2900 + $0xf4] sm:$0xf]
      %v3961 = vld [vmem:[%s2900 + $0xf8] sm:$0xf]
      %v3962 = vld [vmem:[%s2900 + $0xfc] sm:$0xf]
      %v3963 = vld [vmem:[%s2900 + $0x100] sm:$0x1]
      %v3964 = vld [vmem:[%s2900 + $0x104] sm:$0xf]
      %v3965 = vld [vmem:[%s2900 + $0x108] sm:$0xf]
      %v3966 = vld [vmem:[%s2900 + $0x10c] sm:$0xf]
      %v3967 = vld [vmem:[%s2900 + $0x110] sm:$0xf]
      %v3968 = vld [vmem:[%s2900 + $0x114] sm:$0x1]
      %v3969 = vld [vmem:[%s2900 + $0x118] sm:$0xf]
      %v3970 = vld [vmem:[%s2900 + $0x11c] sm:$0xf]
      %v3971 = vld [vmem:[%s2900 + $0x120] sm:$0xf]
      %v3972 = vld [vmem:[%s2900 + $0x124] sm:$0xf]
      %v3973 = vld [vmem:[%s2900 + $0x128] sm:$0x1]
      %v3974 = vld [vmem:[%s2900 + $0x12c] sm:$0xf]
      %v3975 = vld [vmem:[%s2900 + $0x130] sm:$0xf]
      %v3976 = vld [vmem:[%s2900 + $0x134] sm:$0xf]
      %v3977 = vld [vmem:[%s2900 + $0x138] sm:$0xf]
      %v3978 = vld [vmem:[%s2900 + $0x13c] sm:$0x1]
      %v3979 = vld [vmem:[%s2900 + $0x140] sm:$0xf]
      %v3980 = vld [vmem:[%s2900 + $0x144] sm:$0xf]
      %v3981 = vld [vmem:[%s2900 + $0x148] sm:$0xf]
      %v3982 = vld [vmem:[%s2900 + $0x14c] sm:$0xf]
      %v3983 = vld [vmem:[%s2900 + $0x150] sm:$0x1]
      %v3984 = vld [vmem:[%s2900 + $0x154] sm:$0xf]
      %v3985 = vld [vmem:[%s2900 + $0x158] sm:$0xf]
      %v3986 = vld [vmem:[%s2900 + $0x15c] sm:$0xf]
      %v3987 = vld [vmem:[%s2900 + $0x160] sm:$0xf]
      %v3988 = vld [vmem:[%s2900 + $0x164] sm:$0x1]
      %v3989 = vld [vmem:[%s2900 + $0x168] sm:$0xf]
      %v3990 = vld [vmem:[%s2900 + $0x16c] sm:$0xf]
      %v3991 = vld [vmem:[%s2900 + $0x170] sm:$0xf]
      %v3992 = vld [vmem:[%s2900 + $0x174] sm:$0xf]
      %v3993 = vld [vmem:[%s2900 + $0x178] sm:$0x1]
      %v3994 = vld [vmem:[%s2900 + $0x17c] sm:$0xf]
      %v3995 = vld [vmem:[%s2900 + $0x180] sm:$0xf]
      %v3996 = vld [vmem:[%s2900 + $0x184] sm:$0xf]
      %v3997 = vld [vmem:[%s2900 + $0x188] sm:$0xf]
      %v3998 = vld [vmem:[%s2900 + $0x18c] sm:$0x1]
      %v3999 = vld [vmem:[%s2900 + $0x190] sm:$0xf]
      %v4000 = vld [vmem:[%s2900 + $0x194] sm:$0xf]
      %v4001 = vld [vmem:[%s2900 + $0x198] sm:$0xf]
      %v4002 = vld [vmem:[%s2900 + $0x19c] sm:$0xf]
      %v4003 = vld [vmem:[%s2900 + $0x1a0] sm:$0x1]
      %v4004 = vld [vmem:[%s2900 + $0x1a4] sm:$0xf]
      %v4005 = vld [vmem:[%s2900 + $0x1a8] sm:$0xf]
      %v4006 = vld [vmem:[%s2900 + $0x1ac] sm:$0xf]
      %v4007 = vld [vmem:[%s2900 + $0x1b0] sm:$0xf]
      %v4008 = vld [vmem:[%s2900 + $0x1b4] sm:$0x1]
      %v4009 = vld [vmem:[%s2900 + $0x1b8] sm:$0xf]
      %v4010 = vld [vmem:[%s2900 + $0x1bc] sm:$0xf]
      %v4011 = vld [vmem:[%s2900 + $0x1c0] sm:$0xf]
      %v4012 = vld [vmem:[%s2900 + $0x1c4] sm:$0xf]
      %v4013 = vld [vmem:[%s2900 + $0x1c8] sm:$0x1]
      %v4014 = vld [vmem:[%s2900 + $0x1cc] sm:$0xf]
      %v4015 = vld [vmem:[%s2900 + $0x1d0] sm:$0xf]
      %v4016 = vld [vmem:[%s2900 + $0x1d4] sm:$0xf]
      %v4017 = vld [vmem:[%s2900 + $0x1d8] sm:$0xf]
      %v4018 = vld [vmem:[%s2900 + $0x1dc] sm:$0x1]
      %v4020 = vshrl.u32 %v3899, 16
      %v4022 = vrot.slane %v4020, 4
      %v4023 = vshll.u32 %v3899, 16
      %v4025 = vrot.slane %v4023, 5
      %v4026 = vor.u32 %v4022, %v4025
      %v4027 = vrot.slane %v4026, 4
      %v4029 = vshll.u32 %v3900, 16
      %v4031 = vrot.slane %v4029, 5
      %v4032 = vsel %vm324, %v4027, %v4031
      %v4033 = vshrl.u32 %v3900, 16
      %v4035 = vrot.slane %v4033, 4
      %v4036 = vor.u32 %v4035, %v4031
      %v4037 = vrot.slane %v4036, 4
      %v4039 = vshll.u32 %v3901, 16
      %v4041 = vrot.slane %v4039, 5
      %v4042 = vsel %vm324, %v4037, %v4041
      %v4043 = vshrl.u32 %v3901, 16
      %v4045 = vrot.slane %v4043, 4
      %v4046 = vor.u32 %v4045, %v4041
      %v4047 = vrot.slane %v4046, 4
      %v4049 = vshll.u32 %v3902, 16
      %v4051 = vrot.slane %v4049, 5
      %v4052 = vsel %vm324, %v4047, %v4051
      %v4053 = vshrl.u32 %v3902, 16
      %v4055 = vrot.slane %v4053, 4
      %v4056 = vor.u32 %v4055, %v4051
      %v4057 = vrot.slane %v4056, 4
      %v4059 = vshll.u32 %v3903, 16
      %v4061 = vrot.slane %v4059, 5
      %v4062 = vsel %vm324, %v4057, %v4061
      %v4064 = vshrl.u32 %v3904, 16
      %v4066 = vrot.slane %v4064, 4
      %v4067 = vshll.u32 %v3904, 16
      %v4069 = vrot.slane %v4067, 5
      %v4070 = vor.u32 %v4066, %v4069
      %v4071 = vrot.slane %v4070, 4
      %v4073 = vshll.u32 %v3905, 16
      %v4075 = vrot.slane %v4073, 5
      %v4076 = vsel %vm324, %v4071, %v4075
      %v4077 = vshrl.u32 %v3905, 16
      %v4079 = vrot.slane %v4077, 4
      %v4080 = vor.u32 %v4079, %v4075
      %v4081 = vrot.slane %v4080, 4
      %v4083 = vshll.u32 %v3906, 16
      %v4085 = vrot.slane %v4083, 5
      %v4086 = vsel %vm324, %v4081, %v4085
      %v4087 = vshrl.u32 %v3906, 16
      %v4089 = vrot.slane %v4087, 4
      %v4090 = vor.u32 %v4089, %v4085
      %v4091 = vrot.slane %v4090, 4
      %v4093 = vshll.u32 %v3907, 16
      %v4095 = vrot.slane %v4093, 5
      %v4096 = vsel %vm324, %v4091, %v4095
      %v4097 = vshrl.u32 %v3907, 16
      %v4099 = vrot.slane %v4097, 4
      %v4100 = vor.u32 %v4099, %v4095
      %v4101 = vrot.slane %v4100, 4
      %v4103 = vshll.u32 %v3908, 16
      %v4105 = vrot.slane %v4103, 5
      %v4106 = vsel %vm324, %v4101, %v4105
      %v4108 = vshrl.u32 %v3909, 16
      %v4110 = vrot.slane %v4108, 4
      %v4111 = vshll.u32 %v3909, 16
      %v4113 = vrot.slane %v4111, 5
      %v4114 = vor.u32 %v4110, %v4113
      %v4115 = vrot.slane %v4114, 4
      %v4117 = vshll.u32 %v3910, 16
      %v4119 = vrot.slane %v4117, 5
      %v4120 = vsel %vm324, %v4115, %v4119
      %v4121 = vshrl.u32 %v3910, 16
      %v4123 = vrot.slane %v4121, 4
      %v4124 = vor.u32 %v4123, %v4119
      %v4125 = vrot.slane %v4124, 4
      %v4127 = vshll.u32 %v3911, 16
      %v4129 = vrot.slane %v4127, 5
      %v4130 = vsel %vm324, %v4125, %v4129
      %v4131 = vshrl.u32 %v3911, 16
      %v4133 = vrot.slane %v4131, 4
      %v4134 = vor.u32 %v4133, %v4129
      %v4135 = vrot.slane %v4134, 4
      %v4137 = vshll.u32 %v3912, 16
      %v4139 = vrot.slane %v4137, 5
      %v4140 = vsel %vm324, %v4135, %v4139
      %v4141 = vshrl.u32 %v3912, 16
      %v4143 = vrot.slane %v4141, 4
      %v4144 = vor.u32 %v4143, %v4139
      %v4145 = vrot.slane %v4144, 4
      %v4147 = vshll.u32 %v3913, 16
      %v4149 = vrot.slane %v4147, 5
      %v4150 = vsel %vm324, %v4145, %v4149
      %v4152 = vshrl.u32 %v3914, 16
      %v4154 = vrot.slane %v4152, 4
      %v4155 = vshll.u32 %v3914, 16
      %v4157 = vrot.slane %v4155, 5
      %v4158 = vor.u32 %v4154, %v4157
      %v4159 = vrot.slane %v4158, 4
      %v4161 = vshll.u32 %v3915, 16
      %v4163 = vrot.slane %v4161, 5
      %v4164 = vsel %vm324, %v4159, %v4163
      %v4165 = vshrl.u32 %v3915, 16
      %v4167 = vrot.slane %v4165, 4
      %v4168 = vor.u32 %v4167, %v4163
      %v4169 = vrot.slane %v4168, 4
      %v4171 = vshll.u32 %v3916, 16
      %v4173 = vrot.slane %v4171, 5
      %v4174 = vsel %vm324, %v4169, %v4173
      %v4175 = vshrl.u32 %v3916, 16
      %v4177 = vrot.slane %v4175, 4
      %v4178 = vor.u32 %v4177, %v4173
      %v4179 = vrot.slane %v4178, 4
      %v4181 = vshll.u32 %v3917, 16
      %v4183 = vrot.slane %v4181, 5
      %v4184 = vsel %vm324, %v4179, %v4183
      %v4185 = vshrl.u32 %v3917, 16
      %v4187 = vrot.slane %v4185, 4
      %v4188 = vor.u32 %v4187, %v4183
      %v4189 = vrot.slane %v4188, 4
      %v4191 = vshll.u32 %v3918, 16
      %v4193 = vrot.slane %v4191, 5
      %v4194 = vsel %vm324, %v4189, %v4193
      %v4196 = vshrl.u32 %v3919, 16
      %v4198 = vrot.slane %v4196, 4
      %v4199 = vshll.u32 %v3919, 16
      %v4201 = vrot.slane %v4199, 5
      %v4202 = vor.u32 %v4198, %v4201
      %v4203 = vrot.slane %v4202, 4
      %v4205 = vshll.u32 %v3920, 16
      %v4207 = vrot.slane %v4205, 5
      %v4208 = vsel %vm324, %v4203, %v4207
      %v4209 = vshrl.u32 %v3920, 16
      %v4211 = vrot.slane %v4209, 4
      %v4212 = vor.u32 %v4211, %v4207
      %v4213 = vrot.slane %v4212, 4
      %v4215 = vshll.u32 %v3921, 16
      %v4217 = vrot.slane %v4215, 5
      %v4218 = vsel %vm324, %v4213, %v4217
      %v4219 = vshrl.u32 %v3921, 16
      %v4221 = vrot.slane %v4219, 4
      %v4222 = vor.u32 %v4221, %v4217
      %v4223 = vrot.slane %v4222, 4
      %v4225 = vshll.u32 %v3922, 16
      %v4227 = vrot.slane %v4225, 5
      %v4228 = vsel %vm324, %v4223, %v4227
      %v4229 = vshrl.u32 %v3922, 16
      %v4231 = vrot.slane %v4229, 4
      %v4232 = vor.u32 %v4231, %v4227
      %v4233 = vrot.slane %v4232, 4
      %v4235 = vshll.u32 %v3923, 16
      %v4237 = vrot.slane %v4235, 5
      %v4238 = vsel %vm324, %v4233, %v4237
      %v4240 = vshrl.u32 %v3924, 16
      %v4242 = vrot.slane %v4240, 4
      %v4243 = vshll.u32 %v3924, 16
      %v4245 = vrot.slane %v4243, 5
      %v4246 = vor.u32 %v4242, %v4245
      %v4247 = vrot.slane %v4246, 4
      %v4249 = vshll.u32 %v3925, 16
      %v4251 = vrot.slane %v4249, 5
      %v4252 = vsel %vm324, %v4247, %v4251
      %v4253 = vshrl.u32 %v3925, 16
      %v4255 = vrot.slane %v4253, 4
      %v4256 = vor.u32 %v4255, %v4251
      %v4257 = vrot.slane %v4256, 4
      %v4259 = vshll.u32 %v3926, 16
      %v4261 = vrot.slane %v4259, 5
      %v4262 = vsel %vm324, %v4257, %v4261
      %v4263 = vshrl.u32 %v3926, 16
      %v4265 = vrot.slane %v4263, 4
      %v4266 = vor.u32 %v4265, %v4261
      %v4267 = vrot.slane %v4266, 4
      %v4269 = vshll.u32 %v3927, 16
      %v4271 = vrot.slane %v4269, 5
      %v4272 = vsel %vm324, %v4267, %v4271
      %v4273 = vshrl.u32 %v3927, 16
      %v4275 = vrot.slane %v4273, 4
      %v4276 = vor.u32 %v4275, %v4271
      %v4277 = vrot.slane %v4276, 4
      %v4279 = vshll.u32 %v3928, 16
      %v4281 = vrot.slane %v4279, 5
      %v4282 = vsel %vm324, %v4277, %v4281
      %v4284 = vshrl.u32 %v3929, 16
      %v4286 = vrot.slane %v4284, 4
      %v4287 = vshll.u32 %v3929, 16
      %v4289 = vrot.slane %v4287, 5
      %v4290 = vor.u32 %v4286, %v4289
      %v4291 = vrot.slane %v4290, 4
      %v4293 = vshll.u32 %v3930, 16
      %v4295 = vrot.slane %v4293, 5
      %v4296 = vsel %vm324, %v4291, %v4295
      %v4297 = vshrl.u32 %v3930, 16
      %v4299 = vrot.slane %v4297, 4
      %v4300 = vor.u32 %v4299, %v4295
      %v4301 = vrot.slane %v4300, 4
      %v4303 = vshll.u32 %v3931, 16
      %v4305 = vrot.slane %v4303, 5
      %v4306 = vsel %vm324, %v4301, %v4305
      %v4307 = vshrl.u32 %v3931, 16
      %v4309 = vrot.slane %v4307, 4
      %v4310 = vor.u32 %v4309, %v4305
      %v4311 = vrot.slane %v4310, 4
      %v4313 = vshll.u32 %v3932, 16
      %v4315 = vrot.slane %v4313, 5
      %v4316 = vsel %vm324, %v4311, %v4315
      %v4317 = vshrl.u32 %v3932, 16
      %v4319 = vrot.slane %v4317, 4
      %v4320 = vor.u32 %v4319, %v4315
      %v4321 = vrot.slane %v4320, 4
      %v4323 = vshll.u32 %v3933, 16
      %v4325 = vrot.slane %v4323, 5
      %v4326 = vsel %vm324, %v4321, %v4325
      %v4328 = vshrl.u32 %v3934, 16
      %v4330 = vrot.slane %v4328, 4
      %v4331 = vshll.u32 %v3934, 16
      %v4333 = vrot.slane %v4331, 5
      %v4334 = vor.u32 %v4330, %v4333
      %v4335 = vrot.slane %v4334, 4
      %v4337 = vshll.u32 %v3935, 16
      %v4339 = vrot.slane %v4337, 5
      %v4340 = vsel %vm324, %v4335, %v4339
      %v4341 = vshrl.u32 %v3935, 16
      %v4343 = vrot.slane %v4341, 4
      %v4344 = vor.u32 %v4343, %v4339
      %v4345 = vrot.slane %v4344, 4
      %v4347 = vshll.u32 %v3936, 16
      %v4349 = vrot.slane %v4347, 5
      %v4350 = vsel %vm324, %v4345, %v4349
      %v4351 = vshrl.u32 %v3936, 16
      %v4353 = vrot.slane %v4351, 4
      %v4354 = vor.u32 %v4353, %v4349
      %v4355 = vrot.slane %v4354, 4
      %v4357 = vshll.u32 %v3937, 16
      %v4359 = vrot.slane %v4357, 5
      %v4360 = vsel %vm324, %v4355, %v4359
      %v4361 = vshrl.u32 %v3937, 16
      %v4363 = vrot.slane %v4361, 4
      %v4364 = vor.u32 %v4363, %v4359
      %v4365 = vrot.slane %v4364, 4
      %v4367 = vshll.u32 %v3938, 16
      %v4369 = vrot.slane %v4367, 5
      %v4370 = vsel %vm324, %v4365, %v4369
      %v4372 = vshrl.u32 %v3939, 16
      %v4374 = vrot.slane %v4372, 4
      %v4375 = vshll.u32 %v3939, 16
      %v4377 = vrot.slane %v4375, 5
      %v4378 = vor.u32 %v4374, %v4377
      %v4379 = vrot.slane %v4378, 4
      %v4381 = vshll.u32 %v3940, 16
      %v4383 = vrot.slane %v4381, 5
      %v4384 = vsel %vm324, %v4379, %v4383
      %v4385 = vshrl.u32 %v3940, 16
      %v4387 = vrot.slane %v4385, 4
      %v4388 = vor.u32 %v4387, %v4383
      %v4389 = vrot.slane %v4388, 4
      %v4391 = vshll.u32 %v3941, 16
      %v4393 = vrot.slane %v4391, 5
      %v4394 = vsel %vm324, %v4389, %v4393
      %v4395 = vshrl.u32 %v3941, 16
      %v4397 = vrot.slane %v4395, 4
      %v4398 = vor.u32 %v4397, %v4393
      %v4399 = vrot.slane %v4398, 4
      %v4401 = vshll.u32 %v3942, 16
      %v4403 = vrot.slane %v4401, 5
      %v4404 = vsel %vm324, %v4399, %v4403
      %v4405 = vshrl.u32 %v3942, 16
      %v4407 = vrot.slane %v4405, 4
      %v4408 = vor.u32 %v4407, %v4403
      %v4409 = vrot.slane %v4408, 4
      %v4411 = vshll.u32 %v3943, 16
      %v4413 = vrot.slane %v4411, 5
      %v4414 = vsel %vm324, %v4409, %v4413
      %v4416 = vshrl.u32 %v3944, 16
      %v4418 = vrot.slane %v4416, 4
      %v4419 = vshll.u32 %v3944, 16
      %v4421 = vrot.slane %v4419, 5
      %v4422 = vor.u32 %v4418, %v4421
      %v4423 = vrot.slane %v4422, 4
      %v4425 = vshll.u32 %v3945, 16
      %v4427 = vrot.slane %v4425, 5
      %v4428 = vsel %vm324, %v4423, %v4427
      %v4429 = vshrl.u32 %v3945, 16
      %v4431 = vrot.slane %v4429, 4
      %v4432 = vor.u32 %v4431, %v4427
      %v4433 = vrot.slane %v4432, 4
      %v4435 = vshll.u32 %v3946, 16
      %v4437 = vrot.slane %v4435, 5
      %v4438 = vsel %vm324, %v4433, %v4437
      %v4439 = vshrl.u32 %v3946, 16
      %v4441 = vrot.slane %v4439, 4
      %v4442 = vor.u32 %v4441, %v4437
      %v4443 = vrot.slane %v4442, 4
      %v4445 = vshll.u32 %v3947, 16
      %v4447 = vrot.slane %v4445, 5
      %v4448 = vsel %vm324, %v4443, %v4447
      %v4449 = vshrl.u32 %v3947, 16
      %v4451 = vrot.slane %v4449, 4
      %v4452 = vor.u32 %v4451, %v4447
      %v4453 = vrot.slane %v4452, 4
      %v4455 = vshll.u32 %v3948, 16
      %v4457 = vrot.slane %v4455, 5
      %v4458 = vsel %vm324, %v4453, %v4457
      %v4460 = vshrl.u32 %v3949, 16
      %v4462 = vrot.slane %v4460, 4
      %v4463 = vshll.u32 %v3949, 16
      %v4465 = vrot.slane %v4463, 5
      %v4466 = vor.u32 %v4462, %v4465
      %v4467 = vrot.slane %v4466, 4
      %v4469 = vshll.u32 %v3950, 16
      %v4471 = vrot.slane %v4469, 5
      %v4472 = vsel %vm324, %v4467, %v4471
      %v4473 = vshrl.u32 %v3950, 16
      %v4475 = vrot.slane %v4473, 4
      %v4476 = vor.u32 %v4475, %v4471
      %v4477 = vrot.slane %v4476, 4
      %v4479 = vshll.u32 %v3951, 16
      %v4481 = vrot.slane %v4479, 5
      %v4482 = vsel %vm324, %v4477, %v4481
      %v4483 = vshrl.u32 %v3951, 16
      %v4485 = vrot.slane %v4483, 4
      %v4486 = vor.u32 %v4485, %v4481
      %v4487 = vrot.slane %v4486, 4
      %v4489 = vshll.u32 %v3952, 16
      %v4491 = vrot.slane %v4489, 5
      %v4492 = vsel %vm324, %v4487, %v4491
      %v4493 = vshrl.u32 %v3952, 16
      %v4495 = vrot.slane %v4493, 4
      %v4496 = vor.u32 %v4495, %v4491
      %v4497 = vrot.slane %v4496, 4
      %v4499 = vshll.u32 %v3953, 16
      %v4501 = vrot.slane %v4499, 5
      %v4502 = vsel %vm324, %v4497, %v4501
      %v4504 = vshrl.u32 %v3954, 16
      %v4506 = vrot.slane %v4504, 4
      %v4507 = vshll.u32 %v3954, 16
      %v4509 = vrot.slane %v4507, 5
      %v4510 = vor.u32 %v4506, %v4509
      %v4511 = vrot.slane %v4510, 4
      %v4513 = vshll.u32 %v3955, 16
      %v4515 = vrot.slane %v4513, 5
      %v4516 = vsel %vm324, %v4511, %v4515
      %v4517 = vshrl.u32 %v3955, 16
      %v4519 = vrot.slane %v4517, 4
      %v4520 = vor.u32 %v4519, %v4515
      %v4521 = vrot.slane %v4520, 4
      %v4523 = vshll.u32 %v3956, 16
      %v4525 = vrot.slane %v4523, 5
      %v4526 = vsel %vm324, %v4521, %v4525
      %v4527 = vshrl.u32 %v3956, 16
      %v4529 = vrot.slane %v4527, 4
      %v4530 = vor.u32 %v4529, %v4525
      %v4531 = vrot.slane %v4530, 4
      %v4533 = vshll.u32 %v3957, 16
      %v4535 = vrot.slane %v4533, 5
      %v4536 = vsel %vm324, %v4531, %v4535
      %v4537 = vshrl.u32 %v3957, 16
      %v4539 = vrot.slane %v4537, 4
      %v4540 = vor.u32 %v4539, %v4535
      %v4541 = vrot.slane %v4540, 4
      %v4543 = vshll.u32 %v3958, 16
      %v4545 = vrot.slane %v4543, 5
      %v4546 = vsel %vm324, %v4541, %v4545
      %v4548 = vshrl.u32 %v3959, 16
      %v4550 = vrot.slane %v4548, 4
      %v4551 = vshll.u32 %v3959, 16
      %v4553 = vrot.slane %v4551, 5
      %v4554 = vor.u32 %v4550, %v4553
      %v4555 = vrot.slane %v4554, 4
      %v4557 = vshll.u32 %v3960, 16
      %v4559 = vrot.slane %v4557, 5
      %v4560 = vsel %vm324, %v4555, %v4559
      %v4561 = vshrl.u32 %v3960, 16
      %v4563 = vrot.slane %v4561, 4
      %v4564 = vor.u32 %v4563, %v4559
      %v4565 = vrot.slane %v4564, 4
      %v4567 = vshll.u32 %v3961, 16
      %v4569 = vrot.slane %v4567, 5
      %v4570 = vsel %vm324, %v4565, %v4569
      %v4571 = vshrl.u32 %v3961, 16
      %v4573 = vrot.slane %v4571, 4
      %v4574 = vor.u32 %v4573, %v4569
      %v4575 = vrot.slane %v4574, 4
      %v4577 = vshll.u32 %v3962, 16
      %v4579 = vrot.slane %v4577, 5
      %v4580 = vsel %vm324, %v4575, %v4579
      %v4581 = vshrl.u32 %v3962, 16
      %v4583 = vrot.slane %v4581, 4
      %v4584 = vor.u32 %v4583, %v4579
      %v4585 = vrot.slane %v4584, 4
      %v4587 = vshll.u32 %v3963, 16
      %v4589 = vrot.slane %v4587, 5
      %v4590 = vsel %vm324, %v4585, %v4589
      %v4592 = vshrl.u32 %v3964, 16
      %v4594 = vrot.slane %v4592, 4
      %v4595 = vshll.u32 %v3964, 16
      %v4597 = vrot.slane %v4595, 5
      %v4598 = vor.u32 %v4594, %v4597
      %v4599 = vrot.slane %v4598, 4
      %v4601 = vshll.u32 %v3965, 16
      %v4603 = vrot.slane %v4601, 5
      %v4604 = vsel %vm324, %v4599, %v4603
      %v4605 = vshrl.u32 %v3965, 16
      %v4607 = vrot.slane %v4605, 4
      %v4608 = vor.u32 %v4607, %v4603
      %v4609 = vrot.slane %v4608, 4
      %v4611 = vshll.u32 %v3966, 16
      %v4613 = vrot.slane %v4611, 5
      %v4614 = vsel %vm324, %v4609, %v4613
      %v4615 = vshrl.u32 %v3966, 16
      %v4617 = vrot.slane %v4615, 4
      %v4618 = vor.u32 %v4617, %v4613
      %v4619 = vrot.slane %v4618, 4
      %v4621 = vshll.u32 %v3967, 16
      %v4623 = vrot.slane %v4621, 5
      %v4624 = vsel %vm324, %v4619, %v4623
      %v4625 = vshrl.u32 %v3967, 16
      %v4627 = vrot.slane %v4625, 4
      %v4628 = vor.u32 %v4627, %v4623
      %v4629 = vrot.slane %v4628, 4
      %v4631 = vshll.u32 %v3968, 16
      %v4633 = vrot.slane %v4631, 5
      %v4634 = vsel %vm324, %v4629, %v4633
      %v4636 = vshrl.u32 %v3969, 16
      %v4638 = vrot.slane %v4636, 4
      %v4639 = vshll.u32 %v3969, 16
      %v4641 = vrot.slane %v4639, 5
      %v4642 = vor.u32 %v4638, %v4641
      %v4643 = vrot.slane %v4642, 4
      %v4645 = vshll.u32 %v3970, 16
      %v4647 = vrot.slane %v4645, 5
      %v4648 = vsel %vm324, %v4643, %v4647
      %v4649 = vshrl.u32 %v3970, 16
      %v4651 = vrot.slane %v4649, 4
      %v4652 = vor.u32 %v4651, %v4647
      %v4653 = vrot.slane %v4652, 4
      %v4655 = vshll.u32 %v3971, 16
      %v4657 = vrot.slane %v4655, 5
      %v4658 = vsel %vm324, %v4653, %v4657
      %v4659 = vshrl.u32 %v3971, 16
      %v4661 = vrot.slane %v4659, 4
      %v4662 = vor.u32 %v4661, %v4657
      %v4663 = vrot.slane %v4662, 4
      %v4665 = vshll.u32 %v3972, 16
      %v4667 = vrot.slane %v4665, 5
      %v4668 = vsel %vm324, %v4663, %v4667
      %v4669 = vshrl.u32 %v3972, 16
      %v4671 = vrot.slane %v4669, 4
      %v4672 = vor.u32 %v4671, %v4667
      %v4673 = vrot.slane %v4672, 4
      %v4675 = vshll.u32 %v3973, 16
      %v4677 = vrot.slane %v4675, 5
      %v4678 = vsel %vm324, %v4673, %v4677
      %v4680 = vshrl.u32 %v3974, 16
      %v4682 = vrot.slane %v4680, 4
      %v4683 = vshll.u32 %v3974, 16
      %v4685 = vrot.slane %v4683, 5
      %v4686 = vor.u32 %v4682, %v4685
      %v4687 = vrot.slane %v4686, 4
      %v4689 = vshll.u32 %v3975, 16
      %v4691 = vrot.slane %v4689, 5
      %v4692 = vsel %vm324, %v4687, %v4691
      %v4693 = vshrl.u32 %v3975, 16
      %v4695 = vrot.slane %v4693, 4
      %v4696 = vor.u32 %v4695, %v4691
      %v4697 = vrot.slane %v4696, 4
      %v4699 = vshll.u32 %v3976, 16
      %v4701 = vrot.slane %v4699, 5
      %v4702 = vsel %vm324, %v4697, %v4701
      %v4703 = vshrl.u32 %v3976, 16
      %v4705 = vrot.slane %v4703, 4
      %v4706 = vor.u32 %v4705, %v4701
      %v4707 = vrot.slane %v4706, 4
      %v4709 = vshll.u32 %v3977, 16
      %v4711 = vrot.slane %v4709, 5
      %v4712 = vsel %vm324, %v4707, %v4711
      %v4713 = vshrl.u32 %v3977, 16
      %v4715 = vrot.slane %v4713, 4
      %v4716 = vor.u32 %v4715, %v4711
      %v4717 = vrot.slane %v4716, 4
      %v4719 = vshll.u32 %v3978, 16
      %v4721 = vrot.slane %v4719, 5
      %v4722 = vsel %vm324, %v4717, %v4721
      %v4724 = vshrl.u32 %v3979, 16
      %v4726 = vrot.slane %v4724, 4
      %v4727 = vshll.u32 %v3979, 16
      %v4729 = vrot.slane %v4727, 5
      %v4730 = vor.u32 %v4726, %v4729
      %v4731 = vrot.slane %v4730, 4
      %v4733 = vshll.u32 %v3980, 16
      %v4735 = vrot.slane %v4733, 5
      %v4736 = vsel %vm324, %v4731, %v4735
      %v4737 = vshrl.u32 %v3980, 16
      %v4739 = vrot.slane %v4737, 4
      %v4740 = vor.u32 %v4739, %v4735
      %v4741 = vrot.slane %v4740, 4
      %v4743 = vshll.u32 %v3981, 16
      %v4745 = vrot.slane %v4743, 5
      %v4746 = vsel %vm324, %v4741, %v4745
      %v4747 = vshrl.u32 %v3981, 16
      %v4749 = vrot.slane %v4747, 4
      %v4750 = vor.u32 %v4749, %v4745
      %v4751 = vrot.slane %v4750, 4
      %v4753 = vshll.u32 %v3982, 16
      %v4755 = vrot.slane %v4753, 5
      %v4756 = vsel %vm324, %v4751, %v4755
      %v4757 = vshrl.u32 %v3982, 16
      %v4759 = vrot.slane %v4757, 4
      %v4760 = vor.u32 %v4759, %v4755
      %v4761 = vrot.slane %v4760, 4
      %v4763 = vshll.u32 %v3983, 16
      %v4765 = vrot.slane %v4763, 5
      %v4766 = vsel %vm324, %v4761, %v4765
      %v4768 = vshrl.u32 %v3984, 16
      %v4770 = vrot.slane %v4768, 4
      %v4771 = vshll.u32 %v3984, 16
      %v4773 = vrot.slane %v4771, 5
      %v4774 = vor.u32 %v4770, %v4773
      %v4775 = vrot.slane %v4774, 4
      %v4777 = vshll.u32 %v3985, 16
      %v4779 = vrot.slane %v4777, 5
      %v4780 = vsel %vm324, %v4775, %v4779
      %v4781 = vshrl.u32 %v3985, 16
      %v4783 = vrot.slane %v4781, 4
      %v4784 = vor.u32 %v4783, %v4779
      %v4785 = vrot.slane %v4784, 4
      %v4787 = vshll.u32 %v3986, 16
      %v4789 = vrot.slane %v4787, 5
      %v4790 = vsel %vm324, %v4785, %v4789
      %v4791 = vshrl.u32 %v3986, 16
      %v4793 = vrot.slane %v4791, 4
      %v4794 = vor.u32 %v4793, %v4789
      %v4795 = vrot.slane %v4794, 4
      %v4797 = vshll.u32 %v3987, 16
      %v4799 = vrot.slane %v4797, 5
      %v4800 = vsel %vm324, %v4795, %v4799
      %v4801 = vshrl.u32 %v3987, 16
      %v4803 = vrot.slane %v4801, 4
      %v4804 = vor.u32 %v4803, %v4799
      %v4805 = vrot.slane %v4804, 4
      %v4807 = vshll.u32 %v3988, 16
      %v4809 = vrot.slane %v4807, 5
      %v4810 = vsel %vm324, %v4805, %v4809
      %v4812 = vshrl.u32 %v3989, 16
      %v4814 = vrot.slane %v4812, 4
      %v4815 = vshll.u32 %v3989, 16
      %v4817 = vrot.slane %v4815, 5
      %v4818 = vor.u32 %v4814, %v4817
      %v4819 = vrot.slane %v4818, 4
      %v4821 = vshll.u32 %v3990, 16
      %v4823 = vrot.slane %v4821, 5
      %v4824 = vsel %vm324, %v4819, %v4823
      %v4825 = vshrl.u32 %v3990, 16
      %v4827 = vrot.slane %v4825, 4
      %v4828 = vor.u32 %v4827, %v4823
      %v4829 = vrot.slane %v4828, 4
      %v4831 = vshll.u32 %v3991, 16
      %v4833 = vrot.slane %v4831, 5
      %v4834 = vsel %vm324, %v4829, %v4833
      %v4835 = vshrl.u32 %v3991, 16
      %v4837 = vrot.slane %v4835, 4
      %v4838 = vor.u32 %v4837, %v4833
      %v4839 = vrot.slane %v4838, 4
      %v4841 = vshll.u32 %v3992, 16
      %v4843 = vrot.slane %v4841, 5
      %v4844 = vsel %vm324, %v4839, %v4843
      %v4845 = vshrl.u32 %v3992, 16
      %v4847 = vrot.slane %v4845, 4
      %v4848 = vor.u32 %v4847, %v4843
      %v4849 = vrot.slane %v4848, 4
      %v4851 = vshll.u32 %v3993, 16
      %v4853 = vrot.slane %v4851, 5
      %v4854 = vsel %vm324, %v4849, %v4853
      %v4856 = vshrl.u32 %v3994, 16
      %v4858 = vrot.slane %v4856, 4
      %v4859 = vshll.u32 %v3994, 16
      %v4861 = vrot.slane %v4859, 5
      %v4862 = vor.u32 %v4858, %v4861
      %v4863 = vrot.slane %v4862, 4
      %v4865 = vshll.u32 %v3995, 16
      %v4867 = vrot.slane %v4865, 5
      %v4868 = vsel %vm324, %v4863, %v4867
      %v4869 = vshrl.u32 %v3995, 16
      %v4871 = vrot.slane %v4869, 4
      %v4872 = vor.u32 %v4871, %v4867
      %v4873 = vrot.slane %v4872, 4
      %v4875 = vshll.u32 %v3996, 16
      %v4877 = vrot.slane %v4875, 5
      %v4878 = vsel %vm324, %v4873, %v4877
      %v4879 = vshrl.u32 %v3996, 16
      %v4881 = vrot.slane %v4879, 4
      %v4882 = vor.u32 %v4881, %v4877
      %v4883 = vrot.slane %v4882, 4
      %v4885 = vshll.u32 %v3997, 16
      %v4887 = vrot.slane %v4885, 5
      %v4888 = vsel %vm324, %v4883, %v4887
      %v4889 = vshrl.u32 %v3997, 16
      %v4891 = vrot.slane %v4889, 4
      %v4892 = vor.u32 %v4891, %v4887
      %v4893 = vrot.slane %v4892, 4
      %v4895 = vshll.u32 %v3998, 16
      %v4897 = vrot.slane %v4895, 5
      %v4898 = vsel %vm324, %v4893, %v4897
      %v4900 = vshrl.u32 %v3999, 16
      %v4902 = vrot.slane %v4900, 4
      %v4903 = vshll.u32 %v3999, 16
      %v4905 = vrot.slane %v4903, 5
      %v4906 = vor.u32 %v4902, %v4905
      %v4907 = vrot.slane %v4906, 4
      %v4909 = vshll.u32 %v4000, 16
      %v4911 = vrot.slane %v4909, 5
      %v4912 = vsel %vm324, %v4907, %v4911
      %v4913 = vshrl.u32 %v4000, 16
      %v4915 = vrot.slane %v4913, 4
      %v4916 = vor.u32 %v4915, %v4911
      %v4917 = vrot.slane %v4916, 4
      %v4919 = vshll.u32 %v4001, 16
      %v4921 = vrot.slane %v4919, 5
      %v4922 = vsel %vm324, %v4917, %v4921
      %v4923 = vshrl.u32 %v4001, 16
      %v4925 = vrot.slane %v4923, 4
      %v4926 = vor.u32 %v4925, %v4921
      %v4927 = vrot.slane %v4926, 4
      %v4929 = vshll.u32 %v4002, 16
      %v4931 = vrot.slane %v4929, 5
      %v4932 = vsel %vm324, %v4927, %v4931
      %v4933 = vshrl.u32 %v4002, 16
      %v4935 = vrot.slane %v4933, 4
      %v4936 = vor.u32 %v4935, %v4931
      %v4937 = vrot.slane %v4936, 4
      %v4939 = vshll.u32 %v4003, 16
      %v4941 = vrot.slane %v4939, 5
      %v4942 = vsel %vm324, %v4937, %v4941
      %v4944 = vshrl.u32 %v4004, 16
      %v4946 = vrot.slane %v4944, 4
      %v4947 = vshll.u32 %v4004, 16
      %v4949 = vrot.slane %v4947, 5
      %v4950 = vor.u32 %v4946, %v4949
      %v4951 = vrot.slane %v4950, 4
      %v4953 = vshll.u32 %v4005, 16
      %v4955 = vrot.slane %v4953, 5
      %v4956 = vsel %vm324, %v4951, %v4955
      %v4957 = vshrl.u32 %v4005, 16
      %v4959 = vrot.slane %v4957, 4
      %v4960 = vor.u32 %v4959, %v4955
      %v4961 = vrot.slane %v4960, 4
      %v4963 = vshll.u32 %v4006, 16
      %v4965 = vrot.slane %v4963, 5
      %v4966 = vsel %vm324, %v4961, %v4965
      %v4967 = vshrl.u32 %v4006, 16
      %v4969 = vrot.slane %v4967, 4
      %v4970 = vor.u32 %v4969, %v4965
      %v4971 = vrot.slane %v4970, 4
      %v4973 = vshll.u32 %v4007, 16
      %v4975 = vrot.slane %v4973, 5
      %v4976 = vsel %vm324, %v4971, %v4975
      %v4977 = vshrl.u32 %v4007, 16
      %v4979 = vrot.slane %v4977, 4
      %v4980 = vor.u32 %v4979, %v4975
      %v4981 = vrot.slane %v4980, 4
      %v4983 = vshll.u32 %v4008, 16
      %v4985 = vrot.slane %v4983, 5
      %v4986 = vsel %vm324, %v4981, %v4985
      %v4988 = vshrl.u32 %v4009, 16
      %v4990 = vrot.slane %v4988, 4
      %v4991 = vshll.u32 %v4009, 16
      %v4993 = vrot.slane %v4991, 5
      %v4994 = vor.u32 %v4990, %v4993
      %v4995 = vrot.slane %v4994, 4
      %v4997 = vshll.u32 %v4010, 16
      %v4999 = vrot.slane %v4997, 5
      %v5000 = vsel %vm324, %v4995, %v4999
      %v5001 = vshrl.u32 %v4010, 16
      %v5003 = vrot.slane %v5001, 4
      %v5004 = vor.u32 %v5003, %v4999
      %v5005 = vrot.slane %v5004, 4
      %v5007 = vshll.u32 %v4011, 16
      %v5009 = vrot.slane %v5007, 5
      %v5010 = vsel %vm324, %v5005, %v5009
      %v5011 = vshrl.u32 %v4011, 16
      %v5013 = vrot.slane %v5011, 4
      %v5014 = vor.u32 %v5013, %v5009
      %v5015 = vrot.slane %v5014, 4
      %v5017 = vshll.u32 %v4012, 16
      %v5019 = vrot.slane %v5017, 5
      %v5020 = vsel %vm324, %v5015, %v5019
      %v5021 = vshrl.u32 %v4012, 16
      %v5023 = vrot.slane %v5021, 4
      %v5024 = vor.u32 %v5023, %v5019
      %v5025 = vrot.slane %v5024, 4
      %v5027 = vshll.u32 %v4013, 16
      %v5029 = vrot.slane %v5027, 5
      %v5030 = vsel %vm324, %v5025, %v5029
      %v5032 = vshrl.u32 %v4014, 16
      %v5034 = vrot.slane %v5032, 4
      %v5035 = vshll.u32 %v4014, 16
      %v5037 = vrot.slane %v5035, 5
      %v5038 = vor.u32 %v5034, %v5037
      %v5039 = vrot.slane %v5038, 4
      %v5041 = vshll.u32 %v4015, 16
      %v5043 = vrot.slane %v5041, 5
      %v5044 = vsel %vm324, %v5039, %v5043
      %v5045 = vshrl.u32 %v4015, 16
      %v5047 = vrot.slane %v5045, 4
      %v5048 = vor.u32 %v5047, %v5043
      %v5049 = vrot.slane %v5048, 4
      %v5051 = vshll.u32 %v4016, 16
      %v5053 = vrot.slane %v5051, 5
      %v5054 = vsel %vm324, %v5049, %v5053
      %v5055 = vshrl.u32 %v4016, 16
      %v5057 = vrot.slane %v5055, 4
      %v5058 = vor.u32 %v5057, %v5053
      %v5059 = vrot.slane %v5058, 4
      %v5061 = vshll.u32 %v4017, 16
      %v5063 = vrot.slane %v5061, 5
      %v5064 = vsel %vm324, %v5059, %v5063
      %v5065 = vshrl.u32 %v4017, 16
      %v5067 = vrot.slane %v5065, 4
      %v5068 = vor.u32 %v5067, %v5063
      %v5069 = vrot.slane %v5068, 4
      %v5071 = vshll.u32 %v4018, 16
      %v5073 = vrot.slane %v5071, 5
      %v5074 = vsel %vm324, %v5069, %v5073
      %s5075 = scalar_lea.vmem %s1, 12
      %v5076 = vld [vmem:[%s5075] sm:$0xf]
      %v5077 = vunpack.c.l.b16 %v4032
      %v5078 = vunpack.c.l.b16 %v4042
      %v5079 = vunpack.c.l.b16 %v4052
      %v5080 = vunpack.c.l.b16 %v4062
      %v5081 = vunpack.c.l.b16 %v4076
      %v5082 = vunpack.c.l.b16 %v4086
      %v5083 = vunpack.c.l.b16 %v4096
      %v5084 = vunpack.c.l.b16 %v4106
      %v5085 = vunpack.c.l.b16 %v4120
      %v5086 = vunpack.c.l.b16 %v4130
      %v5087 = vunpack.c.l.b16 %v4140
      %v5088 = vunpack.c.l.b16 %v4150
      %v5089 = vunpack.c.l.b16 %v4164
      %v5090 = vunpack.c.l.b16 %v4174
      %v5091 = vunpack.c.l.b16 %v4184
      %v5092 = vunpack.c.l.b16 %v4194
      %v5093 = vunpack.c.l.b16 %v4208
      %v5094 = vunpack.c.l.b16 %v4218
      %v5095 = vunpack.c.l.b16 %v4228
      %v5096 = vunpack.c.l.b16 %v4238
      %v5097 = vunpack.c.l.b16 %v4252
      %v5098 = vunpack.c.l.b16 %v4262
      %v5099 = vunpack.c.l.b16 %v4272
      %v5100 = vunpack.c.l.b16 %v4282
      %v5101 = vunpack.c.l.b16 %v4296
      %v5102 = vunpack.c.l.b16 %v4306
      %v5103 = vunpack.c.l.b16 %v4316
      %v5104 = vunpack.c.l.b16 %v4326
      %v5105 = vunpack.c.l.b16 %v4340
      %v5106 = vunpack.c.l.b16 %v4350
      %v5107 = vunpack.c.l.b16 %v4360
      %v5108 = vunpack.c.l.b16 %v4370
      %v5109 = vunpack.c.l.b16 %v4384
      %v5110 = vunpack.c.l.b16 %v4394
      %v5111 = vunpack.c.l.b16 %v4404
      %v5112 = vunpack.c.l.b16 %v4414
      %v5113 = vunpack.c.l.b16 %v4428
      %v5114 = vunpack.c.l.b16 %v4438
      %v5115 = vunpack.c.l.b16 %v4448
      %v5116 = vunpack.c.l.b16 %v4458
      %v5117 = vunpack.c.l.b16 %v4472
      %v5118 = vunpack.c.l.b16 %v4482
      %v5119 = vunpack.c.l.b16 %v4492
      %v5120 = vunpack.c.l.b16 %v4502
      %v5121 = vunpack.c.l.b16 %v4516
      %v5122 = vunpack.c.l.b16 %v4526
      %v5123 = vunpack.c.l.b16 %v4536
      %v5124 = vunpack.c.l.b16 %v4546
      %v5125 = vunpack.c.l.b16 %v4560
      %v5126 = vunpack.c.l.b16 %v4570
      %v5127 = vunpack.c.l.b16 %v4580
      %v5128 = vunpack.c.l.b16 %v4590
      %v5129 = vunpack.c.l.b16 %v4604
      %v5130 = vunpack.c.l.b16 %v4614
      %v5131 = vunpack.c.l.b16 %v4624
      %v5132 = vunpack.c.l.b16 %v4634
      %v5133 = vunpack.c.l.b16 %v4648
      %v5134 = vunpack.c.l.b16 %v4658
      %v5135 = vunpack.c.l.b16 %v4668
      %v5136 = vunpack.c.l.b16 %v4678
      %v5137 = vunpack.c.l.b16 %v4692
      %v5138 = vunpack.c.l.b16 %v4702
      %v5139 = vunpack.c.l.b16 %v4712
      %v5140 = vunpack.c.l.b16 %v4722
      %v5141 = vunpack.c.l.b16 %v4736
      %v5142 = vunpack.c.l.b16 %v4746
      %v5143 = vunpack.c.l.b16 %v4756
      %v5144 = vunpack.c.l.b16 %v4766
      %v5145 = vunpack.c.l.b16 %v4780
      %v5146 = vunpack.c.l.b16 %v4790
      %v5147 = vunpack.c.l.b16 %v4800
      %v5148 = vunpack.c.l.b16 %v4810
      %v5149 = vunpack.c.l.b16 %v4824
      %v5150 = vunpack.c.l.b16 %v4834
      %v5151 = vunpack.c.l.b16 %v4844
      %v5152 = vunpack.c.l.b16 %v4854
      %v5153 = vunpack.c.l.b16 %v4868
      %v5154 = vunpack.c.l.b16 %v4878
      %v5155 = vunpack.c.l.b16 %v4888
      %v5156 = vunpack.c.l.b16 %v4898
      %v5157 = vunpack.c.l.b16 %v4912
      %v5158 = vunpack.c.l.b16 %v4922
      %v5159 = vunpack.c.l.b16 %v4932
      %v5160 = vunpack.c.l.b16 %v4942
      %v5161 = vunpack.c.l.b16 %v4956
      %v5162 = vunpack.c.l.b16 %v4966
      %v5163 = vunpack.c.l.b16 %v4976
      %v5164 = vunpack.c.l.b16 %v4986
      %v5165 = vunpack.c.l.b16 %v5000
      %v5166 = vunpack.c.l.b16 %v5010
      %v5167 = vunpack.c.l.b16 %v5020
      %v5168 = vunpack.c.l.b16 %v5030
      %v5169 = vunpack.c.l.b16 %v5044
      %v5170 = vunpack.c.l.b16 %v5054
      %v5171 = vunpack.c.l.b16 %v5064
      %v5172 = vunpack.c.l.b16 %v5074
      %v5173 = vpack.c.b16 %v5078, %v5077
      %v5174 = vpack.c.b16 %v5080, %v5079
      %v5175 = vpack.c.b16 %v5082, %v5081
      %v5176 = vpack.c.b16 %v5084, %v5083
      %v5177 = vpack.c.b16 %v5086, %v5085
      %v5178 = vpack.c.b16 %v5088, %v5087
      %v5179 = vpack.c.b16 %v5090, %v5089
      %v5180 = vpack.c.b16 %v5092, %v5091
      %v5181 = vpack.c.b16 %v5094, %v5093
      %v5182 = vpack.c.b16 %v5096, %v5095
      %v5183 = vpack.c.b16 %v5098, %v5097
      %v5184 = vpack.c.b16 %v5100, %v5099
      %v5185 = vpack.c.b16 %v5102, %v5101
      %v5186 = vpack.c.b16 %v5104, %v5103
      %v5187 = vpack.c.b16 %v5106, %v5105
      %v5188 = vpack.c.b16 %v5108, %v5107
      %v5189 = vpack.c.b16 %v5110, %v5109
      %v5190 = vpack.c.b16 %v5112, %v5111
      %v5191 = vpack.c.b16 %v5114, %v5113
      %v5192 = vpack.c.b16 %v5116, %v5115
      %v5193 = vpack.c.b16 %v5118, %v5117
      %v5194 = vpack.c.b16 %v5120, %v5119
      %v5195 = vpack.c.b16 %v5122, %v5121
      %v5196 = vpack.c.b16 %v5124, %v5123
      %v5197 = vpack.c.b16 %v5126, %v5125
      %v5198 = vpack.c.b16 %v5128, %v5127
      %v5199 = vpack.c.b16 %v5130, %v5129
      %v5200 = vpack.c.b16 %v5132, %v5131
      %v5201 = vpack.c.b16 %v5134, %v5133
      %v5202 = vpack.c.b16 %v5136, %v5135
      %v5203 = vpack.c.b16 %v5138, %v5137
      %v5204 = vpack.c.b16 %v5140, %v5139
      %v5205 = vpack.c.b16 %v5142, %v5141
      %v5206 = vpack.c.b16 %v5144, %v5143
      %v5207 = vpack.c.b16 %v5146, %v5145
      %v5208 = vpack.c.b16 %v5148, %v5147
      %v5209 = vpack.c.b16 %v5150, %v5149
      %v5210 = vpack.c.b16 %v5152, %v5151
      %v5211 = vpack.c.b16 %v5154, %v5153
      %v5212 = vpack.c.b16 %v5156, %v5155
      %v5213 = vpack.c.b16 %v5158, %v5157
      %v5214 = vpack.c.b16 %v5160, %v5159
      %v5215 = vpack.c.b16 %v5162, %v5161
      %v5216 = vpack.c.b16 %v5164, %v5163
      %v5217 = vpack.c.b16 %v5166, %v5165
      %v5218 = vpack.c.b16 %v5168, %v5167
      %v5219 = vpack.c.b16 %v5170, %v5169
      %v5220 = vpack.c.b16 %v5172, %v5171
      %v5222 = vsel %vm1527, %v5173, 0
      %v5225 = vsel %vm1527, %v5174, 0
      %v5228 = vsel %vm1527, %v5175, 0
      %v5231 = vsel %vm1527, %v5176, 0
      %v5234 = vsel %vm1527, %v5177, 0
      %v5237 = vsel %vm1527, %v5178, 0
      %v5240 = vsel %vm1527, %v5179, 0
      %v5243 = vsel %vm1527, %v5180, 0
      %v5246 = vsel %vm1527, %v5181, 0
      %v5249 = vsel %vm1527, %v5182, 0
      %v5252 = vsel %vm1527, %v5183, 0
      %v5255 = vsel %vm1527, %v5184, 0
      %v5258 = vsel %vm1527, %v5185, 0
      %v5261 = vsel %vm1527, %v5186, 0
      %v5264 = vsel %vm1527, %v5187, 0
      %v5267 = vsel %vm1527, %v5188, 0
      %v5270 = vsel %vm1527, %v5189, 0
      %v5273 = vsel %vm1527, %v5190, 0
      %v5276 = vsel %vm1527, %v5191, 0
      %v5279 = vsel %vm1527, %v5192, 0
      %v5282 = vsel %vm1527, %v5193, 0
      %v5285 = vsel %vm1527, %v5194, 0
      %v5288 = vsel %vm1527, %v5195, 0
      %v5291 = vsel %vm1527, %v5196, 0
      %v5294 = vsel %vm1527, %v5197, 0
      %v5297 = vsel %vm1527, %v5198, 0
      %v5300 = vsel %vm1527, %v5199, 0
      %v5303 = vsel %vm1527, %v5200, 0
      %v5306 = vsel %vm1527, %v5201, 0
      %v5309 = vsel %vm1527, %v5202, 0
      %v5312 = vsel %vm1527, %v5203, 0
      %v5315 = vsel %vm1527, %v5204, 0
      %v5318 = vsel %vm1527, %v5205, 0
      %v5321 = vsel %vm1527, %v5206, 0
      %v5324 = vsel %vm1527, %v5207, 0
      %v5327 = vsel %vm1527, %v5208, 0
      %v5330 = vsel %vm1527, %v5209, 0
      %v5333 = vsel %vm1527, %v5210, 0
      %v5336 = vsel %vm1527, %v5211, 0
      %v5339 = vsel %vm1527, %v5212, 0
      %v5342 = vsel %vm1527, %v5213, 0
      %v5345 = vsel %vm1527, %v5214, 0
      %v5348 = vsel %vm1527, %v5215, 0
      %v5351 = vsel %vm1527, %v5216, 0
      %v5354 = vsel %vm1527, %v5217, 0
      %v5357 = vsel %vm1527, %v5218, 0
      %v5360 = vsel %vm1527, %v5219, 0
      %v5363 = vsel %vm1527, %v5220, 0
      %v5366 = vsel %vm1672, %v5076, 0
      %5368 = vmatprep.subr.bf16.mxu0 0
      %5369 = vmatpush1.bf16.msra.mxu0 %v5366
      %5370 = vmatprep.subr.bf16.mxu0 0
      %5371 = vmatpush1.bf16.msra.mxu0 0
      %5372 = vmatprep.subr.bf16.mxu0 0
      %5373 = vmatpush1.bf16.msra.mxu0 0
      %5374 = vmatprep.subr.bf16.mxu0 0
      %5375 = vmatpush1.bf16.msra.mxu0 0
      %5376 = vmatprep.subr.bf16.mxu0 0
      %5377 = vmatpush1.bf16.msra.mxu0 0
      %5378 = vmatprep.subr.bf16.mxu0 0
      %5379 = vmatpush1.bf16.msra.mxu0 0
      %5380 = vmatprep.subr.bf16.mxu0 0
      %5381 = vmatpush1.bf16.msra.mxu0 0
      %5382 = vmatprep.subr.bf16.mxu0 0
      %5383 = vmatpush1.bf16.msra.mxu0 0
      %5384 = vmatprep.subr.bf16.mxu0 0
      %5385 = vmatpush1.bf16.msra.mxu0 0
      %5386 = vmatprep.subr.bf16.mxu0 0
      %5387 = vmatpush1.bf16.msra.mxu0 0
      %5388 = vmatprep.subr.bf16.mxu0 0
      %5389 = vmatpush1.bf16.msra.mxu0 0
      %5390 = vmatprep.subr.bf16.mxu0 0
      %5391 = vmatpush1.bf16.msra.mxu0 0
      %5392 = vmatprep.subr.bf16.mxu0 0
      %5393 = vmatpush1.bf16.msra.mxu0 0
      %5394 = vmatprep.subr.bf16.mxu0 0
      %5395 = vmatpush1.bf16.msra.mxu0 0
      %5396 = vmatprep.subr.bf16.mxu0 0
      %5397 = vmatpush1.bf16.msra.mxu0 0
      %5398 = vmatprep.subr.bf16.mxu0 0
      %5399 = vmatpush1.bf16.msra.mxu0 0
      %5400 = vmatprep.mubr.bf16.mxu0 0
      %5401 = vmatmul.mubr.bf16.gmra.mrb[0].mxu0 %v5222
      %v5402 = vpop.f32.mrb[0].mxu0
      %v5403 = vadd.f32 0.0, %v5402
      %v5404 = vpop.f32.mrb[0].mxu0
      %v5405 = vpop.f32.mrb[0].mxu0
      %v5406 = vadd.f32 0.0, %v5405
      %v5407 = vpop.f32.mrb[0].mxu0
      %5408 = vmatprep.mubr.bf16.mxu0 0
      %5409 = vmatmul.mubr.bf16.gmra.mrb[0].mxu0 %v5225
      %v5410 = vpop.f32.mrb[0].mxu0
      %v5411 = vadd.f32 0.0, %v5410
      %v5412 = vpop.f32.mrb[0].mxu0
      %v5413 = vpop.f32.mrb[0].mxu0
      %v5414 = vadd.f32 0.0, %v5413
      %v5415 = vpop.f32.mrb[0].mxu0
      %5416 = vmatprep.mubr.bf16.mxu0 0
      %5417 = vmatmul.mubr.bf16.gmra.mrb[0].mxu0 %v5228
      %v5418 = vpop.f32.mrb[0].mxu0
      %v5419 = vadd.f32 0.0, %v5418
      %v5420 = vpop.f32.mrb[0].mxu0
      %v5421 = vpop.f32.mrb[0].mxu0
      %v5422 = vadd.f32 0.0, %v5421
      %v5423 = vpop.f32.mrb[0].mxu0
      %5424 = vmatprep.mubr.bf16.mxu0 0
      %5425 = vmatmul.mubr.bf16.gmra.mrb[0].mxu0 %v5231
      %v5426 = vpop.f32.mrb[0].mxu0
      %v5427 = vadd.f32 0.0, %v5426
      %v5428 = vpop.f32.mrb[0].mxu0
      %v5429 = vpop.f32.mrb[0].mxu0
      %v5430 = vadd.f32 0.0, %v5429
      %v5431 = vpop.f32.mrb[0].mxu0
      %5432 = vmatprep.mubr.bf16.mxu0 0
      %5433 = vmatmul.mubr.bf16.gmra.mrb[0].mxu0 %v5234
      %v5434 = vpop.f32.mrb[0].mxu0
      %v5435 = vadd.f32 0.0, %v5434
      %v5436 = vpop.f32.mrb[0].mxu0
      %v5437 = vpop.f32.mrb[0].mxu0
      %v5438 = vadd.f32 0.0, %v5437
      %v5439 = vpop.f32.mrb[0].mxu0
      %5440 = vmatprep.mubr.bf16.mxu0 0
      %5441 = vmatmul.mubr.bf16.gmra.mrb[0].mxu0 %v5237
      %v5442 = vpop.f32.mrb[0].mxu0
      %v5443 = vadd.f32 0.0, %v5442
      %v5444 = vpop.f32.mrb[0].mxu0
      %v5445 = vpop.f32.mrb[0].mxu0
      %v5446 = vadd.f32 0.0, %v5445
      %v5447 = vpop.f32.mrb[0].mxu0
      %5448 = vmatprep.mubr.bf16.mxu0 0
      %5449 = vmatmul.mubr.bf16.gmra.mrb[0].mxu0 %v5240
      %v5450 = vpop.f32.mrb[0].mxu0
      %v5451 = vadd.f32 0.0, %v5450
      %v5452 = vpop.f32.mrb[0].mxu0
      %v5453 = vpop.f32.mrb[0].mxu0
      %v5454 = vadd.f32 0.0, %v5453
      %v5455 = vpop.f32.mrb[0].mxu0
      %5456 = vmatprep.mubr.bf16.mxu0 0
      %5457 = vmatmul.mubr.bf16.gmra.mrb[0].mxu0 %v5243
      %v5458 = vpop.f32.mrb[0].mxu0
      %v5459 = vadd.f32 0.0, %v5458
      %v5460 = vpop.f32.mrb[0].mxu0
      %v5461 = vpop.f32.mrb[0].mxu0
      %v5462 = vadd.f32 0.0, %v5461
      %v5463 = vpop.f32.mrb[0].mxu0
      %5464 = vmatprep.mubr.bf16.mxu0 0
      %5465 = vmatmul.mubr.bf16.gmra.mrb[0].mxu0 %v5246
      %v5466 = vpop.f32.mrb[0].mxu0
      %v5467 = vadd.f32 0.0, %v5466
      %v5468 = vpop.f32.mrb[0].mxu0
      %v5469 = vpop.f32.mrb[0].mxu0
      %v5470 = vadd.f32 0.0, %v5469
      %v5471 = vpop.f32.mrb[0].mxu0
      %5472 = vmatprep.mubr.bf16.mxu0 0
      %5473 = vmatmul.mubr.bf16.gmra.mrb[0].mxu0 %v5249
      %v5474 = vpop.f32.mrb[0].mxu0
      %v5475 = vadd.f32 0.0, %v5474
      %v5476 = vpop.f32.mrb[0].mxu0
      %v5477 = vpop.f32.mrb[0].mxu0
      %v5478 = vadd.f32 0.0, %v5477
      %v5479 = vpop.f32.mrb[0].mxu0
      %5480 = vmatprep.mubr.bf16.mxu0 0
      %5481 = vmatmul.mubr.bf16.gmra.mrb[0].mxu0 %v5252
      %v5482 = vpop.f32.mrb[0].mxu0
      %v5483 = vadd.f32 0.0, %v5482
      %v5484 = vpop.f32.mrb[0].mxu0
      %v5485 = vpop.f32.mrb[0].mxu0
      %v5486 = vadd.f32 0.0, %v5485
      %v5487 = vpop.f32.mrb[0].mxu0
      %5488 = vmatprep.mubr.bf16.mxu0 0
      %5489 = vmatmul.mubr.bf16.gmra.mrb[0].mxu0 %v5255
      %v5490 = vpop.f32.mrb[0].mxu0
      %v5491 = vadd.f32 0.0, %v5490
      %v5492 = vpop.f32.mrb[0].mxu0
      %v5493 = vpop.f32.mrb[0].mxu0
      %v5494 = vadd.f32 0.0, %v5493
      %v5495 = vpop.f32.mrb[0].mxu0
      %5496 = vmatprep.mubr.bf16.mxu0 0
      %5497 = vmatmul.mubr.bf16.gmra.mrb[0].mxu0 %v5258
      %v5498 = vpop.f32.mrb[0].mxu0
      %v5499 = vadd.f32 0.0, %v5498
      %v5500 = vpop.f32.mrb[0].mxu0
      %v5501 = vpop.f32.mrb[0].mxu0
      %v5502 = vadd.f32 0.0, %v5501
      %v5503 = vpop.f32.mrb[0].mxu0
      %5504 = vmatprep.mubr.bf16.mxu0 0
      %5505 = vmatmul.mubr.bf16.gmra.mrb[0].mxu0 %v5261
      %v5506 = vpop.f32.mrb[0].mxu0
      %v5507 = vadd.f32 0.0, %v5506
      %v5508 = vpop.f32.mrb[0].mxu0
      %v5509 = vpop.f32.mrb[0].mxu0
      %v5510 = vadd.f32 0.0, %v5509
      %v5511 = vpop.f32.mrb[0].mxu0
      %5512 = vmatprep.mubr.bf16.mxu0 0
      %5513 = vmatmul.mubr.bf16.gmra.mrb[0].mxu0 %v5264
      %v5514 = vpop.f32.mrb[0].mxu0
      %v5515 = vadd.f32 0.0, %v5514
      %v5516 = vpop.f32.mrb[0].mxu0
      %v5517 = vpop.f32.mrb[0].mxu0
      %v5518 = vadd.f32 0.0, %v5517
      %v5519 = vpop.f32.mrb[0].mxu0
      %5520 = vmatprep.mubr.bf16.mxu0 0
      %5521 = vmatmul.mubr.bf16.gmra.mrb[0].mxu0 %v5267
      %v5522 = vpop.f32.mrb[0].mxu0
      %v5523 = vadd.f32 0.0, %v5522
      %v5524 = vpop.f32.mrb[0].mxu0
      %v5525 = vpop.f32.mrb[0].mxu0
      %v5526 = vadd.f32 0.0, %v5525
      %v5527 = vpop.f32.mrb[0].mxu0
      %5528 = vmatprep.mubr.bf16.mxu0 0
      %5529 = vmatmul.mubr.bf16.gmra.mrb[0].mxu0 %v5270
      %v5530 = vpop.f32.mrb[0].mxu0
      %v5531 = vadd.f32 0.0, %v5530
      %v5532 = vpop.f32.mrb[0].mxu0
      %v5533 = vpop.f32.mrb[0].mxu0
      %v5534 = vadd.f32 0.0, %v5533
      %v5535 = vpop.f32.mrb[0].mxu0
      %5536 = vmatprep.mubr.bf16.mxu0 0
      %5537 = vmatmul.mubr.bf16.gmra.mrb[0].mxu0 %v5273
      %v5538 = vpop.f32.mrb[0].mxu0
      %v5539 = vadd.f32 0.0, %v5538
      %v5540 = vpop.f32.mrb[0].mxu0
      %v5541 = vpop.f32.mrb[0].mxu0
      %v5542 = vadd.f32 0.0, %v5541
      %v5543 = vpop.f32.mrb[0].mxu0
      %5544 = vmatprep.mubr.bf16.mxu0 0
      %5545 = vmatmul.mubr.bf16.gmra.mrb[0].mxu0 %v5276
      %v5546 = vpop.f32.mrb[0].mxu0
      %v5547 = vadd.f32 0.0, %v5546
      %v5548 = vpop.f32.mrb[0].mxu0
      %v5549 = vpop.f32.mrb[0].mxu0
      %v5550 = vadd.f32 0.0, %v5549
      %v5551 = vpop.f32.mrb[0].mxu0
      %5552 = vmatprep.mubr.bf16.mxu0 0
      %5553 = vmatmul.mubr.bf16.gmra.mrb[0].mxu0 %v5279
      %v5554 = vpop.f32.mrb[0].mxu0
      %v5555 = vadd.f32 0.0, %v5554
      %v5556 = vpop.f32.mrb[0].mxu0
      %v5557 = vpop.f32.mrb[0].mxu0
      %v5558 = vadd.f32 0.0, %v5557
      %v5559 = vpop.f32.mrb[0].mxu0
      %5560 = vmatprep.mubr.bf16.mxu0 0
      %5561 = vmatmul.mubr.bf16.gmra.mrb[0].mxu0 %v5282
      %v5562 = vpop.f32.mrb[0].mxu0
      %v5563 = vadd.f32 0.0, %v5562
      %v5564 = vpop.f32.mrb[0].mxu0
      %v5565 = vpop.f32.mrb[0].mxu0
      %v5566 = vadd.f32 0.0, %v5565
      %v5567 = vpop.f32.mrb[0].mxu0
      %5568 = vmatprep.mubr.bf16.mxu0 0
      %5569 = vmatmul.mubr.bf16.gmra.mrb[0].mxu0 %v5285
      %v5570 = vpop.f32.mrb[0].mxu0
      %v5571 = vadd.f32 0.0, %v5570
      %v5572 = vpop.f32.mrb[0].mxu0
      %v5573 = vpop.f32.mrb[0].mxu0
      %v5574 = vadd.f32 0.0, %v5573
      %v5575 = vpop.f32.mrb[0].mxu0
      %5576 = vmatprep.mubr.bf16.mxu0 0
      %5577 = vmatmul.mubr.bf16.gmra.mrb[0].mxu0 %v5288
      %v5578 = vpop.f32.mrb[0].mxu0
      %v5579 = vadd.f32 0.0, %v5578
      %v5580 = vpop.f32.mrb[0].mxu0
      %v5581 = vpop.f32.mrb[0].mxu0
      %v5582 = vadd.f32 0.0, %v5581
      %v5583 = vpop.f32.mrb[0].mxu0
      %5584 = vmatprep.mubr.bf16.mxu0 0
      %5585 = vmatmul.mubr.bf16.gmra.mrb[0].mxu0 %v5291
      %v5586 = vpop.f32.mrb[0].mxu0
      %v5587 = vadd.f32 0.0, %v5586
      %v5588 = vpop.f32.mrb[0].mxu0
      %v5589 = vpop.f32.mrb[0].mxu0
      %v5590 = vadd.f32 0.0, %v5589
      %v5591 = vpop.f32.mrb[0].mxu0
      %5592 = vmatprep.mubr.bf16.mxu0 0
      %5593 = vmatmul.mubr.bf16.gmra.mrb[0].mxu0 %v5294
      %v5594 = vpop.f32.mrb[0].mxu0
      %v5595 = vadd.f32 0.0, %v5594
      %v5596 = vpop.f32.mrb[0].mxu0
      %v5597 = vpop.f32.mrb[0].mxu0
      %v5598 = vadd.f32 0.0, %v5597
      %v5599 = vpop.f32.mrb[0].mxu0
      %5600 = vmatprep.mubr.bf16.mxu0 0
      %5601 = vmatmul.mubr.bf16.gmra.mrb[0].mxu0 %v5297
      %v5602 = vpop.f32.mrb[0].mxu0
      %v5603 = vadd.f32 0.0, %v5602
      %v5604 = vpop.f32.mrb[0].mxu0
      %v5605 = vpop.f32.mrb[0].mxu0
      %v5606 = vadd.f32 0.0, %v5605
      %v5607 = vpop.f32.mrb[0].mxu0
      %5608 = vmatprep.mubr.bf16.mxu0 0
      %5609 = vmatmul.mubr.bf16.gmra.mrb[0].mxu0 %v5300
      %v5610 = vpop.f32.mrb[0].mxu0
      %v5611 = vadd.f32 0.0, %v5610
      %v5612 = vpop.f32.mrb[0].mxu0
      %v5613 = vpop.f32.mrb[0].mxu0
      %v5614 = vadd.f32 0.0, %v5613
      %v5615 = vpop.f32.mrb[0].mxu0
      %5616 = vmatprep.mubr.bf16.mxu0 0
      %5617 = vmatmul.mubr.bf16.gmra.mrb[0].mxu0 %v5303
      %v5618 = vpop.f32.mrb[0].mxu0
      %v5619 = vadd.f32 0.0, %v5618
      %v5620 = vpop.f32.mrb[0].mxu0
      %v5621 = vpop.f32.mrb[0].mxu0
      %v5622 = vadd.f32 0.0, %v5621
      %v5623 = vpop.f32.mrb[0].mxu0
      %5624 = vmatprep.mubr.bf16.mxu0 0
      %5625 = vmatmul.mubr.bf16.gmra.mrb[0].mxu0 %v5306
      %v5626 = vpop.f32.mrb[0].mxu0
      %v5627 = vadd.f32 0.0, %v5626
      %v5628 = vpop.f32.mrb[0].mxu0
      %v5629 = vpop.f32.mrb[0].mxu0
      %v5630 = vadd.f32 0.0, %v5629
      %v5631 = vpop.f32.mrb[0].mxu0
      %5632 = vmatprep.mubr.bf16.mxu0 0
      %5633 = vmatmul.mubr.bf16.gmra.mrb[0].mxu0 %v5309
      %v5634 = vpop.f32.mrb[0].mxu0
      %v5635 = vadd.f32 0.0, %v5634
      %v5636 = vpop.f32.mrb[0].mxu0
      %v5637 = vpop.f32.mrb[0].mxu0
      %v5638 = vadd.f32 0.0, %v5637
      %v5639 = vpop.f32.mrb[0].mxu0
      %5640 = vmatprep.mubr.bf16.mxu0 0
      %5641 = vmatmul.mubr.bf16.gmra.mrb[0].mxu0 %v5312
      %v5642 = vpop.f32.mrb[0].mxu0
      %v5643 = vadd.f32 0.0, %v5642
      %v5644 = vpop.f32.mrb[0].mxu0
      %v5645 = vpop.f32.mrb[0].mxu0
      %v5646 = vadd.f32 0.0, %v5645
      %v5647 = vpop.f32.mrb[0].mxu0
      %5648 = vmatprep.mubr.bf16.mxu0 0
      %5649 = vmatmul.mubr.bf16.gmra.mrb[0].mxu0 %v5315
      %v5650 = vpop.f32.mrb[0].mxu0
      %v5651 = vadd.f32 0.0, %v5650
      %v5652 = vpop.f32.mrb[0].mxu0
      %v5653 = vpop.f32.mrb[0].mxu0
      %v5654 = vadd.f32 0.0, %v5653
      %v5655 = vpop.f32.mrb[0].mxu0
      %5656 = vmatprep.mubr.bf16.mxu0 0
      %5657 = vmatmul.mubr.bf16.gmra.mrb[0].mxu0 %v5318
      %v5658 = vpop.f32.mrb[0].mxu0
      %v5659 = vadd.f32 0.0, %v5658
      %v5660 = vpop.f32.mrb[0].mxu0
      %v5661 = vpop.f32.mrb[0].mxu0
      %v5662 = vadd.f32 0.0, %v5661
      %v5663 = vpop.f32.mrb[0].mxu0
      %5664 = vmatprep.mubr.bf16.mxu0 0
      %5665 = vmatmul.mubr.bf16.gmra.mrb[0].mxu0 %v5321
      %v5666 = vpop.f32.mrb[0].mxu0
      %v5667 = vadd.f32 0.0, %v5666
      %v5668 = vpop.f32.mrb[0].mxu0
      %v5669 = vpop.f32.mrb[0].mxu0
      %v5670 = vadd.f32 0.0, %v5669
      %v5671 = vpop.f32.mrb[0].mxu0
      %5672 = vmatprep.mubr.bf16.mxu0 0
      %5673 = vmatmul.mubr.bf16.gmra.mrb[0].mxu0 %v5324
      %v5674 = vpop.f32.mrb[0].mxu0
      %v5675 = vadd.f32 0.0, %v5674
      %v5676 = vpop.f32.mrb[0].mxu0
      %v5677 = vpop.f32.mrb[0].mxu0
      %v5678 = vadd.f32 0.0, %v5677
      %v5679 = vpop.f32.mrb[0].mxu0
      %5680 = vmatprep.mubr.bf16.mxu0 0
      %5681 = vmatmul.mubr.bf16.gmra.mrb[0].mxu0 %v5327
      %v5682 = vpop.f32.mrb[0].mxu0
      %v5683 = vadd.f32 0.0, %v5682
      %v5684 = vpop.f32.mrb[0].mxu0
      %v5685 = vpop.f32.mrb[0].mxu0
      %v5686 = vadd.f32 0.0, %v5685
      %v5687 = vpop.f32.mrb[0].mxu0
      %5688 = vmatprep.mubr.bf16.mxu0 0
      %5689 = vmatmul.mubr.bf16.gmra.mrb[0].mxu0 %v5330
      %v5690 = vpop.f32.mrb[0].mxu0
      %v5691 = vadd.f32 0.0, %v5690
      %v5692 = vpop.f32.mrb[0].mxu0
      %v5693 = vpop.f32.mrb[0].mxu0
      %v5694 = vadd.f32 0.0, %v5693
      %v5695 = vpop.f32.mrb[0].mxu0
      %5696 = vmatprep.mubr.bf16.mxu0 0
      %5697 = vmatmul.mubr.bf16.gmra.mrb[0].mxu0 %v5333
      %v5698 = vpop.f32.mrb[0].mxu0
      %v5699 = vadd.f32 0.0, %v5698
      %v5700 = vpop.f32.mrb[0].mxu0
      %v5701 = vpop.f32.mrb[0].mxu0
      %v5702 = vadd.f32 0.0, %v5701
      %v5703 = vpop.f32.mrb[0].mxu0
      %5704 = vmatprep.mubr.bf16.mxu0 0
      %5705 = vmatmul.mubr.bf16.gmra.mrb[0].mxu0 %v5336
      %v5706 = vpop.f32.mrb[0].mxu0
      %v5707 = vadd.f32 0.0, %v5706
      %v5708 = vpop.f32.mrb[0].mxu0
      %v5709 = vpop.f32.mrb[0].mxu0
      %v5710 = vadd.f32 0.0, %v5709
      %v5711 = vpop.f32.mrb[0].mxu0
      %5712 = vmatprep.mubr.bf16.mxu0 0
      %5713 = vmatmul.mubr.bf16.gmra.mrb[0].mxu0 %v5339
      %v5714 = vpop.f32.mrb[0].mxu0
      %v5715 = vadd.f32 0.0, %v5714
      %v5716 = vpop.f32.mrb[0].mxu0
      %v5717 = vpop.f32.mrb[0].mxu0
      %v5718 = vadd.f32 0.0, %v5717
      %v5719 = vpop.f32.mrb[0].mxu0
      %5720 = vmatprep.mubr.bf16.mxu0 0
      %5721 = vmatmul.mubr.bf16.gmra.mrb[0].mxu0 %v5342
      %v5722 = vpop.f32.mrb[0].mxu0
      %v5723 = vadd.f32 0.0, %v5722
      %v5724 = vpop.f32.mrb[0].mxu0
      %v5725 = vpop.f32.mrb[0].mxu0
      %v5726 = vadd.f32 0.0, %v5725
      %v5727 = vpop.f32.mrb[0].mxu0
      %5728 = vmatprep.mubr.bf16.mxu0 0
      %5729 = vmatmul.mubr.bf16.gmra.mrb[0].mxu0 %v5345
      %v5730 = vpop.f32.mrb[0].mxu0
      %v5731 = vadd.f32 0.0, %v5730
      %v5732 = vpop.f32.mrb[0].mxu0
      %v5733 = vpop.f32.mrb[0].mxu0
      %v5734 = vadd.f32 0.0, %v5733
      %v5735 = vpop.f32.mrb[0].mxu0
      %5736 = vmatprep.mubr.bf16.mxu0 0
      %5737 = vmatmul.mubr.bf16.gmra.mrb[0].mxu0 %v5348
      %v5738 = vpop.f32.mrb[0].mxu0
      %v5739 = vadd.f32 0.0, %v5738
      %v5740 = vpop.f32.mrb[0].mxu0
      %v5741 = vpop.f32.mrb[0].mxu0
      %v5742 = vadd.f32 0.0, %v5741
      %v5743 = vpop.f32.mrb[0].mxu0
      %5744 = vmatprep.mubr.bf16.mxu0 0
      %5745 = vmatmul.mubr.bf16.gmra.mrb[0].mxu0 %v5351
      %v5746 = vpop.f32.mrb[0].mxu0
      %v5747 = vadd.f32 0.0, %v5746
      %v5748 = vpop.f32.mrb[0].mxu0
      %v5749 = vpop.f32.mrb[0].mxu0
      %v5750 = vadd.f32 0.0, %v5749
      %v5751 = vpop.f32.mrb[0].mxu0
      %5752 = vmatprep.mubr.bf16.mxu0 0
      %5753 = vmatmul.mubr.bf16.gmra.mrb[0].mxu0 %v5354
      %v5754 = vpop.f32.mrb[0].mxu0
      %v5755 = vadd.f32 0.0, %v5754
      %v5756 = vpop.f32.mrb[0].mxu0
      %v5757 = vpop.f32.mrb[0].mxu0
      %v5758 = vadd.f32 0.0, %v5757
      %v5759 = vpop.f32.mrb[0].mxu0
      %5760 = vmatprep.mubr.bf16.mxu0 0
      %5761 = vmatmul.mubr.bf16.gmra.mrb[0].mxu0 %v5357
      %v5762 = vpop.f32.mrb[0].mxu0
      %v5763 = vadd.f32 0.0, %v5762
      %v5764 = vpop.f32.mrb[0].mxu0
      %v5765 = vpop.f32.mrb[0].mxu0
      %v5766 = vadd.f32 0.0, %v5765
      %v5767 = vpop.f32.mrb[0].mxu0
      %5768 = vmatprep.mubr.bf16.mxu0 0
      %5769 = vmatmul.mubr.bf16.gmra.mrb[0].mxu0 %v5360
      %v5770 = vpop.f32.mrb[0].mxu0
      %v5771 = vadd.f32 0.0, %v5770
      %v5772 = vpop.f32.mrb[0].mxu0
      %v5773 = vpop.f32.mrb[0].mxu0
      %v5774 = vadd.f32 0.0, %v5773
      %v5775 = vpop.f32.mrb[0].mxu0
      %5776 = vmatprep.mubr.bf16.mxu0 0
      %5777 = vmatmul.mubr.bf16.gmra.mrb[0].mxu0 %v5363
      %v5778 = vpop.f32.mrb[0].mxu0
      %v5779 = vadd.f32 0.0, %v5778
      %v5780 = vpop.f32.mrb[0].mxu0
      %v5781 = vpop.f32.mrb[0].mxu0
      %v5782 = vadd.f32 0.0, %v5781
      %v5783 = vpop.f32.mrb[0].mxu0
      %5784 = vdwg.mxu0
      %v5785 = vadd.f32 %v3803, %v5403
      %v5786 = vadd.f32 %v3804, %v5406
      %v5787 = vadd.f32 %v3805, %v5411
      %v5788 = vadd.f32 %v3806, %v5414
      %v5789 = vadd.f32 %v3807, %v5419
      %v5790 = vadd.f32 %v3808, %v5422
      %v5791 = vadd.f32 %v3809, %v5427
      %v5792 = vadd.f32 %v3810, %v5430
      %v5793 = vadd.f32 %v3811, %v5435
      %v5794 = vadd.f32 %v3812, %v5438
      %v5795 = vadd.f32 %v3813, %v5443
      %v5796 = vadd.f32 %v3814, %v5446
      %v5797 = vadd.f32 %v3815, %v5451
      %v5798 = vadd.f32 %v3816, %v5454
      %v5799 = vadd.f32 %v3817, %v5459
      %v5800 = vadd.f32 %v3818, %v5462
      %v5801 = vadd.f32 %v3819, %v5467
      %v5802 = vadd.f32 %v3820, %v5470
      %v5803 = vadd.f32 %v3821, %v5475
      %v5804 = vadd.f32 %v3822, %v5478
      %v5805 = vadd.f32 %v3823, %v5483
      %v5806 = vadd.f32 %v3824, %v5486
      %v5807 = vadd.f32 %v3825, %v5491
      %v5808 = vadd.f32 %v3826, %v5494
      %v5809 = vadd.f32 %v3827, %v5499
      %v5810 = vadd.f32 %v3828, %v5502
      %v5811 = vadd.f32 %v3829, %v5507
      %v5812 = vadd.f32 %v3830, %v5510
      %v5813 = vadd.f32 %v3831, %v5515
      %v5814 = vadd.f32 %v3832, %v5518
      %v5815 = vadd.f32 %v3833, %v5523
      %v5816 = vadd.f32 %v3834, %v5526
      %v5817 = vadd.f32 %v3835, %v5531
      %v5818 = vadd.f32 %v3836, %v5534
      %v5819 = vadd.f32 %v3837, %v5539
      %v5820 = vadd.f32 %v3838, %v5542
      %v5821 = vadd.f32 %v3839, %v5547
      %v5822 = vadd.f32 %v3840, %v5550
      %v5823 = vadd.f32 %v3841, %v5555
      %v5824 = vadd.f32 %v3842, %v5558
      %v5825 = vadd.f32 %v3843, %v5563
      %v5826 = vadd.f32 %v3844, %v5566
      %v5827 = vadd.f32 %v3845, %v5571
      %v5828 = vadd.f32 %v3846, %v5574
      %v5829 = vadd.f32 %v3847, %v5579
      %v5830 = vadd.f32 %v3848, %v5582
      %v5831 = vadd.f32 %v3849, %v5587
      %v5832 = vadd.f32 %v3850, %v5590
      %v5833 = vadd.f32 %v3851, %v5595
      %v5834 = vadd.f32 %v3852, %v5598
      %v5835 = vadd.f32 %v3853, %v5603
      %v5836 = vadd.f32 %v3854, %v5606
      %v5837 = vadd.f32 %v3855, %v5611
      %v5838 = vadd.f32 %v3856, %v5614
      %v5839 = vadd.f32 %v3857, %v5619
      %v5840 = vadd.f32 %v3858, %v5622
      %v5841 = vadd.f32 %v3859, %v5627
      %v5842 = vadd.f32 %v3860, %v5630
      %v5843 = vadd.f32 %v3861, %v5635
      %v5844 = vadd.f32 %v3862, %v5638
      %v5845 = vadd.f32 %v3863, %v5643
      %v5846 = vadd.f32 %v3864, %v5646
      %v5847 = vadd.f32 %v3865, %v5651
      %v5848 = vadd.f32 %v3866, %v5654
      %v5849 = vadd.f32 %v3867, %v5659
      %v5850 = vadd.f32 %v3868, %v5662
      %v5851 = vadd.f32 %v3869, %v5667
      %v5852 = vadd.f32 %v3870, %v5670
      %v5853 = vadd.f32 %v3871, %v5675
      %v5854 = vadd.f32 %v3872, %v5678
      %v5855 = vadd.f32 %v3873, %v5683
      %v5856 = vadd.f32 %v3874, %v5686
      %v5857 = vadd.f32 %v3875, %v5691
      %v5858 = vadd.f32 %v3876, %v5694
      %v5859 = vadd.f32 %v3877, %v5699
      %v5860 = vadd.f32 %v3878, %v5702
      %v5861 = vadd.f32 %v3879, %v5707
      %v5862 = vadd.f32 %v3880, %v5710
      %v5863 = vadd.f32 %v3881, %v5715
      %v5864 = vadd.f32 %v3882, %v5718
      %v5865 = vadd.f32 %v3883, %v5723
      %v5866 = vadd.f32 %v3884, %v5726
      %v5867 = vadd.f32 %v3885, %v5731
      %v5868 = vadd.f32 %v3886, %v5734
      %v5869 = vadd.f32 %v3887, %v5739
      %v5870 = vadd.f32 %v3888, %v5742
      %v5871 = vadd.f32 %v3889, %v5747
      %v5872 = vadd.f32 %v3890, %v5750
      %v5873 = vadd.f32 %v3891, %v5755
      %v5874 = vadd.f32 %v3892, %v5758
      %v5875 = vadd.f32 %v3893, %v5763
      %v5876 = vadd.f32 %v3894, %v5766
      %v5877 = vadd.f32 %v3895, %v5771
      %v5878 = vadd.f32 %v3896, %v5774
      %v5879 = vadd.f32 %v3897, %v5779
      %v5880 = vadd.f32 %v3898, %v5782
      %v5881 = vld [vmem:[%s2] sm:$0x1]
      %v5883 = vlaneseq
      %v5884 = vshrl.u32 %v5883, 7
      %v5885 = vsub.s32 0, %v5884
      %v5886 = vrot.slane %v5881, %v5885
      %v5888 = vadd.f32 %v5785, %v5886
      %v5889 = vadd.f32 %v5786, %v5886
      %v5890 = vadd.f32 %v5787, %v5886
      %v5891 = vadd.f32 %v5788, %v5886
      %v5892 = vadd.f32 %v5789, %v5886
      %v5893 = vadd.f32 %v5790, %v5886
      %v5894 = vadd.f32 %v5791, %v5886
      %v5895 = vadd.f32 %v5792, %v5886
      %v5896 = vadd.f32 %v5793, %v5886
      %v5897 = vadd.f32 %v5794, %v5886
      %v5898 = vadd.f32 %v5795, %v5886
      %v5899 = vadd.f32 %v5796, %v5886
      %v5900 = vadd.f32 %v5797, %v5886
      %v5901 = vadd.f32 %v5798, %v5886
      %v5902 = vadd.f32 %v5799, %v5886
      %v5903 = vadd.f32 %v5800, %v5886
      %v5904 = vadd.f32 %v5801, %v5886
      %v5905 = vadd.f32 %v5802, %v5886
      %v5906 = vadd.f32 %v5803, %v5886
      %v5907 = vadd.f32 %v5804, %v5886
      %v5908 = vadd.f32 %v5805, %v5886
      %v5909 = vadd.f32 %v5806, %v5886
      %v5910 = vadd.f32 %v5807, %v5886
      %v5911 = vadd.f32 %v5808, %v5886
      %v5912 = vadd.f32 %v5809, %v5886
      %v5913 = vadd.f32 %v5810, %v5886
      %v5914 = vadd.f32 %v5811, %v5886
      %v5915 = vadd.f32 %v5812, %v5886
      %v5916 = vadd.f32 %v5813, %v5886
      %v5917 = vadd.f32 %v5814, %v5886
      %v5918 = vadd.f32 %v5815, %v5886
      %v5919 = vadd.f32 %v5816, %v5886
      %v5920 = vadd.f32 %v5817, %v5886
      %v5921 = vadd.f32 %v5818, %v5886
      %v5922 = vadd.f32 %v5819, %v5886
      %v5923 = vadd.f32 %v5820, %v5886
      %v5924 = vadd.f32 %v5821, %v5886
      %v5925 = vadd.f32 %v5822, %v5886
      %v5926 = vadd.f32 %v5823, %v5886
      %v5927 = vadd.f32 %v5824, %v5886
      %v5928 = vadd.f32 %v5825, %v5886
      %v5929 = vadd.f32 %v5826, %v5886
      %v5930 = vadd.f32 %v5827, %v5886
      %v5931 = vadd.f32 %v5828, %v5886
      %v5932 = vadd.f32 %v5829, %v5886
      %v5933 = vadd.f32 %v5830, %v5886
      %v5934 = vadd.f32 %v5831, %v5886
      %v5935 = vadd.f32 %v5832, %v5886
      %v5936 = vadd.f32 %v5833, %v5886
      %v5937 = vadd.f32 %v5834, %v5886
      %v5938 = vadd.f32 %v5835, %v5886
      %v5939 = vadd.f32 %v5836, %v5886
      %v5940 = vadd.f32 %v5837, %v5886
      %v5941 = vadd.f32 %v5838, %v5886
      %v5942 = vadd.f32 %v5839, %v5886
      %v5943 = vadd.f32 %v5840, %v5886
      %v5944 = vadd.f32 %v5841, %v5886
      %v5945 = vadd.f32 %v5842, %v5886
      %v5946 = vadd.f32 %v5843, %v5886
      %v5947 = vadd.f32 %v5844, %v5886
      %v5948 = vadd.f32 %v5845, %v5886
      %v5949 = vadd.f32 %v5846, %v5886
      %v5950 = vadd.f32 %v5847, %v5886
      %v5951 = vadd.f32 %v5848, %v5886
      %v5952 = vadd.f32 %v5849, %v5886
      %v5953 = vadd.f32 %v5850, %v5886
      %v5954 = vadd.f32 %v5851, %v5886
      %v5955 = vadd.f32 %v5852, %v5886
      %v5956 = vadd.f32 %v5853, %v5886
      %v5957 = vadd.f32 %v5854, %v5886
      %v5958 = vadd.f32 %v5855, %v5886
      %v5959 = vadd.f32 %v5856, %v5886
      %v5960 = vadd.f32 %v5857, %v5886
      %v5961 = vadd.f32 %v5858, %v5886
      %v5962 = vadd.f32 %v5859, %v5886
      %v5963 = vadd.f32 %v5860, %v5886
      %v5964 = vadd.f32 %v5861, %v5886
      %v5965 = vadd.f32 %v5862, %v5886
      %v5966 = vadd.f32 %v5863, %v5886
      %v5967 = vadd.f32 %v5864, %v5886
      %v5968 = vadd.f32 %v5865, %v5886
      %v5969 = vadd.f32 %v5866, %v5886
      %v5970 = vadd.f32 %v5867, %v5886
      %v5971 = vadd.f32 %v5868, %v5886
      %v5972 = vadd.f32 %v5869, %v5886
      %v5973 = vadd.f32 %v5870, %v5886
      %v5974 = vadd.f32 %v5871, %v5886
      %v5975 = vadd.f32 %v5872, %v5886
      %v5976 = vadd.f32 %v5873, %v5886
      %v5977 = vadd.f32 %v5874, %v5886
      %v5978 = vadd.f32 %v5875, %v5886
      %v5979 = vadd.f32 %v5876, %v5886
      %v5980 = vadd.f32 %v5877, %v5886
      %v5981 = vadd.f32 %v5878, %v5886
      %v5982 = vadd.f32 %v5879, %v5886
      %v5983 = vadd.f32 %v5880, %v5886
      %v5984 = vtanh.pop %v5888
      %v5985 = vtanh.pop %v5889
      %v5986 = vtanh.pop %v5890
      %v5987 = vtanh.pop %v5891
      %v5988 = vtanh.pop %v5892
      %v5989 = vtanh.pop %v5893
      %v5990 = vtanh.pop %v5894
      %v5991 = vtanh.pop %v5895
      %v5992 = vtanh.pop %v5896
      %v5993 = vtanh.pop %v5897
      %v5994 = vtanh.pop %v5898
      %v5995 = vtanh.pop %v5899
      %v5996 = vtanh.pop %v5900
      %v5997 = vtanh.pop %v5901
      %v5998 = vtanh.pop %v5902
      %v5999 = vtanh.pop %v5903
      %v6000 = vtanh.pop %v5904
      %v6001 = vtanh.pop %v5905
      %v6002 = vtanh.pop %v5906
      %v6003 = vtanh.pop %v5907
      %v6004 = vtanh.pop %v5908
      %v6005 = vtanh.pop %v5909
      %v6006 = vtanh.pop %v5910
      %v6007 = vtanh.pop %v5911
      %v6008 = vtanh.pop %v5912
      %v6009 = vtanh.pop %v5913
      %v6010 = vtanh.pop %v5914
      %v6011 = vtanh.pop %v5915
      %v6012 = vtanh.pop %v5916
      %v6013 = vtanh.pop %v5917
      %v6014 = vtanh.pop %v5918
      %v6015 = vtanh.pop %v5919
      %v6016 = vtanh.pop %v5920
      %v6017 = vtanh.pop %v5921
      %v6018 = vtanh.pop %v5922
      %v6019 = vtanh.pop %v5923
      %v6020 = vtanh.pop %v5924
      %v6021 = vtanh.pop %v5925
      %v6022 = vtanh.pop %v5926
      %v6023 = vtanh.pop %v5927
      %v6024 = vtanh.pop %v5928
      %v6025 = vtanh.pop %v5929
      %v6026 = vtanh.pop %v5930
      %v6027 = vtanh.pop %v5931
      %v6028 = vtanh.pop %v5932
      %v6029 = vtanh.pop %v5933
      %v6030 = vtanh.pop %v5934
      %v6031 = vtanh.pop %v5935
      %v6032 = vtanh.pop %v5936
      %v6033 = vtanh.pop %v5937
      %v6034 = vtanh.pop %v5938
      %v6035 = vtanh.pop %v5939
      %v6036 = vtanh.pop %v5940
      %v6037 = vtanh.pop %v5941
      %v6038 = vtanh.pop %v5942
      %v6039 = vtanh.pop %v5943
      %v6040 = vtanh.pop %v5944
      %v6041 = vtanh.pop %v5945
      %v6042 = vtanh.pop %v5946
      %v6043 = vtanh.pop %v5947
      %v6044 = vtanh.pop %v5948
      %v6045 = vtanh.pop %v5949
      %v6046 = vtanh.pop %v5950
      %v6047 = vtanh.pop %v5951
      %v6048 = vtanh.pop %v5952
      %v6049 = vtanh.pop %v5953
      %v6050 = vtanh.pop %v5954
      %v6051 = vtanh.pop %v5955
      %v6052 = vtanh.pop %v5956
      %v6053 = vtanh.pop %v5957
      %v6054 = vtanh.pop %v5958
      %v6055 = vtanh.pop %v5959
      %v6056 = vtanh.pop %v5960
      %v6057 = vtanh.pop %v5961
      %v6058 = vtanh.pop %v5962
      %v6059 = vtanh.pop %v5963
      %v6060 = vtanh.pop %v5964
      %v6061 = vtanh.pop %v5965
      %v6062 = vtanh.pop %v5966
      %v6063 = vtanh.pop %v5967
      %v6064 = vtanh.pop %v5968
      %v6065 = vtanh.pop %v5969
      %v6066 = vtanh.pop %v5970
      %v6067 = vtanh.pop %v5971
      %v6068 = vtanh.pop %v5972
      %v6069 = vtanh.pop %v5973
      %v6070 = vtanh.pop %v5974
      %v6071 = vtanh.pop %v5975
      %v6072 = vtanh.pop %v5976
      %v6073 = vtanh.pop %v5977
      %v6074 = vtanh.pop %v5978
      %v6075 = vtanh.pop %v5979
      %v6076 = vtanh.pop %v5980
      %v6077 = vtanh.pop %v5981
      %v6078 = vtanh.pop %v5982
      %v6079 = vtanh.pop %v5983
      %6080 = vst [vmem:[%s194] sm:$0xff] %v5984
      %6081 = vst [vmem:[%s194 + $0x8] sm:$0xff] %v5985
      %6082 = vst [vmem:[%s194 + $0x10] sm:$0xff] %v5986
      %6083 = vst [vmem:[%s194 + $0x18] sm:$0xff] %v5987
      %6084 = vst [vmem:[%s194 + $0x20] sm:$0xff] %v5988
      %6085 = vst [vmem:[%s194 + $0x28] sm:$0xff] %v5989
      %6086 = vst [vmem:[%s194 + $0x30] sm:$0xff] %v5990
      %6087 = vst [vmem:[%s194 + $0x38] sm:$0xff] %v5991
      %6088 = vst [vmem:[%s194 + $0x40] sm:$0xff] %v5992
      %6089 = vst [vmem:[%s194 + $0x48] sm:$0xff] %v5993
      %6090 = vst [vmem:[%s194 + $0x50] sm:$0xff] %v5994
      %6091 = vst [vmem:[%s194 + $0x58] sm:$0xff] %v5995
      %6092 = vst [vmem:[%s194 + $0x60] sm:$0xff] %v5996
      %6093 = vst [vmem:[%s194 + $0x68] sm:$0xff] %v5997
      %6094 = vst [vmem:[%s194 + $0x70] sm:$0xff] %v5998
      %6095 = vst [vmem:[%s194 + $0x78] sm:$0xff] %v5999
      %6096 = vst [vmem:[%s194 + $0x80] sm:$0xff] %v6000
      %6097 = vst [vmem:[%s194 + $0x88] sm:$0xff] %v6001
      %6098 = vst [vmem:[%s194 + $0x90] sm:$0xff] %v6002
      %6099 = vst [vmem:[%s194 + $0x98] sm:$0xff] %v6003
      %6100 = vst [vmem:[%s194 + $0xa0] sm:$0xff] %v6004
      %6101 = vst [vmem:[%s194 + $0xa8] sm:$0xff] %v6005
      %6102 = vst [vmem:[%s194 + $0xb0] sm:$0xff] %v6006
      %6103 = vst [vmem:[%s194 + $0xb8] sm:$0xff] %v6007
      %6104 = vst [vmem:[%s194 + $0xc0] sm:$0xff] %v6008
      %6105 = vst [vmem:[%s194 + $0xc8] sm:$0xff] %v6009
      %6106 = vst [vmem:[%s194 + $0xd0] sm:$0xff] %v6010
      %6107 = vst [vmem:[%s194 + $0xd8] sm:$0xff] %v6011
      %6108 = vst [vmem:[%s194 + $0xe0] sm:$0xff] %v6012
      %6109 = vst [vmem:[%s194 + $0xe8] sm:$0xff] %v6013
      %6110 = vst [vmem:[%s194 + $0xf0] sm:$0xff] %v6014
      %6111 = vst [vmem:[%s194 + $0xf8] sm:$0xff] %v6015
      %6112 = vst [vmem:[%s194 + $0x100] sm:$0xff] %v6016
      %6113 = vst [vmem:[%s194 + $0x108] sm:$0xff] %v6017
      %6114 = vst [vmem:[%s194 + $0x110] sm:$0xff] %v6018
      %6115 = vst [vmem:[%s194 + $0x118] sm:$0xff] %v6019
      %6116 = vst [vmem:[%s194 + $0x120] sm:$0xff] %v6020
      %6117 = vst [vmem:[%s194 + $0x128] sm:$0xff] %v6021
      %6118 = vst [vmem:[%s194 + $0x130] sm:$0xff] %v6022
      %6119 = vst [vmem:[%s194 + $0x138] sm:$0xff] %v6023
      %6120 = vst [vmem:[%s194 + $0x140] sm:$0xff] %v6024
      %6121 = vst [vmem:[%s194 + $0x148] sm:$0xff] %v6025
      %6122 = vst [vmem:[%s194 + $0x150] sm:$0xff] %v6026
      %6123 = vst [vmem:[%s194 + $0x158] sm:$0xff] %v6027
      %6124 = vst [vmem:[%s194 + $0x160] sm:$0xff] %v6028
      %6125 = vst [vmem:[%s194 + $0x168] sm:$0xff] %v6029
      %6126 = vst [vmem:[%s194 + $0x170] sm:$0xff] %v6030
      %6127 = vst [vmem:[%s194 + $0x178] sm:$0xff] %v6031
      %6128 = vst [vmem:[%s194 + $0x180] sm:$0xff] %v6032
      %6129 = vst [vmem:[%s194 + $0x188] sm:$0xff] %v6033
      %6130 = vst [vmem:[%s194 + $0x190] sm:$0xff] %v6034
      %6131 = vst [vmem:[%s194 + $0x198] sm:$0xff] %v6035
      %6132 = vst [vmem:[%s194 + $0x1a0] sm:$0xff] %v6036
      %6133 = vst [vmem:[%s194 + $0x1a8] sm:$0xff] %v6037
      %6134 = vst [vmem:[%s194 + $0x1b0] sm:$0xff] %v6038
      %6135 = vst [vmem:[%s194 + $0x1b8] sm:$0xff] %v6039
      %6136 = vst [vmem:[%s194 + $0x1c0] sm:$0xff] %v6040
      %6137 = vst [vmem:[%s194 + $0x1c8] sm:$0xff] %v6041
      %6138 = vst [vmem:[%s194 + $0x1d0] sm:$0xff] %v6042
      %6139 = vst [vmem:[%s194 + $0x1d8] sm:$0xff] %v6043
      %6140 = vst [vmem:[%s194 + $0x1e0] sm:$0xff] %v6044
      %6141 = vst [vmem:[%s194 + $0x1e8] sm:$0xff] %v6045
      %6142 = vst [vmem:[%s194 + $0x1f0] sm:$0xff] %v6046
      %6143 = vst [vmem:[%s194 + $0x1f8] sm:$0xff] %v6047
      %6144 = vst [vmem:[%s194 + $0x200] sm:$0xff] %v6048
      %6145 = vst [vmem:[%s194 + $0x208] sm:$0xff] %v6049
      %6146 = vst [vmem:[%s194 + $0x210] sm:$0xff] %v6050
      %6147 = vst [vmem:[%s194 + $0x218] sm:$0xff] %v6051
      %6148 = vst [vmem:[%s194 + $0x220] sm:$0xff] %v6052
      %6149 = vst [vmem:[%s194 + $0x228] sm:$0xff] %v6053
      %6150 = vst [vmem:[%s194 + $0x230] sm:$0xff] %v6054
      %6151 = vst [vmem:[%s194 + $0x238] sm:$0xff] %v6055
      %6152 = vst [vmem:[%s194 + $0x240] sm:$0xff] %v6056
      %6153 = vst [vmem:[%s194 + $0x248] sm:$0xff] %v6057
      %6154 = vst [vmem:[%s194 + $0x250] sm:$0xff] %v6058
      %6155 = vst [vmem:[%s194 + $0x258] sm:$0xff] %v6059
      %6156 = vst [vmem:[%s194 + $0x260] sm:$0xff] %v6060
      %6157 = vst [vmem:[%s194 + $0x268] sm:$0xff] %v6061
      %6158 = vst [vmem:[%s194 + $0x270] sm:$0xff] %v6062
      %6159 = vst [vmem:[%s194 + $0x278] sm:$0xff] %v6063
      %6160 = vst [vmem:[%s194 + $0x280] sm:$0xff] %v6064
      %6161 = vst [vmem:[%s194 + $0x288] sm:$0xff] %v6065
      %6162 = vst [vmem:[%s194 + $0x290] sm:$0xff] %v6066
      %6163 = vst [vmem:[%s194 + $0x298] sm:$0xff] %v6067
      %6164 = vst [vmem:[%s194 + $0x2a0] sm:$0xff] %v6068
      %6165 = vst [vmem:[%s194 + $0x2a8] sm:$0xff] %v6069
      %6166 = vst [vmem:[%s194 + $0x2b0] sm:$0xff] %v6070
      %6167 = vst [vmem:[%s194 + $0x2b8] sm:$0xff] %v6071
      %6168 = vst [vmem:[%s194 + $0x2c0] sm:$0xff] %v6072
      %6169 = vst [vmem:[%s194 + $0x2c8] sm:$0xff] %v6073
      %6170 = vst [vmem:[%s194 + $0x2d0] sm:$0xff] %v6074
      %6171 = vst [vmem:[%s194 + $0x2d8] sm:$0xff] %v6075
      %6172 = vst [vmem:[%s194 + $0x2e0] sm:$0xff] %v6076
      %6173 = vst [vmem:[%s194 + $0x2e8] sm:$0xff] %v6077
      %6174 = vst [vmem:[%s194 + $0x2f0] sm:$0xff] %v6078
      %6175 = vst [vmem:[%s194 + $0x2f8] sm:$0xff] %v6079
      %s6176 = smul.u32 24, %s19
      %p6177 = scmp.lt.s32.totalorder %s18, 1
      %s6178 = scalar_select %p6177, %s18, 1
      %p6179 = scmp.lt.s32.totalorder %s6176, 23
      %s6180 = scalar_select %p6179, %s6176, 23
      %s6181 = smul.addr %s6180, 4
      %s6182 = smul.addr %s6178, 96
      %s6183 = sadd.s32 %s6181, %s6182
      %s6184 = smul.addr %s6183, 8
      %s6185 = scalar_lea.vmem %s3, %s6184
      // Predicated region
      $region33: #{upconv_tanh_forward.1} parent=31 // pred_check
        %p6186 = pneg %p114
      $region34: #{upconv_tanh_forward.1} parent=31 // pred_check_branch
        %6188 = sbr.rel (%p6186) target = $region36
      $region35: #{upconv_tanh_forward.1} parent=31 // pred_region
        %s6189 = smul.u32 24, %s19
      $region36: #{upconv_tanh_forward.1} parent=31 // pred_fallthru
        _
    $region32: #{upconv_tanh_forward.1} parent=5 // pred_fallthru
      _
    %p6190 = scmp.le.s32.totalorder 2, %s9
    // Predicated region
    $region37: #{upconv_tanh_forward.1} parent=5 // pred_check
      %p6191 = pneg %p6190
    $region38: #{upconv_tanh_forward.1} parent=5 // pred_check_branch
      %6193 = sbr.rel (%p6191) target = $region40
    $region39: #{upconv_tanh_forward.1} parent=5 // pred_region
      %s6194 = ssub.s32 %s9, 2
      // Predicated region
      $region41: #{upconv_tanh_forward.1} parent=39 // pred_check
        %p6195 = pneg %p120
      $region42: #{upconv_tanh_forward.1} parent=39 // pred_check_branch
        %6197 = sbr.rel (%p6195) target = $region44
      $region43: #{upconv_tanh_forward.1} parent=39 // pred_region
        %s6198 = smul.u32 24, %s21
        %p6199 = scmp.lt.s32.totalorder %s20, 1
        %s6200 = scalar_select %p6199, %s20, 1
        %p6201 = scmp.lt.s32.totalorder %s6198, 23
        %s6202 = scalar_select %p6201, %s6198, 23
        %s6203 = smul.addr %s6202, 4
        %s6204 = smul.addr %s6200, 96
        %s6205 = sadd.s32 %s6203, %s6204
        %s6206 = smul.addr %s6205, 8
        %s6207 = scalar_lea.vmem %s3, %s6206
      $region44: #{upconv_tanh_forward.1} parent=39 // pred_fallthru
        _
    $region40: #{upconv_tanh_forward.1} parent=5 // pred_fallthru
      _
  $region6: #{upconv_tanh_forward.1} parent=0 // loop_footer
    %s13 = sadd.s32 1, %s9
  $region7: #{upconv_tanh_forward.1} parent=0 // loop_footer_branch
    %8 = sbr.rel target = $region3
  $region8: #{upconv_tanh_forward.1} parent=0 // loop_exit
    _

</llo_original>
